<compile_context>
chip_gen: v7x
topology: tpu7x:2x2x1
jax: 0.10.0
libtpu: 0.0.40
codegen_flags: <defaults>
</compile_context>

<pallas_src>
import jax
import jax.numpy as jnp
from jax.experimental import pallas as pl
from jax.experimental.pallas import tpu as pltpu

EPS = 1e-5


def _fused_kernel(x1_ref, x2_ref, w_ref, gamma_ref, beta_ref, o_ref):
    # add + relu on the full [C_in, P] activation in f32 (VPU), then cast the
    # MXU operand to bf16.  Negligible vs. the HBM time of the inputs.
    x = jnp.maximum(x1_ref[...] + x2_ref[...], 0.0)
    x_bf = x.astype(jnp.bfloat16)

    # 1x1 conv, lane-dense orientation:  y_t[p, c] = sum_k x[k, p] * W[c, k].
    # Result columns = tc (128 lanes), f32 accumulation on the MXU.
    y_t = jax.lax.dot_general(
        x_bf, w_ref[...],
        dimension_numbers=(((0,), (1,)), ((), ())),
        preferred_element_type=jnp.float32,
    )  # [P, tc] f32

    # BatchNorm (training-mode batch stats): per output channel == per lane,
    # reduction over the P (sublane) axis, biased variance.
    mean = jnp.mean(y_t, axis=0, keepdims=True)                # [1, tc]
    var = jnp.mean((y_t - mean) ** 2, axis=0, keepdims=True)   # [1, tc]
    inv = jax.lax.rsqrt(var + EPS)
    out_t = (y_t - mean) * inv * gamma_ref[...] + beta_ref[...]  # [P, tc]

    # XLU transpose back to [tc, P] so the output stays channel-major (free
    # NCHW reshape in the wrapper, no host-side transpose of the output).
    o_ref[...] = out_t.T.astype(o_ref.dtype)


def fused_add_relu_conv1x1_bn(x332, x324, weight, gamma, beta):
    """x332, x324: [N, C_in, H, W] (NCHW). weight: [C_out, C_in] (1x1 conv,
    no bias). gamma, beta: [C_out]. Returns [N, C_out, H, W] (f32)."""
    N, C_in, H, W = x332.shape
    C_out = weight.shape[0]
    P = N * H * W

    # NCHW -> [C_in, P] matrix. For N == 1 this is a pure (free) reshape.
    if N == 1:
        a = x332.reshape(C_in, P)
        b = x324.reshape(C_in, P)
    else:
        a = jnp.moveaxis(x332, 0, 1).reshape(C_in, P)
        b = jnp.moveaxis(x324, 0, 1).reshape(C_in, P)

    # Weight consumed as [C_out, C_in] in bf16 (halves the dominant HBM term).
    w = weight.reshape(C_out, C_in).astype(jnp.bfloat16)
    g = gamma.reshape(1, C_out).astype(jnp.float32)
    bt = beta.reshape(1, C_out).astype(jnp.float32)

    # Split C_out across a parallel grid: 4 steps -> 2 per v7x TensorCore
    # (weight-half double buffering + writeback overlap); exact for BN.
    if C_out % 32 == 0:
        n_split = 4
    elif C_out % 16 == 0:
        n_split = 2
    else:
        n_split = 1
    tc = C_out // n_split

    out_flat = pl.pallas_call(
        _fused_kernel,
        out_shape=jax.ShapeDtypeStruct((C_out, P), x332.dtype),
        grid_spec=pltpu.PrefetchScalarGridSpec(
            num_scalar_prefetch=0,
            grid=(n_split,),
            in_specs=[
                pl.BlockSpec((C_in, P), lambda j: (0, 0)),     # x332 (full, resident)
                pl.BlockSpec((C_in, P), lambda j: (0, 0)),     # x324 (full, resident)
                pl.BlockSpec((tc, C_in), lambda j: (j, 0)),    # weight slice (bf16)
                pl.BlockSpec((1, tc), lambda j: (0, j)),       # gamma row slice
                pl.BlockSpec((1, tc), lambda j: (0, j)),       # beta row slice
            ],
            out_specs=pl.BlockSpec((tc, P), lambda j: (j, 0)),
        ),
        compiler_params=pltpu.CompilerParams(
            dimension_semantics=("parallel",),
        ),
    )(a, b, w, g, bt)

    # [C_out, P] -> NCHW (free reshape for N == 1).
    if N == 1:
        return out_flat.reshape(1, C_out, H, W)
    return jnp.moveaxis(out_flat.reshape(C_out, N, H, W), 0, 1)


def reference(x332, x324, weight, gamma, beta):
    x = jnp.maximum(x332 + x324, 0.0)                          # NCHW
    y = jnp.einsum("oc,nchw->nohw", weight, x)                 # 1x1 conv (f32)
    mean = jnp.mean(y, axis=(0, 2, 3), keepdims=True)
    var = jnp.mean((y - mean) ** 2, axis=(0, 2, 3), keepdims=True)
    yn = (y - mean) * jax.lax.rsqrt(var + EPS)
    return yn * gamma.reshape(1, -1, 1, 1) + beta.reshape(1, -1, 1, 1)


if __name__ == "__main__":
    # Channels fixed by Conv2d(2048, 512); batch/spatial kept small.
    N, C_in, C_out, H, W = 1, 2048, 512, 8, 8

    key = jax.random.PRNGKey(0)
    k1, k2, k3, k4, k5 = jax.random.split(key, 5)
    x332 = jax.random.normal(k1, (N, C_in, H, W), dtype=jnp.float32)
    x324 = jax.random.normal(k2, (N, C_in, H, W), dtype=jnp.float32)
    weight = jax.random.normal(k3, (C_out, C_in), dtype=jnp.float32) * 0.02
    gamma = 1.0 + 0.1 * jax.random.normal(k4, (C_out,), dtype=jnp.float32)
    beta = 0.1 * jax.random.normal(k5, (C_out,), dtype=jnp.float32)

    out = fused_add_relu_conv1x1_bn(x332, x324, weight, gamma, beta)
    out = jax.block_until_ready(out)

    ref = reference(x332, x324, weight, gamma, beta)
    assert out.shape == (N, C_out, H, W)
    # bf16 MXU operands (f32 accumulation) vs. f32 reference: tolerance relaxed.
    max_err = float(jnp.max(jnp.abs(out - ref)))
    assert jnp.allclose(out, ref, atol=3e-2, rtol=3e-2), f"max abs err {max_err}"

    # TODO(synk): PyTorch training-mode BN also updates running_mean/running_var
    # (momentum=0.1); only the normalized activation output is produced here.
    print("KERNEL_OK")
</pallas_src>

<mosaic_0001>
module attributes {stable_mosaic.version = 11 : i64} {
  func.func @_fused_kernel(%arg0: i32, %arg1: memref<2048x64xf32, #tpu.memory_space<vmem>>, %arg2: memref<2048x64xf32, #tpu.memory_space<vmem>>, %arg3: memref<128x2048xbf16, #tpu.memory_space<vmem>>, %arg4: memref<1x128xf32, #tpu.memory_space<vmem>>, %arg5: memref<1x128xf32, #tpu.memory_space<vmem>>, %arg6: memref<128x64xf32, #tpu.memory_space<vmem>>) attributes {dimension_semantics = [#tpu.dimension_semantics<parallel>], iteration_bounds = array<i64: 4>, scalar_prefetch = 0 : i64, scratch_operands = 0 : i64, tpu.core_type = #tpu.core_type<tc>, window_params = [{pipeline_mode = #tpu.pipeline_mode<synchronous>, transform_indices = @transform_0, window_bounds = array<i64: 2048, 64>}, {pipeline_mode = #tpu.pipeline_mode<synchronous>, transform_indices = @transform_1, window_bounds = array<i64: 2048, 64>}, {transform_indices = @transform_2, window_bounds = array<i64: 128, 2048>}, {transform_indices = @transform_3, window_bounds = array<i64: 1, 128>}, {transform_indices = @transform_4, window_bounds = array<i64: 1, 128>}, {transform_indices = @transform_5, window_bounds = array<i64: 128, 64>}]} {
    %c0 = arith.constant 0 : index
    %c0_0 = arith.constant 0 : index
    %0 = vector.load %arg1[%c0, %c0_0] : memref<2048x64xf32, #tpu.memory_space<vmem>>, vector<2048x64xf32>
    %c0_1 = arith.constant 0 : index
    %c0_2 = arith.constant 0 : index
    %1 = vector.load %arg2[%c0_1, %c0_2] : memref<2048x64xf32, #tpu.memory_space<vmem>>, vector<2048x64xf32>
    %2 = arith.addf %0, %1 : vector<2048x64xf32>
    %cst = arith.constant 0.000000e+00 : f32
    %3 = vector.broadcast %cst : f32 to vector<2048x64xf32>
    %4 = arith.maximumf %2, %3 : vector<2048x64xf32>
    %5 = arith.truncf %4 : vector<2048x64xf32> to vector<2048x64xbf16>
    %c0_3 = arith.constant 0 : index
    %c0_4 = arith.constant 0 : index
    %6 = vector.load %arg3[%c0_3, %c0_4] : memref<128x2048xbf16, #tpu.memory_space<vmem>>, vector<128x2048xbf16>
    %cst_5 = arith.constant dense<0.000000e+00> : vector<64x128xf32>
    %7 = tpu.matmul %5, %6, %cst_5 {dimension_numbers = #tpu.dot_dimension_numbers<[0], [1], [1], [0], [0, 1, 1, 0], [], []>} : vector<2048x64xbf16>, vector<128x2048xbf16>, vector<64x128xf32> -> vector<64x128xf32>
    %cst_6 = arith.constant dense<0.000000e+00> : vector<128xf32>
    %8 = vector.multi_reduction <add>, %7, %cst_6 [0] : vector<64x128xf32> to vector<128xf32>
    %9 = vector.shape_cast %8 : vector<128xf32> to vector<1x128xf32>
    %cst_7 = arith.constant 6.400000e+01 : f32
    %10 = vector.broadcast %cst_7 : f32 to vector<1x128xf32>
    %11 = arith.divf %9, %10 : vector<1x128xf32>
    %12 = vector.broadcast %11 : vector<1x128xf32> to vector<64x128xf32>
    %13 = arith.subf %7, %12 : vector<64x128xf32>
    %14 = arith.mulf %13, %13 : vector<64x128xf32>
    %cst_8 = arith.constant dense<0.000000e+00> : vector<128xf32>
    %15 = vector.multi_reduction <add>, %14, %cst_8 [0] : vector<64x128xf32> to vector<128xf32>
    %16 = vector.shape_cast %15 : vector<128xf32> to vector<1x128xf32>
    %cst_9 = arith.constant 6.400000e+01 : f32
    %17 = vector.broadcast %cst_9 : f32 to vector<1x128xf32>
    %18 = arith.divf %16, %17 : vector<1x128xf32>
    %cst_10 = arith.constant 9.99999974E-6 : f32
    %19 = vector.broadcast %cst_10 : f32 to vector<1x128xf32>
    %20 = arith.addf %18, %19 : vector<1x128xf32>
    %21 = math.rsqrt %20 : vector<1x128xf32>
    %22 = vector.broadcast %11 : vector<1x128xf32> to vector<64x128xf32>
    %23 = arith.subf %7, %22 : vector<64x128xf32>
    %24 = vector.broadcast %21 : vector<1x128xf32> to vector<64x128xf32>
    %25 = arith.mulf %23, %24 : vector<64x128xf32>
    %c0_11 = arith.constant 0 : index
    %c0_12 = arith.constant 0 : index
    %26 = vector.load %arg4[%c0_11, %c0_12] : memref<1x128xf32, #tpu.memory_space<vmem>>, vector<1x128xf32>
    %27 = vector.broadcast %26 : vector<1x128xf32> to vector<64x128xf32>
    %28 = arith.mulf %25, %27 : vector<64x128xf32>
    %c0_13 = arith.constant 0 : index
    %c0_14 = arith.constant 0 : index
    %29 = vector.load %arg5[%c0_13, %c0_14] : memref<1x128xf32, #tpu.memory_space<vmem>>, vector<1x128xf32>
    %30 = vector.broadcast %29 : vector<1x128xf32> to vector<64x128xf32>
    %31 = arith.addf %28, %30 : vector<64x128xf32>
    %32 = tpu.transpose %31, [1, 0] : vector<64x128xf32> -> vector<128x64xf32>
    %c0_15 = arith.constant 0 : index
    %c0_16 = arith.constant 0 : index
    %33 = vector.load %arg6[%c0_15, %c0_16] : memref<128x64xf32, #tpu.memory_space<vmem>>, vector<128x64xf32>
    tpu.vector_store %arg6[%c0_15, %c0_16], %32 {strides = array<i32>} : memref<128x64xf32, #tpu.memory_space<vmem>>, vector<128x64xf32>,
    return
  }
  func.func @transform_0(%arg0: i32) -> (i32, i32) {
    %c0_i32 = arith.constant 0 : i32
    %c0_i32_0 = arith.constant 0 : i32
    %c0_i32_1 = arith.constant 0 : i32
    return %c0_i32, %c0_i32_0 : i32, i32
  }
  func.func @transform_1(%arg0: i32) -> (i32, i32) {
    %c0_i32 = arith.constant 0 : i32
    %c0_i32_0 = arith.constant 0 : i32
    %c0_i32_1 = arith.constant 0 : i32
    return %c0_i32, %c0_i32_0 : i32, i32
  }
  func.func @transform_2(%arg0: i32) -> (i32, i32) {
    %c0_i32 = arith.constant 0 : i32
    %c0_i32_0 = arith.constant 0 : i32
    return %arg0, %c0_i32 : i32, i32
  }
  func.func @transform_3(%arg0: i32) -> (i32, i32) {
    %c0_i32 = arith.constant 0 : i32
    %c0_i32_0 = arith.constant 0 : i32
    return %c0_i32, %arg0 : i32, i32
  }
  func.func @transform_4(%arg0: i32) -> (i32, i32) {
    %c0_i32 = arith.constant 0 : i32
    %c0_i32_0 = arith.constant 0 : i32
    return %c0_i32, %arg0 : i32, i32
  }
  func.func @transform_5(%arg0: i32) -> (i32, i32) {
    %c0_i32 = arith.constant 0 : i32
    %c0_i32_0 = arith.constant 0 : i32
    return %arg0, %c0_i32 : i32, i32
  }
}

</mosaic_0001>

<llo_original>
// kernel: tpu_custom_call.1
$region0: #{tpu_custom_call.1}
  #allocation0 [shape = 'u32[]', space=smem, size = 0x4, offset = 0x4, fixed_abs, tag = 'smem constant byte address 0x4 - core index']
  #allocation1 [shape = 'u32[144,128]{1,0:T(1,128)}', space=vmem, size = 0x12000, scoped, tag = 'internal scratch']
  %s0 = inlined_call_operand.vmem [shape: f32[2048,64], index: 0, kind: input, shape index: {}]
  %s1 = inlined_call_operand.vmem [shape: f32[2048,64], index: 1, kind: input, shape index: {}]
  %s2 = inlined_call_operand.vmem [shape: bf16[512,2048], index: 2, kind: input, shape index: {}]
  %s3 = inlined_call_operand.vmem [shape: f32[1,512], index: 3, kind: input, shape index: {}]
  %s4 = inlined_call_operand.vmem [shape: f32[1,512], index: 4, kind: input, shape index: {}]
  %s5 = inlined_call_operand.vmem [shape: f32[512,64], index: 5, kind: output, shape index: {}]
  %s6 = sld [smem:[#allocation0]]
  $region53: #{tpu_custom_call.1} parent=0
    _
  %s8 = ssub.s32 1, %s6
  %s9 = scalar_select 0, %s8, %s6
  loop: start=0, step=1, limit=6
  $region2: #{tpu_custom_call.1} parent=0 // loop_pre_header
    _
  $region3: #{tpu_custom_call.1} parent=0 // loop_header
    %s11 = sphi 0, %s15
    %p12 = scmp.ge.s32.totalorder %s11, 6
    %s19 = sphi 0, %s19
    %s21 = sphi 0, %s19
    %s22 = sphi 0, %s21
    %s36 = sphi 0, %s22
    %s40 = sphi 0, %s40
    %s42 = sphi 0, %s40
    %s43 = sphi 0, %s42
    %s57 = sphi 0, %s43
    %s63 = sphi 0, %s65
    %s66 = sphi 0, %s63
    %s67 = sphi 0, %s66
    %s83 = sphi 0, %s67
    %s89 = sphi 0, %s91
    %s92 = sphi 0, %s89
    %s93 = sphi 0, %s92
    %s109 = sphi 0, %s93
    %s115 = sphi 0, %s117
    %s118 = sphi 0, %s115
    %s119 = sphi 0, %s118
    %s135 = sphi 0, %s119
    %s141 = sphi 0, %s143
    %s144 = sphi 0, %s141
    %s145 = sphi 0, %s144
    %s161 = sphi 0, %s145
  $region4: #{tpu_custom_call.1} parent=0 // loop_header_branch
    %14 = sbr.rel (%p12) target = $region8
  $region5: #{tpu_custom_call.1} parent=0 // loop_body
    %s16 = ssub.s32 %s11, 1
    %s17 = ssub.s32 %s11, 2
    %s18 = sadd.s32 %s11, 1
    %s20 = sadd.s32 %s19, 1
    %p23 = scmp.eq.s32.totalorder %s11, 3
    %p24 = scmp.ne.s32.totalorder %s19, %s21
    %p25 = scmp.eq.s32.totalorder %s11, 0
    %p26 = por %p24, %p25
    %p27 = scmp.ne.s32.totalorder %s19, %s21
    %p28 = scmp.eq.s32.totalorder %s16, 3
    %p29 = por %p27, %p28
    %p30 = scmp.ne.s32.totalorder %s21, %s22
    %p31 = scmp.eq.s32.totalorder %s16, 0
    %p32 = por %p30, %p31
    %p33 = scmp.ne.s32.totalorder %s21, %s22
    %p34 = scmp.eq.s32.totalorder %s17, 3
    %p35 = por %p33, %p34
    %p37 = scmp.ne.s32.totalorder %s22, %s36
    %p38 = scmp.eq.s32.totalorder %s17, 0
    %p39 = por %p37, %p38
    %s41 = sadd.s32 %s40, 1
    %p44 = scmp.eq.s32.totalorder %s11, 3
    %p45 = scmp.ne.s32.totalorder %s40, %s42
    %p46 = scmp.eq.s32.totalorder %s11, 0
    %p47 = por %p45, %p46
    %p48 = scmp.ne.s32.totalorder %s40, %s42
    %p49 = scmp.eq.s32.totalorder %s16, 3
    %p50 = por %p48, %p49
    %p51 = scmp.ne.s32.totalorder %s42, %s43
    %p52 = scmp.eq.s32.totalorder %s16, 0
    %p53 = por %p51, %p52
    %p54 = scmp.ne.s32.totalorder %s42, %s43
    %p55 = scmp.eq.s32.totalorder %s17, 3
    %p56 = por %p54, %p55
    %p58 = scmp.ne.s32.totalorder %s43, %s57
    %p59 = scmp.eq.s32.totalorder %s17, 0
    %p60 = por %p58, %p59
    %s61 = ssub.s32 %s11, %s18
    %p62 = scmp.eq.s32.totalorder %s61, 0
    %s64 = sadd.s32 %s63, 1
    %s65 = scalar_select %p62, %s63, %s64
    %p68 = pneg %p62
    %p69 = scmp.eq.s32.totalorder %s11, 3
    %p70 = por %p68, %p69
    %p71 = scmp.ne.s32.totalorder %s63, %s66
    %p72 = scmp.eq.s32.totalorder %s11, 0
    %p73 = por %p71, %p72
    %p74 = scmp.ne.s32.totalorder %s63, %s66
    %p75 = scmp.eq.s32.totalorder %s16, 3
    %p76 = por %p74, %p75
    %p77 = scmp.ne.s32.totalorder %s66, %s67
    %p78 = scmp.eq.s32.totalorder %s16, 0
    %p79 = por %p77, %p78
    %p80 = scmp.ne.s32.totalorder %s66, %s67
    %p81 = scmp.eq.s32.totalorder %s17, 3
    %p82 = por %p80, %p81
    %p84 = scmp.ne.s32.totalorder %s67, %s83
    %p85 = scmp.eq.s32.totalorder %s17, 0
    %p86 = por %p84, %p85
    %s87 = ssub.s32 %s11, %s18
    %p88 = scmp.eq.s32.totalorder %s87, 0
    %s90 = sadd.s32 %s89, 1
    %s91 = scalar_select %p88, %s89, %s90
    %p94 = pneg %p88
    %p95 = scmp.eq.s32.totalorder %s11, 3
    %p96 = por %p94, %p95
    %p97 = scmp.ne.s32.totalorder %s89, %s92
    %p98 = scmp.eq.s32.totalorder %s11, 0
    %p99 = por %p97, %p98
    %p100 = scmp.ne.s32.totalorder %s89, %s92
    %p101 = scmp.eq.s32.totalorder %s16, 3
    %p102 = por %p100, %p101
    %p103 = scmp.ne.s32.totalorder %s92, %s93
    %p104 = scmp.eq.s32.totalorder %s16, 0
    %p105 = por %p103, %p104
    %p106 = scmp.ne.s32.totalorder %s92, %s93
    %p107 = scmp.eq.s32.totalorder %s17, 3
    %p108 = por %p106, %p107
    %p110 = scmp.ne.s32.totalorder %s93, %s109
    %p111 = scmp.eq.s32.totalorder %s17, 0
    %p112 = por %p110, %p111
    %s113 = ssub.s32 %s11, %s18
    %p114 = scmp.eq.s32.totalorder %s113, 0
    %s116 = sadd.s32 %s115, 1
    %s117 = scalar_select %p114, %s115, %s116
    %p120 = pneg %p114
    %p121 = scmp.eq.s32.totalorder %s11, 3
    %p122 = por %p120, %p121
    %p123 = scmp.ne.s32.totalorder %s115, %s118
    %p124 = scmp.eq.s32.totalorder %s11, 0
    %p125 = por %p123, %p124
    %p126 = scmp.ne.s32.totalorder %s115, %s118
    %p127 = scmp.eq.s32.totalorder %s16, 3
    %p128 = por %p126, %p127
    %p129 = scmp.ne.s32.totalorder %s118, %s119
    %p130 = scmp.eq.s32.totalorder %s16, 0
    %p131 = por %p129, %p130
    %p132 = scmp.ne.s32.totalorder %s118, %s119
    %p133 = scmp.eq.s32.totalorder %s17, 3
    %p134 = por %p132, %p133
    %p136 = scmp.ne.s32.totalorder %s119, %s135
    %p137 = scmp.eq.s32.totalorder %s17, 0
    %p138 = por %p136, %p137
    %s139 = ssub.s32 %s11, %s18
    %p140 = scmp.eq.s32.totalorder %s139, 0
    %s142 = sadd.s32 %s141, 1
    %s143 = scalar_select %p140, %s141, %s142
    %p146 = pneg %p140
    %p147 = scmp.eq.s32.totalorder %s11, 3
    %p148 = por %p146, %p147
    %p149 = scmp.ne.s32.totalorder %s141, %s144
    %p150 = scmp.eq.s32.totalorder %s11, 0
    %p151 = por %p149, %p150
    %p152 = scmp.ne.s32.totalorder %s141, %s144
    %p153 = scmp.eq.s32.totalorder %s16, 3
    %p154 = por %p152, %p153
    %p155 = scmp.ne.s32.totalorder %s144, %s145
    %p156 = scmp.eq.s32.totalorder %s16, 0
    %p157 = por %p155, %p156
    %p158 = scmp.ne.s32.totalorder %s144, %s145
    %p159 = scmp.eq.s32.totalorder %s17, 3
    %p160 = por %p158, %p159
    %p162 = scmp.ne.s32.totalorder %s145, %s161
    %p163 = scmp.eq.s32.totalorder %s17, 0
    %p164 = por %p162, %p163
    %p165 = scmp.le.s32.totalorder 1, %s11
    %p166 = scmp.lt.s32.totalorder %s11, 5
    %p167 = pnand %p165, %p166
    %p168 = pneg %p167
    // Predicated region
    $region9: #{tpu_custom_call.1} parent=5 // pred_check
      _
    $region10: #{tpu_custom_call.1} parent=5 // pred_check_branch
      %170 = sbr.rel (%p167) target = $region12
    $region11: #{tpu_custom_call.1} parent=5 // pred_region
      %s171 = ssub.s32 %s11, 1
      // Predicated region
      $region13: #{tpu_custom_call.1} parent=11 // pred_check
        %p172 = pneg %p32
      $region14: #{tpu_custom_call.1} parent=11 // pred_check_branch
        %174 = sbr.rel (%p172) target = $region16
      $region15: #{tpu_custom_call.1} parent=11 // pred_region
        _
      $region16: #{tpu_custom_call.1} parent=11 // pred_fallthru
        _
      // Predicated region
      $region17: #{tpu_custom_call.1} parent=11 // pred_check
        %p175 = pneg %p53
      $region18: #{tpu_custom_call.1} parent=11 // pred_check_branch
        %177 = sbr.rel (%p175) target = $region20
      $region19: #{tpu_custom_call.1} parent=11 // pred_region
        _
      $region20: #{tpu_custom_call.1} parent=11 // pred_fallthru
        _
    $region12: #{tpu_custom_call.1} parent=5 // pred_fallthru
      _
    %p178 = scmp.lt.s32.totalorder %s11, 4
    // Predicated region
    $region21: #{tpu_custom_call.1} parent=5 // pred_check
      %p179 = pneg %p178
    $region22: #{tpu_custom_call.1} parent=5 // pred_check_branch
      %181 = sbr.rel (%p179) target = $region24
    $region23: #{tpu_custom_call.1} parent=5 // pred_region
      // Predicated region
      $region25: #{tpu_custom_call.1} parent=23 // pred_check
        %p182 = pneg %p73
      $region26: #{tpu_custom_call.1} parent=23 // pred_check_branch
        %184 = sbr.rel (%p182) target = $region28
      $region27: #{tpu_custom_call.1} parent=23 // pred_region
        %s185 = smul.u32 16, %s11
        %p186 = scmp.lt.s32.totalorder %s185, 63
        %s187 = scalar_select %p186, %s185, 63
        %s188 = smul.addr %s187, 16
        %s189 = smul.addr %s188, 4
        %s190 = scalar_lea.vmem %s2, %s189
        %s191 = smul.u32 16, %s11
      $region28: #{tpu_custom_call.1} parent=23 // pred_fallthru
        _
      // Predicated region
      $region29: #{tpu_custom_call.1} parent=23 // pred_check
        %p192 = pneg %p99
      $region30: #{tpu_custom_call.1} parent=23 // pred_check_branch
        %194 = sbr.rel (%p192) target = $region32
      $region31: #{tpu_custom_call.1} parent=23 // pred_region
        %p195 = scmp.lt.s32.totalorder %s11, 3
        %s196 = scalar_select %p195, %s11, 3
        %s197 = scalar_lea.vmem %s3, %s196
      $region32: #{tpu_custom_call.1} parent=23 // pred_fallthru
        _
      // Predicated region
      $region33: #{tpu_custom_call.1} parent=23 // pred_check
        %p198 = pneg %p125
      $region34: #{tpu_custom_call.1} parent=23 // pred_check_branch
        %200 = sbr.rel (%p198) target = $region36
      $region35: #{tpu_custom_call.1} parent=23 // pred_region
        %p201 = scmp.lt.s32.totalorder %s11, 3
        %s202 = scalar_select %p201, %s11, 3
        %s203 = scalar_lea.vmem %s4, %s202
      $region36: #{tpu_custom_call.1} parent=23 // pred_fallthru
        _
    $region24: #{tpu_custom_call.1} parent=5 // pred_fallthru
      _
    %p204 = scmp.le.s32.totalorder 1, %s11
    %p205 = scmp.lt.s32.totalorder %s11, 5
    %p206 = pnand %p204, %p205
    %p207 = pneg %p206
    // Predicated region
    $region37: #{tpu_custom_call.1} parent=5 // pred_check
      _
    $region38: #{tpu_custom_call.1} parent=5 // pred_check_branch
      %209 = sbr.rel (%p206) target = $region40
    $region39: #{tpu_custom_call.1} parent=5 // pred_region
      %s210 = ssub.s32 %s11, 1
      %p211 = pneg %p32
      %p212 = pneg %p29
      %p213 = pneg %p53
      %p214 = pneg %p50
      %s215 = smul.u32 16, %s16
      %p216 = scmp.lt.s32.totalorder %s215, 63
      %s217 = scalar_select %p216, %s215, 63
      %s218 = smul.addr %s217, 16
      %s219 = smul.addr %s218, 4
      %s220 = scalar_lea.vmem %s2, %s219
      %p221 = pneg %p79
      %p222 = pneg %p76
      %p223 = scmp.lt.s32.totalorder %s16, 3
      %s224 = scalar_select %p223, %s16, 3
      %s225 = scalar_lea.vmem %s3, %s224
      %p226 = pneg %p105
      %p227 = pneg %p102
      %p228 = scmp.lt.s32.totalorder %s16, 3
      %s229 = scalar_select %p228, %s16, 3
      %s230 = scalar_lea.vmem %s4, %s229
      %p231 = pneg %p131
      %p232 = pneg %p128
      %p233 = pneg %p157
      %p234 = pneg %p154
      %s235 = smul.u32 16, %s16
      %p236 = scmp.lt.s32.totalorder %s235, 63
      %s237 = scalar_select %p236, %s235, 63
      %s238 = smul.addr %s237, 8
      %s239 = scalar_lea.vmem %s5, %s238
      %s240 = smul.u32 16, %s16
      %p241 = scmp.lt.s32.totalorder %s240, 63
      %s242 = scalar_select %p241, %s240, 63
      %s243 = smul.addr %s242, 16
      %s244 = smul.addr %s243, 4
      %s245 = scalar_lea.vmem %s2, %s244
      %s246 = smul.u32 16, %s16
      %p247 = scmp.lt.s32.totalorder %s16, 3
      %s248 = scalar_select %p247, %s16, 3
      %s249 = scalar_lea.vmem %s3, %s248
      %p250 = scmp.lt.s32.totalorder %s16, 3
      %s251 = scalar_select %p250, %s16, 3
      %s252 = scalar_lea.vmem %s4, %s251
      %s253 = smul.u32 16, %s16
      %p254 = scmp.lt.s32.totalorder %s253, 63
      %s255 = scalar_select %p254, %s253, 63
      %s256 = smul.addr %s255, 8
      %s257 = scalar_lea.vmem %s5, %s256
      %s258 = smul.u32 16, %s16
      %v260 = vld [vmem:[%s0] sm:$0xff]
      %v261 = vld [vmem:[%s0 + $0x8] sm:$0xff]
      %v262 = vld [vmem:[%s0 + $0x10] sm:$0xff]
      %v263 = vld [vmem:[%s0 + $0x18] sm:$0xff]
      %v264 = vld [vmem:[%s0 + $0x20] sm:$0xff]
      %v265 = vld [vmem:[%s0 + $0x28] sm:$0xff]
      %v266 = vld [vmem:[%s0 + $0x30] sm:$0xff]
      %v267 = vld [vmem:[%s0 + $0x38] sm:$0xff]
      %v268 = vld [vmem:[%s0 + $0x40] sm:$0xff]
      %v269 = vld [vmem:[%s0 + $0x48] sm:$0xff]
      %v270 = vld [vmem:[%s0 + $0x50] sm:$0xff]
      %v271 = vld [vmem:[%s0 + $0x58] sm:$0xff]
      %v272 = vld [vmem:[%s0 + $0x60] sm:$0xff]
      %v273 = vld [vmem:[%s0 + $0x68] sm:$0xff]
      %v274 = vld [vmem:[%s0 + $0x70] sm:$0xff]
      %v275 = vld [vmem:[%s0 + $0x78] sm:$0xff]
      %v276 = vld [vmem:[%s0 + $0x80] sm:$0xff]
      %v277 = vld [vmem:[%s0 + $0x88] sm:$0xff]
      %v278 = vld [vmem:[%s0 + $0x90] sm:$0xff]
      %v279 = vld [vmem:[%s0 + $0x98] sm:$0xff]
      %v280 = vld [vmem:[%s0 + $0xa0] sm:$0xff]
      %v281 = vld [vmem:[%s0 + $0xa8] sm:$0xff]
      %v282 = vld [vmem:[%s0 + $0xb0] sm:$0xff]
      %v283 = vld [vmem:[%s0 + $0xb8] sm:$0xff]
      %v284 = vld [vmem:[%s0 + $0xc0] sm:$0xff]
      %v285 = vld [vmem:[%s0 + $0xc8] sm:$0xff]
      %v286 = vld [vmem:[%s0 + $0xd0] sm:$0xff]
      %v287 = vld [vmem:[%s0 + $0xd8] sm:$0xff]
      %v288 = vld [vmem:[%s0 + $0xe0] sm:$0xff]
      %v289 = vld [vmem:[%s0 + $0xe8] sm:$0xff]
      %v290 = vld [vmem:[%s0 + $0xf0] sm:$0xff]
      %v291 = vld [vmem:[%s0 + $0xf8] sm:$0xff]
      %v292 = vld [vmem:[%s0 + $0x100] sm:$0xff]
      %v293 = vld [vmem:[%s0 + $0x108] sm:$0xff]
      %v294 = vld [vmem:[%s0 + $0x110] sm:$0xff]
      %v295 = vld [vmem:[%s0 + $0x118] sm:$0xff]
      %v296 = vld [vmem:[%s0 + $0x120] sm:$0xff]
      %v297 = vld [vmem:[%s0 + $0x128] sm:$0xff]
      %v298 = vld [vmem:[%s0 + $0x130] sm:$0xff]
      %v299 = vld [vmem:[%s0 + $0x138] sm:$0xff]
      %v300 = vld [vmem:[%s0 + $0x140] sm:$0xff]
      %v301 = vld [vmem:[%s0 + $0x148] sm:$0xff]
      %v302 = vld [vmem:[%s0 + $0x150] sm:$0xff]
      %v303 = vld [vmem:[%s0 + $0x158] sm:$0xff]
      %v304 = vld [vmem:[%s0 + $0x160] sm:$0xff]
      %v305 = vld [vmem:[%s0 + $0x168] sm:$0xff]
      %v306 = vld [vmem:[%s0 + $0x170] sm:$0xff]
      %v307 = vld [vmem:[%s0 + $0x178] sm:$0xff]
      %v308 = vld [vmem:[%s0 + $0x180] sm:$0xff]
      %v309 = vld [vmem:[%s0 + $0x188] sm:$0xff]
      %v310 = vld [vmem:[%s0 + $0x190] sm:$0xff]
      %v311 = vld [vmem:[%s0 + $0x198] sm:$0xff]
      %v312 = vld [vmem:[%s0 + $0x1a0] sm:$0xff]
      %v313 = vld [vmem:[%s0 + $0x1a8] sm:$0xff]
      %v314 = vld [vmem:[%s0 + $0x1b0] sm:$0xff]
      %v315 = vld [vmem:[%s0 + $0x1b8] sm:$0xff]
      %v316 = vld [vmem:[%s0 + $0x1c0] sm:$0xff]
      %v317 = vld [vmem:[%s0 + $0x1c8] sm:$0xff]
      %v318 = vld [vmem:[%s0 + $0x1d0] sm:$0xff]
      %v319 = vld [vmem:[%s0 + $0x1d8] sm:$0xff]
      %v320 = vld [vmem:[%s0 + $0x1e0] sm:$0xff]
      %v321 = vld [vmem:[%s0 + $0x1e8] sm:$0xff]
      %v322 = vld [vmem:[%s0 + $0x1f0] sm:$0xff]
      %v323 = vld [vmem:[%s0 + $0x1f8] sm:$0xff]
      %v324 = vld [vmem:[%s0 + $0x200] sm:$0xff]
      %v325 = vld [vmem:[%s0 + $0x208] sm:$0xff]
      %v326 = vld [vmem:[%s0 + $0x210] sm:$0xff]
      %v327 = vld [vmem:[%s0 + $0x218] sm:$0xff]
      %v328 = vld [vmem:[%s0 + $0x220] sm:$0xff]
      %v329 = vld [vmem:[%s0 + $0x228] sm:$0xff]
      %v330 = vld [vmem:[%s0 + $0x230] sm:$0xff]
      %v331 = vld [vmem:[%s0 + $0x238] sm:$0xff]
      %v332 = vld [vmem:[%s0 + $0x240] sm:$0xff]
      %v333 = vld [vmem:[%s0 + $0x248] sm:$0xff]
      %v334 = vld [vmem:[%s0 + $0x250] sm:$0xff]
      %v335 = vld [vmem:[%s0 + $0x258] sm:$0xff]
      %v336 = vld [vmem:[%s0 + $0x260] sm:$0xff]
      %v337 = vld [vmem:[%s0 + $0x268] sm:$0xff]
      %v338 = vld [vmem:[%s0 + $0x270] sm:$0xff]
      %v339 = vld [vmem:[%s0 + $0x278] sm:$0xff]
      %v340 = vld [vmem:[%s0 + $0x280] sm:$0xff]
      %v341 = vld [vmem:[%s0 + $0x288] sm:$0xff]
      %v342 = vld [vmem:[%s0 + $0x290] sm:$0xff]
      %v343 = vld [vmem:[%s0 + $0x298] sm:$0xff]
      %v344 = vld [vmem:[%s0 + $0x2a0] sm:$0xff]
      %v345 = vld [vmem:[%s0 + $0x2a8] sm:$0xff]
      %v346 = vld [vmem:[%s0 + $0x2b0] sm:$0xff]
      %v347 = vld [vmem:[%s0 + $0x2b8] sm:$0xff]
      %v348 = vld [vmem:[%s0 + $0x2c0] sm:$0xff]
      %v349 = vld [vmem:[%s0 + $0x2c8] sm:$0xff]
      %v350 = vld [vmem:[%s0 + $0x2d0] sm:$0xff]
      %v351 = vld [vmem:[%s0 + $0x2d8] sm:$0xff]
      %v352 = vld [vmem:[%s0 + $0x2e0] sm:$0xff]
      %v353 = vld [vmem:[%s0 + $0x2e8] sm:$0xff]
      %v354 = vld [vmem:[%s0 + $0x2f0] sm:$0xff]
      %v355 = vld [vmem:[%s0 + $0x2f8] sm:$0xff]
      %v356 = vld [vmem:[%s0 + $0x300] sm:$0xff]
      %v357 = vld [vmem:[%s0 + $0x308] sm:$0xff]
      %v358 = vld [vmem:[%s0 + $0x310] sm:$0xff]
      %v359 = vld [vmem:[%s0 + $0x318] sm:$0xff]
      %v360 = vld [vmem:[%s0 + $0x320] sm:$0xff]
      %v361 = vld [vmem:[%s0 + $0x328] sm:$0xff]
      %v362 = vld [vmem:[%s0 + $0x330] sm:$0xff]
      %v363 = vld [vmem:[%s0 + $0x338] sm:$0xff]
      %v364 = vld [vmem:[%s0 + $0x340] sm:$0xff]
      %v365 = vld [vmem:[%s0 + $0x348] sm:$0xff]
      %v366 = vld [vmem:[%s0 + $0x350] sm:$0xff]
      %v367 = vld [vmem:[%s0 + $0x358] sm:$0xff]
      %v368 = vld [vmem:[%s0 + $0x360] sm:$0xff]
      %v369 = vld [vmem:[%s0 + $0x368] sm:$0xff]
      %v370 = vld [vmem:[%s0 + $0x370] sm:$0xff]
      %v371 = vld [vmem:[%s0 + $0x378] sm:$0xff]
      %v372 = vld [vmem:[%s0 + $0x380] sm:$0xff]
      %v373 = vld [vmem:[%s0 + $0x388] sm:$0xff]
      %v374 = vld [vmem:[%s0 + $0x390] sm:$0xff]
      %v375 = vld [vmem:[%s0 + $0x398] sm:$0xff]
      %v376 = vld [vmem:[%s0 + $0x3a0] sm:$0xff]
      %v377 = vld [vmem:[%s0 + $0x3a8] sm:$0xff]
      %v378 = vld [vmem:[%s0 + $0x3b0] sm:$0xff]
      %v379 = vld [vmem:[%s0 + $0x3b8] sm:$0xff]
      %v380 = vld [vmem:[%s0 + $0x3c0] sm:$0xff]
      %v381 = vld [vmem:[%s0 + $0x3c8] sm:$0xff]
      %v382 = vld [vmem:[%s0 + $0x3d0] sm:$0xff]
      %v383 = vld [vmem:[%s0 + $0x3d8] sm:$0xff]
      %v384 = vld [vmem:[%s0 + $0x3e0] sm:$0xff]
      %v385 = vld [vmem:[%s0 + $0x3e8] sm:$0xff]
      %v386 = vld [vmem:[%s0 + $0x3f0] sm:$0xff]
      %v387 = vld [vmem:[%s0 + $0x3f8] sm:$0xff]
      %v388 = vld [vmem:[%s0 + $0x400] sm:$0xff]
      %v389 = vld [vmem:[%s0 + $0x408] sm:$0xff]
      %v390 = vld [vmem:[%s0 + $0x410] sm:$0xff]
      %v391 = vld [vmem:[%s0 + $0x418] sm:$0xff]
      %v392 = vld [vmem:[%s0 + $0x420] sm:$0xff]
      %v393 = vld [vmem:[%s0 + $0x428] sm:$0xff]
      %v394 = vld [vmem:[%s0 + $0x430] sm:$0xff]
      %v395 = vld [vmem:[%s0 + $0x438] sm:$0xff]
      %v396 = vld [vmem:[%s0 + $0x440] sm:$0xff]
      %v397 = vld [vmem:[%s0 + $0x448] sm:$0xff]
      %v398 = vld [vmem:[%s0 + $0x450] sm:$0xff]
      %v399 = vld [vmem:[%s0 + $0x458] sm:$0xff]
      %v400 = vld [vmem:[%s0 + $0x460] sm:$0xff]
      %v401 = vld [vmem:[%s0 + $0x468] sm:$0xff]
      %v402 = vld [vmem:[%s0 + $0x470] sm:$0xff]
      %v403 = vld [vmem:[%s0 + $0x478] sm:$0xff]
      %v404 = vld [vmem:[%s0 + $0x480] sm:$0xff]
      %v405 = vld [vmem:[%s0 + $0x488] sm:$0xff]
      %v406 = vld [vmem:[%s0 + $0x490] sm:$0xff]
      %v407 = vld [vmem:[%s0 + $0x498] sm:$0xff]
      %v408 = vld [vmem:[%s0 + $0x4a0] sm:$0xff]
      %v409 = vld [vmem:[%s0 + $0x4a8] sm:$0xff]
      %v410 = vld [vmem:[%s0 + $0x4b0] sm:$0xff]
      %v411 = vld [vmem:[%s0 + $0x4b8] sm:$0xff]
      %v412 = vld [vmem:[%s0 + $0x4c0] sm:$0xff]
      %v413 = vld [vmem:[%s0 + $0x4c8] sm:$0xff]
      %v414 = vld [vmem:[%s0 + $0x4d0] sm:$0xff]
      %v415 = vld [vmem:[%s0 + $0x4d8] sm:$0xff]
      %v416 = vld [vmem:[%s0 + $0x4e0] sm:$0xff]
      %v417 = vld [vmem:[%s0 + $0x4e8] sm:$0xff]
      %v418 = vld [vmem:[%s0 + $0x4f0] sm:$0xff]
      %v419 = vld [vmem:[%s0 + $0x4f8] sm:$0xff]
      %v420 = vld [vmem:[%s0 + $0x500] sm:$0xff]
      %v421 = vld [vmem:[%s0 + $0x508] sm:$0xff]
      %v422 = vld [vmem:[%s0 + $0x510] sm:$0xff]
      %v423 = vld [vmem:[%s0 + $0x518] sm:$0xff]
      %v424 = vld [vmem:[%s0 + $0x520] sm:$0xff]
      %v425 = vld [vmem:[%s0 + $0x528] sm:$0xff]
      %v426 = vld [vmem:[%s0 + $0x530] sm:$0xff]
      %v427 = vld [vmem:[%s0 + $0x538] sm:$0xff]
      %v428 = vld [vmem:[%s0 + $0x540] sm:$0xff]
      %v429 = vld [vmem:[%s0 + $0x548] sm:$0xff]
      %v430 = vld [vmem:[%s0 + $0x550] sm:$0xff]
      %v431 = vld [vmem:[%s0 + $0x558] sm:$0xff]
      %v432 = vld [vmem:[%s0 + $0x560] sm:$0xff]
      %v433 = vld [vmem:[%s0 + $0x568] sm:$0xff]
      %v434 = vld [vmem:[%s0 + $0x570] sm:$0xff]
      %v435 = vld [vmem:[%s0 + $0x578] sm:$0xff]
      %v436 = vld [vmem:[%s0 + $0x580] sm:$0xff]
      %v437 = vld [vmem:[%s0 + $0x588] sm:$0xff]
      %v438 = vld [vmem:[%s0 + $0x590] sm:$0xff]
      %v439 = vld [vmem:[%s0 + $0x598] sm:$0xff]
      %v440 = vld [vmem:[%s0 + $0x5a0] sm:$0xff]
      %v441 = vld [vmem:[%s0 + $0x5a8] sm:$0xff]
      %v442 = vld [vmem:[%s0 + $0x5b0] sm:$0xff]
      %v443 = vld [vmem:[%s0 + $0x5b8] sm:$0xff]
      %v444 = vld [vmem:[%s0 + $0x5c0] sm:$0xff]
      %v445 = vld [vmem:[%s0 + $0x5c8] sm:$0xff]
      %v446 = vld [vmem:[%s0 + $0x5d0] sm:$0xff]
      %v447 = vld [vmem:[%s0 + $0x5d8] sm:$0xff]
      %v448 = vld [vmem:[%s0 + $0x5e0] sm:$0xff]
      %v449 = vld [vmem:[%s0 + $0x5e8] sm:$0xff]
      %v450 = vld [vmem:[%s0 + $0x5f0] sm:$0xff]
      %v451 = vld [vmem:[%s0 + $0x5f8] sm:$0xff]
      %v452 = vld [vmem:[%s0 + $0x600] sm:$0xff]
      %v453 = vld [vmem:[%s0 + $0x608] sm:$0xff]
      %v454 = vld [vmem:[%s0 + $0x610] sm:$0xff]
      %v455 = vld [vmem:[%s0 + $0x618] sm:$0xff]
      %v456 = vld [vmem:[%s0 + $0x620] sm:$0xff]
      %v457 = vld [vmem:[%s0 + $0x628] sm:$0xff]
      %v458 = vld [vmem:[%s0 + $0x630] sm:$0xff]
      %v459 = vld [vmem:[%s0 + $0x638] sm:$0xff]
      %v460 = vld [vmem:[%s0 + $0x640] sm:$0xff]
      %v461 = vld [vmem:[%s0 + $0x648] sm:$0xff]
      %v462 = vld [vmem:[%s0 + $0x650] sm:$0xff]
      %v463 = vld [vmem:[%s0 + $0x658] sm:$0xff]
      %v464 = vld [vmem:[%s0 + $0x660] sm:$0xff]
      %v465 = vld [vmem:[%s0 + $0x668] sm:$0xff]
      %v466 = vld [vmem:[%s0 + $0x670] sm:$0xff]
      %v467 = vld [vmem:[%s0 + $0x678] sm:$0xff]
      %v468 = vld [vmem:[%s0 + $0x680] sm:$0xff]
      %v469 = vld [vmem:[%s0 + $0x688] sm:$0xff]
      %v470 = vld [vmem:[%s0 + $0x690] sm:$0xff]
      %v471 = vld [vmem:[%s0 + $0x698] sm:$0xff]
      %v472 = vld [vmem:[%s0 + $0x6a0] sm:$0xff]
      %v473 = vld [vmem:[%s0 + $0x6a8] sm:$0xff]
      %v474 = vld [vmem:[%s0 + $0x6b0] sm:$0xff]
      %v475 = vld [vmem:[%s0 + $0x6b8] sm:$0xff]
      %v476 = vld [vmem:[%s0 + $0x6c0] sm:$0xff]
      %v477 = vld [vmem:[%s0 + $0x6c8] sm:$0xff]
      %v478 = vld [vmem:[%s0 + $0x6d0] sm:$0xff]
      %v479 = vld [vmem:[%s0 + $0x6d8] sm:$0xff]
      %v480 = vld [vmem:[%s0 + $0x6e0] sm:$0xff]
      %v481 = vld [vmem:[%s0 + $0x6e8] sm:$0xff]
      %v482 = vld [vmem:[%s0 + $0x6f0] sm:$0xff]
      %v483 = vld [vmem:[%s0 + $0x6f8] sm:$0xff]
      %v484 = vld [vmem:[%s0 + $0x700] sm:$0xff]
      %v485 = vld [vmem:[%s0 + $0x708] sm:$0xff]
      %v486 = vld [vmem:[%s0 + $0x710] sm:$0xff]
      %v487 = vld [vmem:[%s0 + $0x718] sm:$0xff]
      %v488 = vld [vmem:[%s0 + $0x720] sm:$0xff]
      %v489 = vld [vmem:[%s0 + $0x728] sm:$0xff]
      %v490 = vld [vmem:[%s0 + $0x730] sm:$0xff]
      %v491 = vld [vmem:[%s0 + $0x738] sm:$0xff]
      %v492 = vld [vmem:[%s0 + $0x740] sm:$0xff]
      %v493 = vld [vmem:[%s0 + $0x748] sm:$0xff]
      %v494 = vld [vmem:[%s0 + $0x750] sm:$0xff]
      %v495 = vld [vmem:[%s0 + $0x758] sm:$0xff]
      %v496 = vld [vmem:[%s0 + $0x760] sm:$0xff]
      %v497 = vld [vmem:[%s0 + $0x768] sm:$0xff]
      %v498 = vld [vmem:[%s0 + $0x770] sm:$0xff]
      %v499 = vld [vmem:[%s0 + $0x778] sm:$0xff]
      %v500 = vld [vmem:[%s0 + $0x780] sm:$0xff]
      %v501 = vld [vmem:[%s0 + $0x788] sm:$0xff]
      %v502 = vld [vmem:[%s0 + $0x790] sm:$0xff]
      %v503 = vld [vmem:[%s0 + $0x798] sm:$0xff]
      %v504 = vld [vmem:[%s0 + $0x7a0] sm:$0xff]
      %v505 = vld [vmem:[%s0 + $0x7a8] sm:$0xff]
      %v506 = vld [vmem:[%s0 + $0x7b0] sm:$0xff]
      %v507 = vld [vmem:[%s0 + $0x7b8] sm:$0xff]
      %v508 = vld [vmem:[%s0 + $0x7c0] sm:$0xff]
      %v509 = vld [vmem:[%s0 + $0x7c8] sm:$0xff]
      %v510 = vld [vmem:[%s0 + $0x7d0] sm:$0xff]
      %v511 = vld [vmem:[%s0 + $0x7d8] sm:$0xff]
      %v512 = vld [vmem:[%s0 + $0x7e0] sm:$0xff]
      %v513 = vld [vmem:[%s0 + $0x7e8] sm:$0xff]
      %v514 = vld [vmem:[%s0 + $0x7f0] sm:$0xff]
      %v515 = vld [vmem:[%s0 + $0x7f8] sm:$0xff]
      %v516 = vld [vmem:[%s1] sm:$0xff]
      %v517 = vld [vmem:[%s1 + $0x8] sm:$0xff]
      %v518 = vld [vmem:[%s1 + $0x10] sm:$0xff]
      %v519 = vld [vmem:[%s1 + $0x18] sm:$0xff]
      %v520 = vld [vmem:[%s1 + $0x20] sm:$0xff]
      %v521 = vld [vmem:[%s1 + $0x28] sm:$0xff]
      %v522 = vld [vmem:[%s1 + $0x30] sm:$0xff]
      %v523 = vld [vmem:[%s1 + $0x38] sm:$0xff]
      %v524 = vld [vmem:[%s1 + $0x40] sm:$0xff]
      %v525 = vld [vmem:[%s1 + $0x48] sm:$0xff]
      %v526 = vld [vmem:[%s1 + $0x50] sm:$0xff]
      %v527 = vld [vmem:[%s1 + $0x58] sm:$0xff]
      %v528 = vld [vmem:[%s1 + $0x60] sm:$0xff]
      %v529 = vld [vmem:[%s1 + $0x68] sm:$0xff]
      %v530 = vld [vmem:[%s1 + $0x70] sm:$0xff]
      %v531 = vld [vmem:[%s1 + $0x78] sm:$0xff]
      %v532 = vld [vmem:[%s1 + $0x80] sm:$0xff]
      %v533 = vld [vmem:[%s1 + $0x88] sm:$0xff]
      %v534 = vld [vmem:[%s1 + $0x90] sm:$0xff]
      %v535 = vld [vmem:[%s1 + $0x98] sm:$0xff]
      %v536 = vld [vmem:[%s1 + $0xa0] sm:$0xff]
      %v537 = vld [vmem:[%s1 + $0xa8] sm:$0xff]
      %v538 = vld [vmem:[%s1 + $0xb0] sm:$0xff]
      %v539 = vld [vmem:[%s1 + $0xb8] sm:$0xff]
      %v540 = vld [vmem:[%s1 + $0xc0] sm:$0xff]
      %v541 = vld [vmem:[%s1 + $0xc8] sm:$0xff]
      %v542 = vld [vmem:[%s1 + $0xd0] sm:$0xff]
      %v543 = vld [vmem:[%s1 + $0xd8] sm:$0xff]
      %v544 = vld [vmem:[%s1 + $0xe0] sm:$0xff]
      %v545 = vld [vmem:[%s1 + $0xe8] sm:$0xff]
      %v546 = vld [vmem:[%s1 + $0xf0] sm:$0xff]
      %v547 = vld [vmem:[%s1 + $0xf8] sm:$0xff]
      %v548 = vld [vmem:[%s1 + $0x100] sm:$0xff]
      %v549 = vld [vmem:[%s1 + $0x108] sm:$0xff]
      %v550 = vld [vmem:[%s1 + $0x110] sm:$0xff]
      %v551 = vld [vmem:[%s1 + $0x118] sm:$0xff]
      %v552 = vld [vmem:[%s1 + $0x120] sm:$0xff]
      %v553 = vld [vmem:[%s1 + $0x128] sm:$0xff]
      %v554 = vld [vmem:[%s1 + $0x130] sm:$0xff]
      %v555 = vld [vmem:[%s1 + $0x138] sm:$0xff]
      %v556 = vld [vmem:[%s1 + $0x140] sm:$0xff]
      %v557 = vld [vmem:[%s1 + $0x148] sm:$0xff]
      %v558 = vld [vmem:[%s1 + $0x150] sm:$0xff]
      %v559 = vld [vmem:[%s1 + $0x158] sm:$0xff]
      %v560 = vld [vmem:[%s1 + $0x160] sm:$0xff]
      %v561 = vld [vmem:[%s1 + $0x168] sm:$0xff]
      %v562 = vld [vmem:[%s1 + $0x170] sm:$0xff]
      %v563 = vld [vmem:[%s1 + $0x178] sm:$0xff]
      %v564 = vld [vmem:[%s1 + $0x180] sm:$0xff]
      %v565 = vld [vmem:[%s1 + $0x188] sm:$0xff]
      %v566 = vld [vmem:[%s1 + $0x190] sm:$0xff]
      %v567 = vld [vmem:[%s1 + $0x198] sm:$0xff]
      %v568 = vld [vmem:[%s1 + $0x1a0] sm:$0xff]
      %v569 = vld [vmem:[%s1 + $0x1a8] sm:$0xff]
      %v570 = vld [vmem:[%s1 + $0x1b0] sm:$0xff]
      %v571 = vld [vmem:[%s1 + $0x1b8] sm:$0xff]
      %v572 = vld [vmem:[%s1 + $0x1c0] sm:$0xff]
      %v573 = vld [vmem:[%s1 + $0x1c8] sm:$0xff]
      %v574 = vld [vmem:[%s1 + $0x1d0] sm:$0xff]
      %v575 = vld [vmem:[%s1 + $0x1d8] sm:$0xff]
      %v576 = vld [vmem:[%s1 + $0x1e0] sm:$0xff]
      %v577 = vld [vmem:[%s1 + $0x1e8] sm:$0xff]
      %v578 = vld [vmem:[%s1 + $0x1f0] sm:$0xff]
      %v579 = vld [vmem:[%s1 + $0x1f8] sm:$0xff]
      %v580 = vld [vmem:[%s1 + $0x200] sm:$0xff]
      %v581 = vld [vmem:[%s1 + $0x208] sm:$0xff]
      %v582 = vld [vmem:[%s1 + $0x210] sm:$0xff]
      %v583 = vld [vmem:[%s1 + $0x218] sm:$0xff]
      %v584 = vld [vmem:[%s1 + $0x220] sm:$0xff]
      %v585 = vld [vmem:[%s1 + $0x228] sm:$0xff]
      %v586 = vld [vmem:[%s1 + $0x230] sm:$0xff]
      %v587 = vld [vmem:[%s1 + $0x238] sm:$0xff]
      %v588 = vld [vmem:[%s1 + $0x240] sm:$0xff]
      %v589 = vld [vmem:[%s1 + $0x248] sm:$0xff]
      %v590 = vld [vmem:[%s1 + $0x250] sm:$0xff]
      %v591 = vld [vmem:[%s1 + $0x258] sm:$0xff]
      %v592 = vld [vmem:[%s1 + $0x260] sm:$0xff]
      %v593 = vld [vmem:[%s1 + $0x268] sm:$0xff]
      %v594 = vld [vmem:[%s1 + $0x270] sm:$0xff]
      %v595 = vld [vmem:[%s1 + $0x278] sm:$0xff]
      %v596 = vld [vmem:[%s1 + $0x280] sm:$0xff]
      %v597 = vld [vmem:[%s1 + $0x288] sm:$0xff]
      %v598 = vld [vmem:[%s1 + $0x290] sm:$0xff]
      %v599 = vld [vmem:[%s1 + $0x298] sm:$0xff]
      %v600 = vld [vmem:[%s1 + $0x2a0] sm:$0xff]
      %v601 = vld [vmem:[%s1 + $0x2a8] sm:$0xff]
      %v602 = vld [vmem:[%s1 + $0x2b0] sm:$0xff]
      %v603 = vld [vmem:[%s1 + $0x2b8] sm:$0xff]
      %v604 = vld [vmem:[%s1 + $0x2c0] sm:$0xff]
      %v605 = vld [vmem:[%s1 + $0x2c8] sm:$0xff]
      %v606 = vld [vmem:[%s1 + $0x2d0] sm:$0xff]
      %v607 = vld [vmem:[%s1 + $0x2d8] sm:$0xff]
      %v608 = vld [vmem:[%s1 + $0x2e0] sm:$0xff]
      %v609 = vld [vmem:[%s1 + $0x2e8] sm:$0xff]
      %v610 = vld [vmem:[%s1 + $0x2f0] sm:$0xff]
      %v611 = vld [vmem:[%s1 + $0x2f8] sm:$0xff]
      %v612 = vld [vmem:[%s1 + $0x300] sm:$0xff]
      %v613 = vld [vmem:[%s1 + $0x308] sm:$0xff]
      %v614 = vld [vmem:[%s1 + $0x310] sm:$0xff]
      %v615 = vld [vmem:[%s1 + $0x318] sm:$0xff]
      %v616 = vld [vmem:[%s1 + $0x320] sm:$0xff]
      %v617 = vld [vmem:[%s1 + $0x328] sm:$0xff]
      %v618 = vld [vmem:[%s1 + $0x330] sm:$0xff]
      %v619 = vld [vmem:[%s1 + $0x338] sm:$0xff]
      %v620 = vld [vmem:[%s1 + $0x340] sm:$0xff]
      %v621 = vld [vmem:[%s1 + $0x348] sm:$0xff]
      %v622 = vld [vmem:[%s1 + $0x350] sm:$0xff]
      %v623 = vld [vmem:[%s1 + $0x358] sm:$0xff]
      %v624 = vld [vmem:[%s1 + $0x360] sm:$0xff]
      %v625 = vld [vmem:[%s1 + $0x368] sm:$0xff]
      %v626 = vld [vmem:[%s1 + $0x370] sm:$0xff]
      %v627 = vld [vmem:[%s1 + $0x378] sm:$0xff]
      %v628 = vld [vmem:[%s1 + $0x380] sm:$0xff]
      %v629 = vld [vmem:[%s1 + $0x388] sm:$0xff]
      %v630 = vld [vmem:[%s1 + $0x390] sm:$0xff]
      %v631 = vld [vmem:[%s1 + $0x398] sm:$0xff]
      %v632 = vld [vmem:[%s1 + $0x3a0] sm:$0xff]
      %v633 = vld [vmem:[%s1 + $0x3a8] sm:$0xff]
      %v634 = vld [vmem:[%s1 + $0x3b0] sm:$0xff]
      %v635 = vld [vmem:[%s1 + $0x3b8] sm:$0xff]
      %v636 = vld [vmem:[%s1 + $0x3c0] sm:$0xff]
      %v637 = vld [vmem:[%s1 + $0x3c8] sm:$0xff]
      %v638 = vld [vmem:[%s1 + $0x3d0] sm:$0xff]
      %v639 = vld [vmem:[%s1 + $0x3d8] sm:$0xff]
      %v640 = vld [vmem:[%s1 + $0x3e0] sm:$0xff]
      %v641 = vld [vmem:[%s1 + $0x3e8] sm:$0xff]
      %v642 = vld [vmem:[%s1 + $0x3f0] sm:$0xff]
      %v643 = vld [vmem:[%s1 + $0x3f8] sm:$0xff]
      %v644 = vld [vmem:[%s1 + $0x400] sm:$0xff]
      %v645 = vld [vmem:[%s1 + $0x408] sm:$0xff]
      %v646 = vld [vmem:[%s1 + $0x410] sm:$0xff]
      %v647 = vld [vmem:[%s1 + $0x418] sm:$0xff]
      %v648 = vld [vmem:[%s1 + $0x420] sm:$0xff]
      %v649 = vld [vmem:[%s1 + $0x428] sm:$0xff]
      %v650 = vld [vmem:[%s1 + $0x430] sm:$0xff]
      %v651 = vld [vmem:[%s1 + $0x438] sm:$0xff]
      %v652 = vld [vmem:[%s1 + $0x440] sm:$0xff]
      %v653 = vld [vmem:[%s1 + $0x448] sm:$0xff]
      %v654 = vld [vmem:[%s1 + $0x450] sm:$0xff]
      %v655 = vld [vmem:[%s1 + $0x458] sm:$0xff]
      %v656 = vld [vmem:[%s1 + $0x460] sm:$0xff]
      %v657 = vld [vmem:[%s1 + $0x468] sm:$0xff]
      %v658 = vld [vmem:[%s1 + $0x470] sm:$0xff]
      %v659 = vld [vmem:[%s1 + $0x478] sm:$0xff]
      %v660 = vld [vmem:[%s1 + $0x480] sm:$0xff]
      %v661 = vld [vmem:[%s1 + $0x488] sm:$0xff]
      %v662 = vld [vmem:[%s1 + $0x490] sm:$0xff]
      %v663 = vld [vmem:[%s1 + $0x498] sm:$0xff]
      %v664 = vld [vmem:[%s1 + $0x4a0] sm:$0xff]
      %v665 = vld [vmem:[%s1 + $0x4a8] sm:$0xff]
      %v666 = vld [vmem:[%s1 + $0x4b0] sm:$0xff]
      %v667 = vld [vmem:[%s1 + $0x4b8] sm:$0xff]
      %v668 = vld [vmem:[%s1 + $0x4c0] sm:$0xff]
      %v669 = vld [vmem:[%s1 + $0x4c8] sm:$0xff]
      %v670 = vld [vmem:[%s1 + $0x4d0] sm:$0xff]
      %v671 = vld [vmem:[%s1 + $0x4d8] sm:$0xff]
      %v672 = vld [vmem:[%s1 + $0x4e0] sm:$0xff]
      %v673 = vld [vmem:[%s1 + $0x4e8] sm:$0xff]
      %v674 = vld [vmem:[%s1 + $0x4f0] sm:$0xff]
      %v675 = vld [vmem:[%s1 + $0x4f8] sm:$0xff]
      %v676 = vld [vmem:[%s1 + $0x500] sm:$0xff]
      %v677 = vld [vmem:[%s1 + $0x508] sm:$0xff]
      %v678 = vld [vmem:[%s1 + $0x510] sm:$0xff]
      %v679 = vld [vmem:[%s1 + $0x518] sm:$0xff]
      %v680 = vld [vmem:[%s1 + $0x520] sm:$0xff]
      %v681 = vld [vmem:[%s1 + $0x528] sm:$0xff]
      %v682 = vld [vmem:[%s1 + $0x530] sm:$0xff]
      %v683 = vld [vmem:[%s1 + $0x538] sm:$0xff]
      %v684 = vld [vmem:[%s1 + $0x540] sm:$0xff]
      %v685 = vld [vmem:[%s1 + $0x548] sm:$0xff]
      %v686 = vld [vmem:[%s1 + $0x550] sm:$0xff]
      %v687 = vld [vmem:[%s1 + $0x558] sm:$0xff]
      %v688 = vld [vmem:[%s1 + $0x560] sm:$0xff]
      %v689 = vld [vmem:[%s1 + $0x568] sm:$0xff]
      %v690 = vld [vmem:[%s1 + $0x570] sm:$0xff]
      %v691 = vld [vmem:[%s1 + $0x578] sm:$0xff]
      %v692 = vld [vmem:[%s1 + $0x580] sm:$0xff]
      %v693 = vld [vmem:[%s1 + $0x588] sm:$0xff]
      %v694 = vld [vmem:[%s1 + $0x590] sm:$0xff]
      %v695 = vld [vmem:[%s1 + $0x598] sm:$0xff]
      %v696 = vld [vmem:[%s1 + $0x5a0] sm:$0xff]
      %v697 = vld [vmem:[%s1 + $0x5a8] sm:$0xff]
      %v698 = vld [vmem:[%s1 + $0x5b0] sm:$0xff]
      %v699 = vld [vmem:[%s1 + $0x5b8] sm:$0xff]
      %v700 = vld [vmem:[%s1 + $0x5c0] sm:$0xff]
      %v701 = vld [vmem:[%s1 + $0x5c8] sm:$0xff]
      %v702 = vld [vmem:[%s1 + $0x5d0] sm:$0xff]
      %v703 = vld [vmem:[%s1 + $0x5d8] sm:$0xff]
      %v704 = vld [vmem:[%s1 + $0x5e0] sm:$0xff]
      %v705 = vld [vmem:[%s1 + $0x5e8] sm:$0xff]
      %v706 = vld [vmem:[%s1 + $0x5f0] sm:$0xff]
      %v707 = vld [vmem:[%s1 + $0x5f8] sm:$0xff]
      %v708 = vld [vmem:[%s1 + $0x600] sm:$0xff]
      %v709 = vld [vmem:[%s1 + $0x608] sm:$0xff]
      %v710 = vld [vmem:[%s1 + $0x610] sm:$0xff]
      %v711 = vld [vmem:[%s1 + $0x618] sm:$0xff]
      %v712 = vld [vmem:[%s1 + $0x620] sm:$0xff]
      %v713 = vld [vmem:[%s1 + $0x628] sm:$0xff]
      %v714 = vld [vmem:[%s1 + $0x630] sm:$0xff]
      %v715 = vld [vmem:[%s1 + $0x638] sm:$0xff]
      %v716 = vld [vmem:[%s1 + $0x640] sm:$0xff]
      %v717 = vld [vmem:[%s1 + $0x648] sm:$0xff]
      %v718 = vld [vmem:[%s1 + $0x650] sm:$0xff]
      %v719 = vld [vmem:[%s1 + $0x658] sm:$0xff]
      %v720 = vld [vmem:[%s1 + $0x660] sm:$0xff]
      %v721 = vld [vmem:[%s1 + $0x668] sm:$0xff]
      %v722 = vld [vmem:[%s1 + $0x670] sm:$0xff]
      %v723 = vld [vmem:[%s1 + $0x678] sm:$0xff]
      %v724 = vld [vmem:[%s1 + $0x680] sm:$0xff]
      %v725 = vld [vmem:[%s1 + $0x688] sm:$0xff]
      %v726 = vld [vmem:[%s1 + $0x690] sm:$0xff]
      %v727 = vld [vmem:[%s1 + $0x698] sm:$0xff]
      %v728 = vld [vmem:[%s1 + $0x6a0] sm:$0xff]
      %v729 = vld [vmem:[%s1 + $0x6a8] sm:$0xff]
      %v730 = vld [vmem:[%s1 + $0x6b0] sm:$0xff]
      %v731 = vld [vmem:[%s1 + $0x6b8] sm:$0xff]
      %v732 = vld [vmem:[%s1 + $0x6c0] sm:$0xff]
      %v733 = vld [vmem:[%s1 + $0x6c8] sm:$0xff]
      %v734 = vld [vmem:[%s1 + $0x6d0] sm:$0xff]
      %v735 = vld [vmem:[%s1 + $0x6d8] sm:$0xff]
      %v736 = vld [vmem:[%s1 + $0x6e0] sm:$0xff]
      %v737 = vld [vmem:[%s1 + $0x6e8] sm:$0xff]
      %v738 = vld [vmem:[%s1 + $0x6f0] sm:$0xff]
      %v739 = vld [vmem:[%s1 + $0x6f8] sm:$0xff]
      %v740 = vld [vmem:[%s1 + $0x700] sm:$0xff]
      %v741 = vld [vmem:[%s1 + $0x708] sm:$0xff]
      %v742 = vld [vmem:[%s1 + $0x710] sm:$0xff]
      %v743 = vld [vmem:[%s1 + $0x718] sm:$0xff]
      %v744 = vld [vmem:[%s1 + $0x720] sm:$0xff]
      %v745 = vld [vmem:[%s1 + $0x728] sm:$0xff]
      %v746 = vld [vmem:[%s1 + $0x730] sm:$0xff]
      %v747 = vld [vmem:[%s1 + $0x738] sm:$0xff]
      %v748 = vld [vmem:[%s1 + $0x740] sm:$0xff]
      %v749 = vld [vmem:[%s1 + $0x748] sm:$0xff]
      %v750 = vld [vmem:[%s1 + $0x750] sm:$0xff]
      %v751 = vld [vmem:[%s1 + $0x758] sm:$0xff]
      %v752 = vld [vmem:[%s1 + $0x760] sm:$0xff]
      %v753 = vld [vmem:[%s1 + $0x768] sm:$0xff]
      %v754 = vld [vmem:[%s1 + $0x770] sm:$0xff]
      %v755 = vld [vmem:[%s1 + $0x778] sm:$0xff]
      %v756 = vld [vmem:[%s1 + $0x780] sm:$0xff]
      %v757 = vld [vmem:[%s1 + $0x788] sm:$0xff]
      %v758 = vld [vmem:[%s1 + $0x790] sm:$0xff]
      %v759 = vld [vmem:[%s1 + $0x798] sm:$0xff]
      %v760 = vld [vmem:[%s1 + $0x7a0] sm:$0xff]
      %v761 = vld [vmem:[%s1 + $0x7a8] sm:$0xff]
      %v762 = vld [vmem:[%s1 + $0x7b0] sm:$0xff]
      %v763 = vld [vmem:[%s1 + $0x7b8] sm:$0xff]
      %v764 = vld [vmem:[%s1 + $0x7c0] sm:$0xff]
      %v765 = vld [vmem:[%s1 + $0x7c8] sm:$0xff]
      %v766 = vld [vmem:[%s1 + $0x7d0] sm:$0xff]
      %v767 = vld [vmem:[%s1 + $0x7d8] sm:$0xff]
      %v768 = vld [vmem:[%s1 + $0x7e0] sm:$0xff]
      %v769 = vld [vmem:[%s1 + $0x7e8] sm:$0xff]
      %v770 = vld [vmem:[%s1 + $0x7f0] sm:$0xff]
      %v771 = vld [vmem:[%s1 + $0x7f8] sm:$0xff]
      %v772 = vadd.f32 %v260, %v516
      %v773 = vadd.f32 %v261, %v517
      %v774 = vadd.f32 %v262, %v518
      %v775 = vadd.f32 %v263, %v519
      %v776 = vadd.f32 %v264, %v520
      %v777 = vadd.f32 %v265, %v521
      %v778 = vadd.f32 %v266, %v522
      %v779 = vadd.f32 %v267, %v523
      %v780 = vadd.f32 %v268, %v524
      %v781 = vadd.f32 %v269, %v525
      %v782 = vadd.f32 %v270, %v526
      %v783 = vadd.f32 %v271, %v527
      %v784 = vadd.f32 %v272, %v528
      %v785 = vadd.f32 %v273, %v529
      %v786 = vadd.f32 %v274, %v530
      %v787 = vadd.f32 %v275, %v531
      %v788 = vadd.f32 %v276, %v532
      %v789 = vadd.f32 %v277, %v533
      %v790 = vadd.f32 %v278, %v534
      %v791 = vadd.f32 %v279, %v535
      %v792 = vadd.f32 %v280, %v536
      %v793 = vadd.f32 %v281, %v537
      %v794 = vadd.f32 %v282, %v538
      %v795 = vadd.f32 %v283, %v539
      %v796 = vadd.f32 %v284, %v540
      %v797 = vadd.f32 %v285, %v541
      %v798 = vadd.f32 %v286, %v542
      %v799 = vadd.f32 %v287, %v543
      %v800 = vadd.f32 %v288, %v544
      %v801 = vadd.f32 %v289, %v545
      %v802 = vadd.f32 %v290, %v546
      %v803 = vadd.f32 %v291, %v547
      %v804 = vadd.f32 %v292, %v548
      %v805 = vadd.f32 %v293, %v549
      %v806 = vadd.f32 %v294, %v550
      %v807 = vadd.f32 %v295, %v551
      %v808 = vadd.f32 %v296, %v552
      %v809 = vadd.f32 %v297, %v553
      %v810 = vadd.f32 %v298, %v554
      %v811 = vadd.f32 %v299, %v555
      %v812 = vadd.f32 %v300, %v556
      %v813 = vadd.f32 %v301, %v557
      %v814 = vadd.f32 %v302, %v558
      %v815 = vadd.f32 %v303, %v559
      %v816 = vadd.f32 %v304, %v560
      %v817 = vadd.f32 %v305, %v561
      %v818 = vadd.f32 %v306, %v562
      %v819 = vadd.f32 %v307, %v563
      %v820 = vadd.f32 %v308, %v564
      %v821 = vadd.f32 %v309, %v565
      %v822 = vadd.f32 %v310, %v566
      %v823 = vadd.f32 %v311, %v567
      %v824 = vadd.f32 %v312, %v568
      %v825 = vadd.f32 %v313, %v569
      %v826 = vadd.f32 %v314, %v570
      %v827 = vadd.f32 %v315, %v571
      %v828 = vadd.f32 %v316, %v572
      %v829 = vadd.f32 %v317, %v573
      %v830 = vadd.f32 %v318, %v574
      %v831 = vadd.f32 %v319, %v575
      %v832 = vadd.f32 %v320, %v576
      %v833 = vadd.f32 %v321, %v577
      %v834 = vadd.f32 %v322, %v578
      %v835 = vadd.f32 %v323, %v579
      %v836 = vadd.f32 %v324, %v580
      %v837 = vadd.f32 %v325, %v581
      %v838 = vadd.f32 %v326, %v582
      %v839 = vadd.f32 %v327, %v583
      %v840 = vadd.f32 %v328, %v584
      %v841 = vadd.f32 %v329, %v585
      %v842 = vadd.f32 %v330, %v586
      %v843 = vadd.f32 %v331, %v587
      %v844 = vadd.f32 %v332, %v588
      %v845 = vadd.f32 %v333, %v589
      %v846 = vadd.f32 %v334, %v590
      %v847 = vadd.f32 %v335, %v591
      %v848 = vadd.f32 %v336, %v592
      %v849 = vadd.f32 %v337, %v593
      %v850 = vadd.f32 %v338, %v594
      %v851 = vadd.f32 %v339, %v595
      %v852 = vadd.f32 %v340, %v596
      %v853 = vadd.f32 %v341, %v597
      %v854 = vadd.f32 %v342, %v598
      %v855 = vadd.f32 %v343, %v599
      %v856 = vadd.f32 %v344, %v600
      %v857 = vadd.f32 %v345, %v601
      %v858 = vadd.f32 %v346, %v602
      %v859 = vadd.f32 %v347, %v603
      %v860 = vadd.f32 %v348, %v604
      %v861 = vadd.f32 %v349, %v605
      %v862 = vadd.f32 %v350, %v606
      %v863 = vadd.f32 %v351, %v607
      %v864 = vadd.f32 %v352, %v608
      %v865 = vadd.f32 %v353, %v609
      %v866 = vadd.f32 %v354, %v610
      %v867 = vadd.f32 %v355, %v611
      %v868 = vadd.f32 %v356, %v612
      %v869 = vadd.f32 %v357, %v613
      %v870 = vadd.f32 %v358, %v614
      %v871 = vadd.f32 %v359, %v615
      %v872 = vadd.f32 %v360, %v616
      %v873 = vadd.f32 %v361, %v617
      %v874 = vadd.f32 %v362, %v618
      %v875 = vadd.f32 %v363, %v619
      %v876 = vadd.f32 %v364, %v620
      %v877 = vadd.f32 %v365, %v621
      %v878 = vadd.f32 %v366, %v622
      %v879 = vadd.f32 %v367, %v623
      %v880 = vadd.f32 %v368, %v624
      %v881 = vadd.f32 %v369, %v625
      %v882 = vadd.f32 %v370, %v626
      %v883 = vadd.f32 %v371, %v627
      %v884 = vadd.f32 %v372, %v628
      %v885 = vadd.f32 %v373, %v629
      %v886 = vadd.f32 %v374, %v630
      %v887 = vadd.f32 %v375, %v631
      %v888 = vadd.f32 %v376, %v632
      %v889 = vadd.f32 %v377, %v633
      %v890 = vadd.f32 %v378, %v634
      %v891 = vadd.f32 %v379, %v635
      %v892 = vadd.f32 %v380, %v636
      %v893 = vadd.f32 %v381, %v637
      %v894 = vadd.f32 %v382, %v638
      %v895 = vadd.f32 %v383, %v639
      %v896 = vadd.f32 %v384, %v640
      %v897 = vadd.f32 %v385, %v641
      %v898 = vadd.f32 %v386, %v642
      %v899 = vadd.f32 %v387, %v643
      %v900 = vadd.f32 %v388, %v644
      %v901 = vadd.f32 %v389, %v645
      %v902 = vadd.f32 %v390, %v646
      %v903 = vadd.f32 %v391, %v647
      %v904 = vadd.f32 %v392, %v648
      %v905 = vadd.f32 %v393, %v649
      %v906 = vadd.f32 %v394, %v650
      %v907 = vadd.f32 %v395, %v651
      %v908 = vadd.f32 %v396, %v652
      %v909 = vadd.f32 %v397, %v653
      %v910 = vadd.f32 %v398, %v654
      %v911 = vadd.f32 %v399, %v655
      %v912 = vadd.f32 %v400, %v656
      %v913 = vadd.f32 %v401, %v657
      %v914 = vadd.f32 %v402, %v658
      %v915 = vadd.f32 %v403, %v659
      %v916 = vadd.f32 %v404, %v660
      %v917 = vadd.f32 %v405, %v661
      %v918 = vadd.f32 %v406, %v662
      %v919 = vadd.f32 %v407, %v663
      %v920 = vadd.f32 %v408, %v664
      %v921 = vadd.f32 %v409, %v665
      %v922 = vadd.f32 %v410, %v666
      %v923 = vadd.f32 %v411, %v667
      %v924 = vadd.f32 %v412, %v668
      %v925 = vadd.f32 %v413, %v669
      %v926 = vadd.f32 %v414, %v670
      %v927 = vadd.f32 %v415, %v671
      %v928 = vadd.f32 %v416, %v672
      %v929 = vadd.f32 %v417, %v673
      %v930 = vadd.f32 %v418, %v674
      %v931 = vadd.f32 %v419, %v675
      %v932 = vadd.f32 %v420, %v676
      %v933 = vadd.f32 %v421, %v677
      %v934 = vadd.f32 %v422, %v678
      %v935 = vadd.f32 %v423, %v679
      %v936 = vadd.f32 %v424, %v680
      %v937 = vadd.f32 %v425, %v681
      %v938 = vadd.f32 %v426, %v682
      %v939 = vadd.f32 %v427, %v683
      %v940 = vadd.f32 %v428, %v684
      %v941 = vadd.f32 %v429, %v685
      %v942 = vadd.f32 %v430, %v686
      %v943 = vadd.f32 %v431, %v687
      %v944 = vadd.f32 %v432, %v688
      %v945 = vadd.f32 %v433, %v689
      %v946 = vadd.f32 %v434, %v690
      %v947 = vadd.f32 %v435, %v691
      %v948 = vadd.f32 %v436, %v692
      %v949 = vadd.f32 %v437, %v693
      %v950 = vadd.f32 %v438, %v694
      %v951 = vadd.f32 %v439, %v695
      %v952 = vadd.f32 %v440, %v696
      %v953 = vadd.f32 %v441, %v697
      %v954 = vadd.f32 %v442, %v698
      %v955 = vadd.f32 %v443, %v699
      %v956 = vadd.f32 %v444, %v700
      %v957 = vadd.f32 %v445, %v701
      %v958 = vadd.f32 %v446, %v702
      %v959 = vadd.f32 %v447, %v703
      %v960 = vadd.f32 %v448, %v704
      %v961 = vadd.f32 %v449, %v705
      %v962 = vadd.f32 %v450, %v706
      %v963 = vadd.f32 %v451, %v707
      %v964 = vadd.f32 %v452, %v708
      %v965 = vadd.f32 %v453, %v709
      %v966 = vadd.f32 %v454, %v710
      %v967 = vadd.f32 %v455, %v711
      %v968 = vadd.f32 %v456, %v712
      %v969 = vadd.f32 %v457, %v713
      %v970 = vadd.f32 %v458, %v714
      %v971 = vadd.f32 %v459, %v715
      %v972 = vadd.f32 %v460, %v716
      %v973 = vadd.f32 %v461, %v717
      %v974 = vadd.f32 %v462, %v718
      %v975 = vadd.f32 %v463, %v719
      %v976 = vadd.f32 %v464, %v720
      %v977 = vadd.f32 %v465, %v721
      %v978 = vadd.f32 %v466, %v722
      %v979 = vadd.f32 %v467, %v723
      %v980 = vadd.f32 %v468, %v724
      %v981 = vadd.f32 %v469, %v725
      %v982 = vadd.f32 %v470, %v726
      %v983 = vadd.f32 %v471, %v727
      %v984 = vadd.f32 %v472, %v728
      %v985 = vadd.f32 %v473, %v729
      %v986 = vadd.f32 %v474, %v730
      %v987 = vadd.f32 %v475, %v731
      %v988 = vadd.f32 %v476, %v732
      %v989 = vadd.f32 %v477, %v733
      %v990 = vadd.f32 %v478, %v734
      %v991 = vadd.f32 %v479, %v735
      %v992 = vadd.f32 %v480, %v736
      %v993 = vadd.f32 %v481, %v737
      %v994 = vadd.f32 %v482, %v738
      %v995 = vadd.f32 %v483, %v739
      %v996 = vadd.f32 %v484, %v740
      %v997 = vadd.f32 %v485, %v741
      %v998 = vadd.f32 %v486, %v742
      %v999 = vadd.f32 %v487, %v743
      %v1000 = vadd.f32 %v488, %v744
      %v1001 = vadd.f32 %v489, %v745
      %v1002 = vadd.f32 %v490, %v746
      %v1003 = vadd.f32 %v491, %v747
      %v1004 = vadd.f32 %v492, %v748
      %v1005 = vadd.f32 %v493, %v749
      %v1006 = vadd.f32 %v494, %v750
      %v1007 = vadd.f32 %v495, %v751
      %v1008 = vadd.f32 %v496, %v752
      %v1009 = vadd.f32 %v497, %v753
      %v1010 = vadd.f32 %v498, %v754
      %v1011 = vadd.f32 %v499, %v755
      %v1012 = vadd.f32 %v500, %v756
      %v1013 = vadd.f32 %v501, %v757
      %v1014 = vadd.f32 %v502, %v758
      %v1015 = vadd.f32 %v503, %v759
      %v1016 = vadd.f32 %v504, %v760
      %v1017 = vadd.f32 %v505, %v761
      %v1018 = vadd.f32 %v506, %v762
      %v1019 = vadd.f32 %v507, %v763
      %v1020 = vadd.f32 %v508, %v764
      %v1021 = vadd.f32 %v509, %v765
      %v1022 = vadd.f32 %v510, %v766
      %v1023 = vadd.f32 %v511, %v767
      %v1024 = vadd.f32 %v512, %v768
      %v1025 = vadd.f32 %v513, %v769
      %v1026 = vadd.f32 %v514, %v770
      %v1027 = vadd.f32 %v515, %v771
      %v1028 = vmax.f32 %v772, 0.0
      %v1029 = vmax.f32 %v773, 0.0
      %v1030 = vmax.f32 %v774, 0.0
      %v1031 = vmax.f32 %v775, 0.0
      %v1032 = vmax.f32 %v776, 0.0
      %v1033 = vmax.f32 %v777, 0.0
      %v1034 = vmax.f32 %v778, 0.0
      %v1035 = vmax.f32 %v779, 0.0
      %v1036 = vmax.f32 %v780, 0.0
      %v1037 = vmax.f32 %v781, 0.0
      %v1038 = vmax.f32 %v782, 0.0
      %v1039 = vmax.f32 %v783, 0.0
      %v1040 = vmax.f32 %v784, 0.0
      %v1041 = vmax.f32 %v785, 0.0
      %v1042 = vmax.f32 %v786, 0.0
      %v1043 = vmax.f32 %v787, 0.0
      %v1044 = vmax.f32 %v788, 0.0
      %v1045 = vmax.f32 %v789, 0.0
      %v1046 = vmax.f32 %v790, 0.0
      %v1047 = vmax.f32 %v791, 0.0
      %v1048 = vmax.f32 %v792, 0.0
      %v1049 = vmax.f32 %v793, 0.0
      %v1050 = vmax.f32 %v794, 0.0
      %v1051 = vmax.f32 %v795, 0.0
      %v1052 = vmax.f32 %v796, 0.0
      %v1053 = vmax.f32 %v797, 0.0
      %v1054 = vmax.f32 %v798, 0.0
      %v1055 = vmax.f32 %v799, 0.0
      %v1056 = vmax.f32 %v800, 0.0
      %v1057 = vmax.f32 %v801, 0.0
      %v1058 = vmax.f32 %v802, 0.0
      %v1059 = vmax.f32 %v803, 0.0
      %v1060 = vmax.f32 %v804, 0.0
      %v1061 = vmax.f32 %v805, 0.0
      %v1062 = vmax.f32 %v806, 0.0
      %v1063 = vmax.f32 %v807, 0.0
      %v1064 = vmax.f32 %v808, 0.0
      %v1065 = vmax.f32 %v809, 0.0
      %v1066 = vmax.f32 %v810, 0.0
      %v1067 = vmax.f32 %v811, 0.0
      %v1068 = vmax.f32 %v812, 0.0
      %v1069 = vmax.f32 %v813, 0.0
      %v1070 = vmax.f32 %v814, 0.0
      %v1071 = vmax.f32 %v815, 0.0
      %v1072 = vmax.f32 %v816, 0.0
      %v1073 = vmax.f32 %v817, 0.0
      %v1074 = vmax.f32 %v818, 0.0
      %v1075 = vmax.f32 %v819, 0.0
      %v1076 = vmax.f32 %v820, 0.0
      %v1077 = vmax.f32 %v821, 0.0
      %v1078 = vmax.f32 %v822, 0.0
      %v1079 = vmax.f32 %v823, 0.0
      %v1080 = vmax.f32 %v824, 0.0
      %v1081 = vmax.f32 %v825, 0.0
      %v1082 = vmax.f32 %v826, 0.0
      %v1083 = vmax.f32 %v827, 0.0
      %v1084 = vmax.f32 %v828, 0.0
      %v1085 = vmax.f32 %v829, 0.0
      %v1086 = vmax.f32 %v830, 0.0
      %v1087 = vmax.f32 %v831, 0.0
      %v1088 = vmax.f32 %v832, 0.0
      %v1089 = vmax.f32 %v833, 0.0
      %v1090 = vmax.f32 %v834, 0.0
      %v1091 = vmax.f32 %v835, 0.0
      %v1092 = vmax.f32 %v836, 0.0
      %v1093 = vmax.f32 %v837, 0.0
      %v1094 = vmax.f32 %v838, 0.0
      %v1095 = vmax.f32 %v839, 0.0
      %v1096 = vmax.f32 %v840, 0.0
      %v1097 = vmax.f32 %v841, 0.0
      %v1098 = vmax.f32 %v842, 0.0
      %v1099 = vmax.f32 %v843, 0.0
      %v1100 = vmax.f32 %v844, 0.0
      %v1101 = vmax.f32 %v845, 0.0
      %v1102 = vmax.f32 %v846, 0.0
      %v1103 = vmax.f32 %v847, 0.0
      %v1104 = vmax.f32 %v848, 0.0
      %v1105 = vmax.f32 %v849, 0.0
      %v1106 = vmax.f32 %v850, 0.0
      %v1107 = vmax.f32 %v851, 0.0
      %v1108 = vmax.f32 %v852, 0.0
      %v1109 = vmax.f32 %v853, 0.0
      %v1110 = vmax.f32 %v854, 0.0
      %v1111 = vmax.f32 %v855, 0.0
      %v1112 = vmax.f32 %v856, 0.0
      %v1113 = vmax.f32 %v857, 0.0
      %v1114 = vmax.f32 %v858, 0.0
      %v1115 = vmax.f32 %v859, 0.0
      %v1116 = vmax.f32 %v860, 0.0
      %v1117 = vmax.f32 %v861, 0.0
      %v1118 = vmax.f32 %v862, 0.0
      %v1119 = vmax.f32 %v863, 0.0
      %v1120 = vmax.f32 %v864, 0.0
      %v1121 = vmax.f32 %v865, 0.0
      %v1122 = vmax.f32 %v866, 0.0
      %v1123 = vmax.f32 %v867, 0.0
      %v1124 = vmax.f32 %v868, 0.0
      %v1125 = vmax.f32 %v869, 0.0
      %v1126 = vmax.f32 %v870, 0.0
      %v1127 = vmax.f32 %v871, 0.0
      %v1128 = vmax.f32 %v872, 0.0
      %v1129 = vmax.f32 %v873, 0.0
      %v1130 = vmax.f32 %v874, 0.0
      %v1131 = vmax.f32 %v875, 0.0
      %v1132 = vmax.f32 %v876, 0.0
      %v1133 = vmax.f32 %v877, 0.0
      %v1134 = vmax.f32 %v878, 0.0
      %v1135 = vmax.f32 %v879, 0.0
      %v1136 = vmax.f32 %v880, 0.0
      %v1137 = vmax.f32 %v881, 0.0
      %v1138 = vmax.f32 %v882, 0.0
      %v1139 = vmax.f32 %v883, 0.0
      %v1140 = vmax.f32 %v884, 0.0
      %v1141 = vmax.f32 %v885, 0.0
      %v1142 = vmax.f32 %v886, 0.0
      %v1143 = vmax.f32 %v887, 0.0
      %v1144 = vmax.f32 %v888, 0.0
      %v1145 = vmax.f32 %v889, 0.0
      %v1146 = vmax.f32 %v890, 0.0
      %v1147 = vmax.f32 %v891, 0.0
      %v1148 = vmax.f32 %v892, 0.0
      %v1149 = vmax.f32 %v893, 0.0
      %v1150 = vmax.f32 %v894, 0.0
      %v1151 = vmax.f32 %v895, 0.0
      %v1152 = vmax.f32 %v896, 0.0
      %v1153 = vmax.f32 %v897, 0.0
      %v1154 = vmax.f32 %v898, 0.0
      %v1155 = vmax.f32 %v899, 0.0
      %v1156 = vmax.f32 %v900, 0.0
      %v1157 = vmax.f32 %v901, 0.0
      %v1158 = vmax.f32 %v902, 0.0
      %v1159 = vmax.f32 %v903, 0.0
      %v1160 = vmax.f32 %v904, 0.0
      %v1161 = vmax.f32 %v905, 0.0
      %v1162 = vmax.f32 %v906, 0.0
      %v1163 = vmax.f32 %v907, 0.0
      %v1164 = vmax.f32 %v908, 0.0
      %v1165 = vmax.f32 %v909, 0.0
      %v1166 = vmax.f32 %v910, 0.0
      %v1167 = vmax.f32 %v911, 0.0
      %v1168 = vmax.f32 %v912, 0.0
      %v1169 = vmax.f32 %v913, 0.0
      %v1170 = vmax.f32 %v914, 0.0
      %v1171 = vmax.f32 %v915, 0.0
      %v1172 = vmax.f32 %v916, 0.0
      %v1173 = vmax.f32 %v917, 0.0
      %v1174 = vmax.f32 %v918, 0.0
      %v1175 = vmax.f32 %v919, 0.0
      %v1176 = vmax.f32 %v920, 0.0
      %v1177 = vmax.f32 %v921, 0.0
      %v1178 = vmax.f32 %v922, 0.0
      %v1179 = vmax.f32 %v923, 0.0
      %v1180 = vmax.f32 %v924, 0.0
      %v1181 = vmax.f32 %v925, 0.0
      %v1182 = vmax.f32 %v926, 0.0
      %v1183 = vmax.f32 %v927, 0.0
      %v1184 = vmax.f32 %v928, 0.0
      %v1185 = vmax.f32 %v929, 0.0
      %v1186 = vmax.f32 %v930, 0.0
      %v1187 = vmax.f32 %v931, 0.0
      %v1188 = vmax.f32 %v932, 0.0
      %v1189 = vmax.f32 %v933, 0.0
      %v1190 = vmax.f32 %v934, 0.0
      %v1191 = vmax.f32 %v935, 0.0
      %v1192 = vmax.f32 %v936, 0.0
      %v1193 = vmax.f32 %v937, 0.0
      %v1194 = vmax.f32 %v938, 0.0
      %v1195 = vmax.f32 %v939, 0.0
      %v1196 = vmax.f32 %v940, 0.0
      %v1197 = vmax.f32 %v941, 0.0
      %v1198 = vmax.f32 %v942, 0.0
      %v1199 = vmax.f32 %v943, 0.0
      %v1200 = vmax.f32 %v944, 0.0
      %v1201 = vmax.f32 %v945, 0.0
      %v1202 = vmax.f32 %v946, 0.0
      %v1203 = vmax.f32 %v947, 0.0
      %v1204 = vmax.f32 %v948, 0.0
      %v1205 = vmax.f32 %v949, 0.0
      %v1206 = vmax.f32 %v950, 0.0
      %v1207 = vmax.f32 %v951, 0.0
      %v1208 = vmax.f32 %v952, 0.0
      %v1209 = vmax.f32 %v953, 0.0
      %v1210 = vmax.f32 %v954, 0.0
      %v1211 = vmax.f32 %v955, 0.0
      %v1212 = vmax.f32 %v956, 0.0
      %v1213 = vmax.f32 %v957, 0.0
      %v1214 = vmax.f32 %v958, 0.0
      %v1215 = vmax.f32 %v959, 0.0
      %v1216 = vmax.f32 %v960, 0.0
      %v1217 = vmax.f32 %v961, 0.0
      %v1218 = vmax.f32 %v962, 0.0
      %v1219 = vmax.f32 %v963, 0.0
      %v1220 = vmax.f32 %v964, 0.0
      %v1221 = vmax.f32 %v965, 0.0
      %v1222 = vmax.f32 %v966, 0.0
      %v1223 = vmax.f32 %v967, 0.0
      %v1224 = vmax.f32 %v968, 0.0
      %v1225 = vmax.f32 %v969, 0.0
      %v1226 = vmax.f32 %v970, 0.0
      %v1227 = vmax.f32 %v971, 0.0
      %v1228 = vmax.f32 %v972, 0.0
      %v1229 = vmax.f32 %v973, 0.0
      %v1230 = vmax.f32 %v974, 0.0
      %v1231 = vmax.f32 %v975, 0.0
      %v1232 = vmax.f32 %v976, 0.0
      %v1233 = vmax.f32 %v977, 0.0
      %v1234 = vmax.f32 %v978, 0.0
      %v1235 = vmax.f32 %v979, 0.0
      %v1236 = vmax.f32 %v980, 0.0
      %v1237 = vmax.f32 %v981, 0.0
      %v1238 = vmax.f32 %v982, 0.0
      %v1239 = vmax.f32 %v983, 0.0
      %v1240 = vmax.f32 %v984, 0.0
      %v1241 = vmax.f32 %v985, 0.0
      %v1242 = vmax.f32 %v986, 0.0
      %v1243 = vmax.f32 %v987, 0.0
      %v1244 = vmax.f32 %v988, 0.0
      %v1245 = vmax.f32 %v989, 0.0
      %v1246 = vmax.f32 %v990, 0.0
      %v1247 = vmax.f32 %v991, 0.0
      %v1248 = vmax.f32 %v992, 0.0
      %v1249 = vmax.f32 %v993, 0.0
      %v1250 = vmax.f32 %v994, 0.0
      %v1251 = vmax.f32 %v995, 0.0
      %v1252 = vmax.f32 %v996, 0.0
      %v1253 = vmax.f32 %v997, 0.0
      %v1254 = vmax.f32 %v998, 0.0
      %v1255 = vmax.f32 %v999, 0.0
      %v1256 = vmax.f32 %v1000, 0.0
      %v1257 = vmax.f32 %v1001, 0.0
      %v1258 = vmax.f32 %v1002, 0.0
      %v1259 = vmax.f32 %v1003, 0.0
      %v1260 = vmax.f32 %v1004, 0.0
      %v1261 = vmax.f32 %v1005, 0.0
      %v1262 = vmax.f32 %v1006, 0.0
      %v1263 = vmax.f32 %v1007, 0.0
      %v1264 = vmax.f32 %v1008, 0.0
      %v1265 = vmax.f32 %v1009, 0.0
      %v1266 = vmax.f32 %v1010, 0.0
      %v1267 = vmax.f32 %v1011, 0.0
      %v1268 = vmax.f32 %v1012, 0.0
      %v1269 = vmax.f32 %v1013, 0.0
      %v1270 = vmax.f32 %v1014, 0.0
      %v1271 = vmax.f32 %v1015, 0.0
      %v1272 = vmax.f32 %v1016, 0.0
      %v1273 = vmax.f32 %v1017, 0.0
      %v1274 = vmax.f32 %v1018, 0.0
      %v1275 = vmax.f32 %v1019, 0.0
      %v1276 = vmax.f32 %v1020, 0.0
      %v1277 = vmax.f32 %v1021, 0.0
      %v1278 = vmax.f32 %v1022, 0.0
      %v1279 = vmax.f32 %v1023, 0.0
      %v1280 = vmax.f32 %v1024, 0.0
      %v1281 = vmax.f32 %v1025, 0.0
      %v1282 = vmax.f32 %v1026, 0.0
      %v1283 = vmax.f32 %v1027, 0.0
      %v1284 = vpack.c.bf16 %v1029, %v1028
      %v1285 = vpack.c.bf16 %v1031, %v1030
      %v1286 = vpack.c.bf16 %v1033, %v1032
      %v1287 = vpack.c.bf16 %v1035, %v1034
      %v1288 = vpack.c.bf16 %v1037, %v1036
      %v1289 = vpack.c.bf16 %v1039, %v1038
      %v1290 = vpack.c.bf16 %v1041, %v1040
      %v1291 = vpack.c.bf16 %v1043, %v1042
      %v1292 = vpack.c.bf16 %v1045, %v1044
      %v1293 = vpack.c.bf16 %v1047, %v1046
      %v1294 = vpack.c.bf16 %v1049, %v1048
      %v1295 = vpack.c.bf16 %v1051, %v1050
      %v1296 = vpack.c.bf16 %v1053, %v1052
      %v1297 = vpack.c.bf16 %v1055, %v1054
      %v1298 = vpack.c.bf16 %v1057, %v1056
      %v1299 = vpack.c.bf16 %v1059, %v1058
      %v1300 = vpack.c.bf16 %v1061, %v1060
      %v1301 = vpack.c.bf16 %v1063, %v1062
      %v1302 = vpack.c.bf16 %v1065, %v1064
      %v1303 = vpack.c.bf16 %v1067, %v1066
      %v1304 = vpack.c.bf16 %v1069, %v1068
      %v1305 = vpack.c.bf16 %v1071, %v1070
      %v1306 = vpack.c.bf16 %v1073, %v1072
      %v1307 = vpack.c.bf16 %v1075, %v1074
      %v1308 = vpack.c.bf16 %v1077, %v1076
      %v1309 = vpack.c.bf16 %v1079, %v1078
      %v1310 = vpack.c.bf16 %v1081, %v1080
      %v1311 = vpack.c.bf16 %v1083, %v1082
      %v1312 = vpack.c.bf16 %v1085, %v1084
      %v1313 = vpack.c.bf16 %v1087, %v1086
      %v1314 = vpack.c.bf16 %v1089, %v1088
      %v1315 = vpack.c.bf16 %v1091, %v1090
      %v1316 = vpack.c.bf16 %v1093, %v1092
      %v1317 = vpack.c.bf16 %v1095, %v1094
      %v1318 = vpack.c.bf16 %v1097, %v1096
      %v1319 = vpack.c.bf16 %v1099, %v1098
      %v1320 = vpack.c.bf16 %v1101, %v1100
      %v1321 = vpack.c.bf16 %v1103, %v1102
      %v1322 = vpack.c.bf16 %v1105, %v1104
      %v1323 = vpack.c.bf16 %v1107, %v1106
      %v1324 = vpack.c.bf16 %v1109, %v1108
      %v1325 = vpack.c.bf16 %v1111, %v1110
      %v1326 = vpack.c.bf16 %v1113, %v1112
      %v1327 = vpack.c.bf16 %v1115, %v1114
      %v1328 = vpack.c.bf16 %v1117, %v1116
      %v1329 = vpack.c.bf16 %v1119, %v1118
      %v1330 = vpack.c.bf16 %v1121, %v1120
      %v1331 = vpack.c.bf16 %v1123, %v1122
      %v1332 = vpack.c.bf16 %v1125, %v1124
      %v1333 = vpack.c.bf16 %v1127, %v1126
      %v1334 = vpack.c.bf16 %v1129, %v1128
      %v1335 = vpack.c.bf16 %v1131, %v1130
      %v1336 = vpack.c.bf16 %v1133, %v1132
      %v1337 = vpack.c.bf16 %v1135, %v1134
      %v1338 = vpack.c.bf16 %v1137, %v1136
      %v1339 = vpack.c.bf16 %v1139, %v1138
      %v1340 = vpack.c.bf16 %v1141, %v1140
      %v1341 = vpack.c.bf16 %v1143, %v1142
      %v1342 = vpack.c.bf16 %v1145, %v1144
      %v1343 = vpack.c.bf16 %v1147, %v1146
      %v1344 = vpack.c.bf16 %v1149, %v1148
      %v1345 = vpack.c.bf16 %v1151, %v1150
      %v1346 = vpack.c.bf16 %v1153, %v1152
      %v1347 = vpack.c.bf16 %v1155, %v1154
      %v1348 = vpack.c.bf16 %v1157, %v1156
      %v1349 = vpack.c.bf16 %v1159, %v1158
      %v1350 = vpack.c.bf16 %v1161, %v1160
      %v1351 = vpack.c.bf16 %v1163, %v1162
      %v1352 = vpack.c.bf16 %v1165, %v1164
      %v1353 = vpack.c.bf16 %v1167, %v1166
      %v1354 = vpack.c.bf16 %v1169, %v1168
      %v1355 = vpack.c.bf16 %v1171, %v1170
      %v1356 = vpack.c.bf16 %v1173, %v1172
      %v1357 = vpack.c.bf16 %v1175, %v1174
      %v1358 = vpack.c.bf16 %v1177, %v1176
      %v1359 = vpack.c.bf16 %v1179, %v1178
      %v1360 = vpack.c.bf16 %v1181, %v1180
      %v1361 = vpack.c.bf16 %v1183, %v1182
      %v1362 = vpack.c.bf16 %v1185, %v1184
      %v1363 = vpack.c.bf16 %v1187, %v1186
      %v1364 = vpack.c.bf16 %v1189, %v1188
      %v1365 = vpack.c.bf16 %v1191, %v1190
      %v1366 = vpack.c.bf16 %v1193, %v1192
      %v1367 = vpack.c.bf16 %v1195, %v1194
      %v1368 = vpack.c.bf16 %v1197, %v1196
      %v1369 = vpack.c.bf16 %v1199, %v1198
      %v1370 = vpack.c.bf16 %v1201, %v1200
      %v1371 = vpack.c.bf16 %v1203, %v1202
      %v1372 = vpack.c.bf16 %v1205, %v1204
      %v1373 = vpack.c.bf16 %v1207, %v1206
      %v1374 = vpack.c.bf16 %v1209, %v1208
      %v1375 = vpack.c.bf16 %v1211, %v1210
      %v1376 = vpack.c.bf16 %v1213, %v1212
      %v1377 = vpack.c.bf16 %v1215, %v1214
      %v1378 = vpack.c.bf16 %v1217, %v1216
      %v1379 = vpack.c.bf16 %v1219, %v1218
      %v1380 = vpack.c.bf16 %v1221, %v1220
      %v1381 = vpack.c.bf16 %v1223, %v1222
      %v1382 = vpack.c.bf16 %v1225, %v1224
      %v1383 = vpack.c.bf16 %v1227, %v1226
      %v1384 = vpack.c.bf16 %v1229, %v1228
      %v1385 = vpack.c.bf16 %v1231, %v1230
      %v1386 = vpack.c.bf16 %v1233, %v1232
      %v1387 = vpack.c.bf16 %v1235, %v1234
      %v1388 = vpack.c.bf16 %v1237, %v1236
      %v1389 = vpack.c.bf16 %v1239, %v1238
      %v1390 = vpack.c.bf16 %v1241, %v1240
      %v1391 = vpack.c.bf16 %v1243, %v1242
      %v1392 = vpack.c.bf16 %v1245, %v1244
      %v1393 = vpack.c.bf16 %v1247, %v1246
      %v1394 = vpack.c.bf16 %v1249, %v1248
      %v1395 = vpack.c.bf16 %v1251, %v1250
      %v1396 = vpack.c.bf16 %v1253, %v1252
      %v1397 = vpack.c.bf16 %v1255, %v1254
      %v1398 = vpack.c.bf16 %v1257, %v1256
      %v1399 = vpack.c.bf16 %v1259, %v1258
      %v1400 = vpack.c.bf16 %v1261, %v1260
      %v1401 = vpack.c.bf16 %v1263, %v1262
      %v1402 = vpack.c.bf16 %v1265, %v1264
      %v1403 = vpack.c.bf16 %v1267, %v1266
      %v1404 = vpack.c.bf16 %v1269, %v1268
      %v1405 = vpack.c.bf16 %v1271, %v1270
      %v1406 = vpack.c.bf16 %v1273, %v1272
      %v1407 = vpack.c.bf16 %v1275, %v1274
      %v1408 = vpack.c.bf16 %v1277, %v1276
      %v1409 = vpack.c.bf16 %v1279, %v1278
      %v1410 = vpack.c.bf16 %v1281, %v1280
      %v1411 = vpack.c.bf16 %v1283, %v1282
      %v1412 = vld [vmem:[%s245] sm:$0xff]
      %v1413 = vld [vmem:[%s245 + $0x8] sm:$0xff]
      %v1414 = vld [vmem:[%s245 + $0x10] sm:$0xff]
      %v1415 = vld [vmem:[%s245 + $0x18] sm:$0xff]
      %v1416 = vld [vmem:[%s245 + $0x20] sm:$0xff]
      %v1417 = vld [vmem:[%s245 + $0x28] sm:$0xff]
      %v1418 = vld [vmem:[%s245 + $0x30] sm:$0xff]
      %v1419 = vld [vmem:[%s245 + $0x38] sm:$0xff]
      %v1420 = vld [vmem:[%s245 + $0x40] sm:$0xff]
      %v1421 = vld [vmem:[%s245 + $0x48] sm:$0xff]
      %v1422 = vld [vmem:[%s245 + $0x50] sm:$0xff]
      %v1423 = vld [vmem:[%s245 + $0x58] sm:$0xff]
      %v1424 = vld [vmem:[%s245 + $0x60] sm:$0xff]
      %v1425 = vld [vmem:[%s245 + $0x68] sm:$0xff]
      %v1426 = vld [vmem:[%s245 + $0x70] sm:$0xff]
      %v1427 = vld [vmem:[%s245 + $0x78] sm:$0xff]
      %v1428 = vld [vmem:[%s245 + $0x80] sm:$0xff]
      %v1429 = vld [vmem:[%s245 + $0x88] sm:$0xff]
      %v1430 = vld [vmem:[%s245 + $0x90] sm:$0xff]
      %v1431 = vld [vmem:[%s245 + $0x98] sm:$0xff]
      %v1432 = vld [vmem:[%s245 + $0xa0] sm:$0xff]
      %v1433 = vld [vmem:[%s245 + $0xa8] sm:$0xff]
      %v1434 = vld [vmem:[%s245 + $0xb0] sm:$0xff]
      %v1435 = vld [vmem:[%s245 + $0xb8] sm:$0xff]
      %v1436 = vld [vmem:[%s245 + $0xc0] sm:$0xff]
      %v1437 = vld [vmem:[%s245 + $0xc8] sm:$0xff]
      %v1438 = vld [vmem:[%s245 + $0xd0] sm:$0xff]
      %v1439 = vld [vmem:[%s245 + $0xd8] sm:$0xff]
      %v1440 = vld [vmem:[%s245 + $0xe0] sm:$0xff]
      %v1441 = vld [vmem:[%s245 + $0xe8] sm:$0xff]
      %v1442 = vld [vmem:[%s245 + $0xf0] sm:$0xff]
      %v1443 = vld [vmem:[%s245 + $0xf8] sm:$0xff]
      %v1444 = vld [vmem:[%s245 + $0x100] sm:$0xff]
      %v1445 = vld [vmem:[%s245 + $0x108] sm:$0xff]
      %v1446 = vld [vmem:[%s245 + $0x110] sm:$0xff]
      %v1447 = vld [vmem:[%s245 + $0x118] sm:$0xff]
      %v1448 = vld [vmem:[%s245 + $0x120] sm:$0xff]
      %v1449 = vld [vmem:[%s245 + $0x128] sm:$0xff]
      %v1450 = vld [vmem:[%s245 + $0x130] sm:$0xff]
      %v1451 = vld [vmem:[%s245 + $0x138] sm:$0xff]
      %v1452 = vld [vmem:[%s245 + $0x140] sm:$0xff]
      %v1453 = vld [vmem:[%s245 + $0x148] sm:$0xff]
      %v1454 = vld [vmem:[%s245 + $0x150] sm:$0xff]
      %v1455 = vld [vmem:[%s245 + $0x158] sm:$0xff]
      %v1456 = vld [vmem:[%s245 + $0x160] sm:$0xff]
      %v1457 = vld [vmem:[%s245 + $0x168] sm:$0xff]
      %v1458 = vld [vmem:[%s245 + $0x170] sm:$0xff]
      %v1459 = vld [vmem:[%s245 + $0x178] sm:$0xff]
      %v1460 = vld [vmem:[%s245 + $0x180] sm:$0xff]
      %v1461 = vld [vmem:[%s245 + $0x188] sm:$0xff]
      %v1462 = vld [vmem:[%s245 + $0x190] sm:$0xff]
      %v1463 = vld [vmem:[%s245 + $0x198] sm:$0xff]
      %v1464 = vld [vmem:[%s245 + $0x1a0] sm:$0xff]
      %v1465 = vld [vmem:[%s245 + $0x1a8] sm:$0xff]
      %v1466 = vld [vmem:[%s245 + $0x1b0] sm:$0xff]
      %v1467 = vld [vmem:[%s245 + $0x1b8] sm:$0xff]
      %v1468 = vld [vmem:[%s245 + $0x1c0] sm:$0xff]
      %v1469 = vld [vmem:[%s245 + $0x1c8] sm:$0xff]
      %v1470 = vld [vmem:[%s245 + $0x1d0] sm:$0xff]
      %v1471 = vld [vmem:[%s245 + $0x1d8] sm:$0xff]
      %v1472 = vld [vmem:[%s245 + $0x1e0] sm:$0xff]
      %v1473 = vld [vmem:[%s245 + $0x1e8] sm:$0xff]
      %v1474 = vld [vmem:[%s245 + $0x1f0] sm:$0xff]
      %v1475 = vld [vmem:[%s245 + $0x1f8] sm:$0xff]
      %v1476 = vld [vmem:[%s245 + $0x200] sm:$0xff]
      %v1477 = vld [vmem:[%s245 + $0x208] sm:$0xff]
      %v1478 = vld [vmem:[%s245 + $0x210] sm:$0xff]
      %v1479 = vld [vmem:[%s245 + $0x218] sm:$0xff]
      %v1480 = vld [vmem:[%s245 + $0x220] sm:$0xff]
      %v1481 = vld [vmem:[%s245 + $0x228] sm:$0xff]
      %v1482 = vld [vmem:[%s245 + $0x230] sm:$0xff]
      %v1483 = vld [vmem:[%s245 + $0x238] sm:$0xff]
      %v1484 = vld [vmem:[%s245 + $0x240] sm:$0xff]
      %v1485 = vld [vmem:[%s245 + $0x248] sm:$0xff]
      %v1486 = vld [vmem:[%s245 + $0x250] sm:$0xff]
      %v1487 = vld [vmem:[%s245 + $0x258] sm:$0xff]
      %v1488 = vld [vmem:[%s245 + $0x260] sm:$0xff]
      %v1489 = vld [vmem:[%s245 + $0x268] sm:$0xff]
      %v1490 = vld [vmem:[%s245 + $0x270] sm:$0xff]
      %v1491 = vld [vmem:[%s245 + $0x278] sm:$0xff]
      %v1492 = vld [vmem:[%s245 + $0x280] sm:$0xff]
      %v1493 = vld [vmem:[%s245 + $0x288] sm:$0xff]
      %v1494 = vld [vmem:[%s245 + $0x290] sm:$0xff]
      %v1495 = vld [vmem:[%s245 + $0x298] sm:$0xff]
      %v1496 = vld [vmem:[%s245 + $0x2a0] sm:$0xff]
      %v1497 = vld [vmem:[%s245 + $0x2a8] sm:$0xff]
      %v1498 = vld [vmem:[%s245 + $0x2b0] sm:$0xff]
      %v1499 = vld [vmem:[%s245 + $0x2b8] sm:$0xff]
      %v1500 = vld [vmem:[%s245 + $0x2c0] sm:$0xff]
      %v1501 = vld [vmem:[%s245 + $0x2c8] sm:$0xff]
      %v1502 = vld [vmem:[%s245 + $0x2d0] sm:$0xff]
      %v1503 = vld [vmem:[%s245 + $0x2d8] sm:$0xff]
      %v1504 = vld [vmem:[%s245 + $0x2e0] sm:$0xff]
      %v1505 = vld [vmem:[%s245 + $0x2e8] sm:$0xff]
      %v1506 = vld [vmem:[%s245 + $0x2f0] sm:$0xff]
      %v1507 = vld [vmem:[%s245 + $0x2f8] sm:$0xff]
      %v1508 = vld [vmem:[%s245 + $0x300] sm:$0xff]
      %v1509 = vld [vmem:[%s245 + $0x308] sm:$0xff]
      %v1510 = vld [vmem:[%s245 + $0x310] sm:$0xff]
      %v1511 = vld [vmem:[%s245 + $0x318] sm:$0xff]
      %v1512 = vld [vmem:[%s245 + $0x320] sm:$0xff]
      %v1513 = vld [vmem:[%s245 + $0x328] sm:$0xff]
      %v1514 = vld [vmem:[%s245 + $0x330] sm:$0xff]
      %v1515 = vld [vmem:[%s245 + $0x338] sm:$0xff]
      %v1516 = vld [vmem:[%s245 + $0x340] sm:$0xff]
      %v1517 = vld [vmem:[%s245 + $0x348] sm:$0xff]
      %v1518 = vld [vmem:[%s245 + $0x350] sm:$0xff]
      %v1519 = vld [vmem:[%s245 + $0x358] sm:$0xff]
      %v1520 = vld [vmem:[%s245 + $0x360] sm:$0xff]
      %v1521 = vld [vmem:[%s245 + $0x368] sm:$0xff]
      %v1522 = vld [vmem:[%s245 + $0x370] sm:$0xff]
      %v1523 = vld [vmem:[%s245 + $0x378] sm:$0xff]
      %v1524 = vld [vmem:[%s245 + $0x380] sm:$0xff]
      %v1525 = vld [vmem:[%s245 + $0x388] sm:$0xff]
      %v1526 = vld [vmem:[%s245 + $0x390] sm:$0xff]
      %v1527 = vld [vmem:[%s245 + $0x398] sm:$0xff]
      %v1528 = vld [vmem:[%s245 + $0x3a0] sm:$0xff]
      %v1529 = vld [vmem:[%s245 + $0x3a8] sm:$0xff]
      %v1530 = vld [vmem:[%s245 + $0x3b0] sm:$0xff]
      %v1531 = vld [vmem:[%s245 + $0x3b8] sm:$0xff]
      %v1532 = vld [vmem:[%s245 + $0x3c0] sm:$0xff]
      %v1533 = vld [vmem:[%s245 + $0x3c8] sm:$0xff]
      %v1534 = vld [vmem:[%s245 + $0x3d0] sm:$0xff]
      %v1535 = vld [vmem:[%s245 + $0x3d8] sm:$0xff]
      %v1536 = vld [vmem:[%s245 + $0x3e0] sm:$0xff]
      %v1537 = vld [vmem:[%s245 + $0x3e8] sm:$0xff]
      %v1538 = vld [vmem:[%s245 + $0x3f0] sm:$0xff]
      %v1539 = vld [vmem:[%s245 + $0x3f8] sm:$0xff]
      %1540 = vxpose.xlu0.c.b16.start [1/8] %v1284, 128
      %1541 = vxpose.xlu0.c.b16.cont [2/8] %v1285, 128
      %1542 = vxpose.xlu0.c.b16.cont [3/8] %v1286, 128
      %1543 = vxpose.xlu0.c.b16.cont [4/8] %v1287, 128
      %1544 = vxpose.xlu0.c.b16.cont [5/8] %v1288, 128
      %1545 = vxpose.xlu0.c.b16.cont [6/8] %v1289, 128
      %1546 = vxpose.xlu0.c.b16.cont [7/8] %v1290, 128
      %1547 = vxpose.xlu0.c.b16.end [8/8] %v1291, 128
      %v1548 = vpop.trf.xlu0
      %v1549 = vpop.trf.xlu0
      %v1550 = vpop.trf.xlu0
      %v1551 = vpop.trf.xlu0
      %v1552 = vpop.trf.xlu0
      %v1553 = vpop.trf.xlu0
      %v1554 = vpop.trf.xlu0
      %v1555 = vpop.trf.xlu0
      %1556 = vxpose.xlu0.c.b16.start [1/8] %v1292, 128
      %1557 = vxpose.xlu0.c.b16.cont [2/8] %v1293, 128
      %1558 = vxpose.xlu0.c.b16.cont [3/8] %v1294, 128
      %1559 = vxpose.xlu0.c.b16.cont [4/8] %v1295, 128
      %1560 = vxpose.xlu0.c.b16.cont [5/8] %v1296, 128
      %1561 = vxpose.xlu0.c.b16.cont [6/8] %v1297, 128
      %1562 = vxpose.xlu0.c.b16.cont [7/8] %v1298, 128
      %1563 = vxpose.xlu0.c.b16.end [8/8] %v1299, 128
      %v1564 = vpop.trf.xlu0
      %v1565 = vpop.trf.xlu0
      %v1566 = vpop.trf.xlu0
      %v1567 = vpop.trf.xlu0
      %v1568 = vpop.trf.xlu0
      %v1569 = vpop.trf.xlu0
      %v1570 = vpop.trf.xlu0
      %v1571 = vpop.trf.xlu0
      %1572 = vxpose.xlu0.c.b16.start [1/8] %v1300, 128
      %1573 = vxpose.xlu0.c.b16.cont [2/8] %v1301, 128
      %1574 = vxpose.xlu0.c.b16.cont [3/8] %v1302, 128
      %1575 = vxpose.xlu0.c.b16.cont [4/8] %v1303, 128
      %1576 = vxpose.xlu0.c.b16.cont [5/8] %v1304, 128
      %1577 = vxpose.xlu0.c.b16.cont [6/8] %v1305, 128
      %1578 = vxpose.xlu0.c.b16.cont [7/8] %v1306, 128
      %1579 = vxpose.xlu0.c.b16.end [8/8] %v1307, 128
      %v1580 = vpop.trf.xlu0
      %v1581 = vpop.trf.xlu0
      %v1582 = vpop.trf.xlu0
      %v1583 = vpop.trf.xlu0
      %v1584 = vpop.trf.xlu0
      %v1585 = vpop.trf.xlu0
      %v1586 = vpop.trf.xlu0
      %v1587 = vpop.trf.xlu0
      %1588 = vxpose.xlu0.c.b16.start [1/8] %v1308, 128
      %1589 = vxpose.xlu0.c.b16.cont [2/8] %v1309, 128
      %1590 = vxpose.xlu0.c.b16.cont [3/8] %v1310, 128
      %1591 = vxpose.xlu0.c.b16.cont [4/8] %v1311, 128
      %1592 = vxpose.xlu0.c.b16.cont [5/8] %v1312, 128
      %1593 = vxpose.xlu0.c.b16.cont [6/8] %v1313, 128
      %1594 = vxpose.xlu0.c.b16.cont [7/8] %v1314, 128
      %1595 = vxpose.xlu0.c.b16.end [8/8] %v1315, 128
      %v1596 = vpop.trf.xlu0
      %v1597 = vpop.trf.xlu0
      %v1598 = vpop.trf.xlu0
      %v1599 = vpop.trf.xlu0
      %v1600 = vpop.trf.xlu0
      %v1601 = vpop.trf.xlu0
      %v1602 = vpop.trf.xlu0
      %v1603 = vpop.trf.xlu0
      %1604 = vxpose.xlu0.c.b16.start [1/8] %v1316, 128
      %1605 = vxpose.xlu0.c.b16.cont [2/8] %v1317, 128
      %1606 = vxpose.xlu0.c.b16.cont [3/8] %v1318, 128
      %1607 = vxpose.xlu0.c.b16.cont [4/8] %v1319, 128
      %1608 = vxpose.xlu0.c.b16.cont [5/8] %v1320, 128
      %1609 = vxpose.xlu0.c.b16.cont [6/8] %v1321, 128
      %1610 = vxpose.xlu0.c.b16.cont [7/8] %v1322, 128
      %1611 = vxpose.xlu0.c.b16.end [8/8] %v1323, 128
      %v1612 = vpop.trf.xlu0
      %v1613 = vpop.trf.xlu0
      %v1614 = vpop.trf.xlu0
      %v1615 = vpop.trf.xlu0
      %v1616 = vpop.trf.xlu0
      %v1617 = vpop.trf.xlu0
      %v1618 = vpop.trf.xlu0
      %v1619 = vpop.trf.xlu0
      %1620 = vxpose.xlu0.c.b16.start [1/8] %v1324, 128
      %1621 = vxpose.xlu0.c.b16.cont [2/8] %v1325, 128
      %1622 = vxpose.xlu0.c.b16.cont [3/8] %v1326, 128
      %1623 = vxpose.xlu0.c.b16.cont [4/8] %v1327, 128
      %1624 = vxpose.xlu0.c.b16.cont [5/8] %v1328, 128
      %1625 = vxpose.xlu0.c.b16.cont [6/8] %v1329, 128
      %1626 = vxpose.xlu0.c.b16.cont [7/8] %v1330, 128
      %1627 = vxpose.xlu0.c.b16.end [8/8] %v1331, 128
      %v1628 = vpop.trf.xlu0
      %v1629 = vpop.trf.xlu0
      %v1630 = vpop.trf.xlu0
      %v1631 = vpop.trf.xlu0
      %v1632 = vpop.trf.xlu0
      %v1633 = vpop.trf.xlu0
      %v1634 = vpop.trf.xlu0
      %v1635 = vpop.trf.xlu0
      %1636 = vxpose.xlu0.c.b16.start [1/8] %v1332, 128
      %1637 = vxpose.xlu0.c.b16.cont [2/8] %v1333, 128
      %1638 = vxpose.xlu0.c.b16.cont [3/8] %v1334, 128
      %1639 = vxpose.xlu0.c.b16.cont [4/8] %v1335, 128
      %1640 = vxpose.xlu0.c.b16.cont [5/8] %v1336, 128
      %1641 = vxpose.xlu0.c.b16.cont [6/8] %v1337, 128
      %1642 = vxpose.xlu0.c.b16.cont [7/8] %v1338, 128
      %1643 = vxpose.xlu0.c.b16.end [8/8] %v1339, 128
      %v1644 = vpop.trf.xlu0
      %v1645 = vpop.trf.xlu0
      %v1646 = vpop.trf.xlu0
      %v1647 = vpop.trf.xlu0
      %v1648 = vpop.trf.xlu0
      %v1649 = vpop.trf.xlu0
      %v1650 = vpop.trf.xlu0
      %v1651 = vpop.trf.xlu0
      %1652 = vxpose.xlu0.c.b16.start [1/8] %v1340, 128
      %1653 = vxpose.xlu0.c.b16.cont [2/8] %v1341, 128
      %1654 = vxpose.xlu0.c.b16.cont [3/8] %v1342, 128
      %1655 = vxpose.xlu0.c.b16.cont [4/8] %v1343, 128
      %1656 = vxpose.xlu0.c.b16.cont [5/8] %v1344, 128
      %1657 = vxpose.xlu0.c.b16.cont [6/8] %v1345, 128
      %1658 = vxpose.xlu0.c.b16.cont [7/8] %v1346, 128
      %1659 = vxpose.xlu0.c.b16.end [8/8] %v1347, 128
      %v1660 = vpop.trf.xlu0
      %v1661 = vpop.trf.xlu0
      %v1662 = vpop.trf.xlu0
      %v1663 = vpop.trf.xlu0
      %v1664 = vpop.trf.xlu0
      %v1665 = vpop.trf.xlu0
      %v1666 = vpop.trf.xlu0
      %v1667 = vpop.trf.xlu0
      %1668 = vxpose.xlu0.c.b16.start [1/8] %v1348, 128
      %1669 = vxpose.xlu0.c.b16.cont [2/8] %v1349, 128
      %1670 = vxpose.xlu0.c.b16.cont [3/8] %v1350, 128
      %1671 = vxpose.xlu0.c.b16.cont [4/8] %v1351, 128
      %1672 = vxpose.xlu0.c.b16.cont [5/8] %v1352, 128
      %1673 = vxpose.xlu0.c.b16.cont [6/8] %v1353, 128
      %1674 = vxpose.xlu0.c.b16.cont [7/8] %v1354, 128
      %1675 = vxpose.xlu0.c.b16.end [8/8] %v1355, 128
      %v1676 = vpop.trf.xlu0
      %v1677 = vpop.trf.xlu0
      %v1678 = vpop.trf.xlu0
      %v1679 = vpop.trf.xlu0
      %v1680 = vpop.trf.xlu0
      %v1681 = vpop.trf.xlu0
      %v1682 = vpop.trf.xlu0
      %v1683 = vpop.trf.xlu0
      %1684 = vxpose.xlu0.c.b16.start [1/8] %v1356, 128
      %1685 = vxpose.xlu0.c.b16.cont [2/8] %v1357, 128
      %1686 = vxpose.xlu0.c.b16.cont [3/8] %v1358, 128
      %1687 = vxpose.xlu0.c.b16.cont [4/8] %v1359, 128
      %1688 = vxpose.xlu0.c.b16.cont [5/8] %v1360, 128
      %1689 = vxpose.xlu0.c.b16.cont [6/8] %v1361, 128
      %1690 = vxpose.xlu0.c.b16.cont [7/8] %v1362, 128
      %1691 = vxpose.xlu0.c.b16.end [8/8] %v1363, 128
      %v1692 = vpop.trf.xlu0
      %v1693 = vpop.trf.xlu0
      %v1694 = vpop.trf.xlu0
      %v1695 = vpop.trf.xlu0
      %v1696 = vpop.trf.xlu0
      %v1697 = vpop.trf.xlu0
      %v1698 = vpop.trf.xlu0
      %v1699 = vpop.trf.xlu0
      %1700 = vxpose.xlu0.c.b16.start [1/8] %v1364, 128
      %1701 = vxpose.xlu0.c.b16.cont [2/8] %v1365, 128
      %1702 = vxpose.xlu0.c.b16.cont [3/8] %v1366, 128
      %1703 = vxpose.xlu0.c.b16.cont [4/8] %v1367, 128
      %1704 = vxpose.xlu0.c.b16.cont [5/8] %v1368, 128
      %1705 = vxpose.xlu0.c.b16.cont [6/8] %v1369, 128
      %1706 = vxpose.xlu0.c.b16.cont [7/8] %v1370, 128
      %1707 = vxpose.xlu0.c.b16.end [8/8] %v1371, 128
      %v1708 = vpop.trf.xlu0
      %v1709 = vpop.trf.xlu0
      %v1710 = vpop.trf.xlu0
      %v1711 = vpop.trf.xlu0
      %v1712 = vpop.trf.xlu0
      %v1713 = vpop.trf.xlu0
      %v1714 = vpop.trf.xlu0
      %v1715 = vpop.trf.xlu0
      %1716 = vxpose.xlu0.c.b16.start [1/8] %v1372, 128
      %1717 = vxpose.xlu0.c.b16.cont [2/8] %v1373, 128
      %1718 = vxpose.xlu0.c.b16.cont [3/8] %v1374, 128
      %1719 = vxpose.xlu0.c.b16.cont [4/8] %v1375, 128
      %1720 = vxpose.xlu0.c.b16.cont [5/8] %v1376, 128
      %1721 = vxpose.xlu0.c.b16.cont [6/8] %v1377, 128
      %1722 = vxpose.xlu0.c.b16.cont [7/8] %v1378, 128
      %1723 = vxpose.xlu0.c.b16.end [8/8] %v1379, 128
      %v1724 = vpop.trf.xlu0
      %v1725 = vpop.trf.xlu0
      %v1726 = vpop.trf.xlu0
      %v1727 = vpop.trf.xlu0
      %v1728 = vpop.trf.xlu0
      %v1729 = vpop.trf.xlu0
      %v1730 = vpop.trf.xlu0
      %v1731 = vpop.trf.xlu0
      %1732 = vxpose.xlu0.c.b16.start [1/8] %v1380, 128
      %1733 = vxpose.xlu0.c.b16.cont [2/8] %v1381, 128
      %1734 = vxpose.xlu0.c.b16.cont [3/8] %v1382, 128
      %1735 = vxpose.xlu0.c.b16.cont [4/8] %v1383, 128
      %1736 = vxpose.xlu0.c.b16.cont [5/8] %v1384, 128
      %1737 = vxpose.xlu0.c.b16.cont [6/8] %v1385, 128
      %1738 = vxpose.xlu0.c.b16.cont [7/8] %v1386, 128
      %1739 = vxpose.xlu0.c.b16.end [8/8] %v1387, 128
      %v1740 = vpop.trf.xlu0
      %v1741 = vpop.trf.xlu0
      %v1742 = vpop.trf.xlu0
      %v1743 = vpop.trf.xlu0
      %v1744 = vpop.trf.xlu0
      %v1745 = vpop.trf.xlu0
      %v1746 = vpop.trf.xlu0
      %v1747 = vpop.trf.xlu0
      %1748 = vxpose.xlu0.c.b16.start [1/8] %v1388, 128
      %1749 = vxpose.xlu0.c.b16.cont [2/8] %v1389, 128
      %1750 = vxpose.xlu0.c.b16.cont [3/8] %v1390, 128
      %1751 = vxpose.xlu0.c.b16.cont [4/8] %v1391, 128
      %1752 = vxpose.xlu0.c.b16.cont [5/8] %v1392, 128
      %1753 = vxpose.xlu0.c.b16.cont [6/8] %v1393, 128
      %1754 = vxpose.xlu0.c.b16.cont [7/8] %v1394, 128
      %1755 = vxpose.xlu0.c.b16.end [8/8] %v1395, 128
      %v1756 = vpop.trf.xlu0
      %v1757 = vpop.trf.xlu0
      %v1758 = vpop.trf.xlu0
      %v1759 = vpop.trf.xlu0
      %v1760 = vpop.trf.xlu0
      %v1761 = vpop.trf.xlu0
      %v1762 = vpop.trf.xlu0
      %v1763 = vpop.trf.xlu0
      %1764 = vxpose.xlu0.c.b16.start [1/8] %v1396, 128
      %1765 = vxpose.xlu0.c.b16.cont [2/8] %v1397, 128
      %1766 = vxpose.xlu0.c.b16.cont [3/8] %v1398, 128
      %1767 = vxpose.xlu0.c.b16.cont [4/8] %v1399, 128
      %1768 = vxpose.xlu0.c.b16.cont [5/8] %v1400, 128
      %1769 = vxpose.xlu0.c.b16.cont [6/8] %v1401, 128
      %1770 = vxpose.xlu0.c.b16.cont [7/8] %v1402, 128
      %1771 = vxpose.xlu0.c.b16.end [8/8] %v1403, 128
      %v1772 = vpop.trf.xlu0
      %v1773 = vpop.trf.xlu0
      %v1774 = vpop.trf.xlu0
      %v1775 = vpop.trf.xlu0
      %v1776 = vpop.trf.xlu0
      %v1777 = vpop.trf.xlu0
      %v1778 = vpop.trf.xlu0
      %v1779 = vpop.trf.xlu0
      %1780 = vxpose.xlu0.c.b16.start [1/8] %v1404, 128
      %1781 = vxpose.xlu0.c.b16.cont [2/8] %v1405, 128
      %1782 = vxpose.xlu0.c.b16.cont [3/8] %v1406, 128
      %1783 = vxpose.xlu0.c.b16.cont [4/8] %v1407, 128
      %1784 = vxpose.xlu0.c.b16.cont [5/8] %v1408, 128
      %1785 = vxpose.xlu0.c.b16.cont [6/8] %v1409, 128
      %1786 = vxpose.xlu0.c.b16.cont [7/8] %v1410, 128
      %1787 = vxpose.xlu0.c.b16.end [8/8] %v1411, 128
      %v1788 = vpop.trf.xlu0
      %v1789 = vpop.trf.xlu0
      %v1790 = vpop.trf.xlu0
      %v1791 = vpop.trf.xlu0
      %v1792 = vpop.trf.xlu0
      %v1793 = vpop.trf.xlu0
      %v1794 = vpop.trf.xlu0
      %v1795 = vpop.trf.xlu0
      %v1924 = vunpack.c.l.b16 %v1412
      %v1925 = vunpack.c.h.b16 %v1412
      %v1926 = vunpack.c.l.b16 %v1413
      %v1927 = vunpack.c.h.b16 %v1413
      %v1928 = vunpack.c.l.b16 %v1414
      %v1929 = vunpack.c.h.b16 %v1414
      %v1930 = vunpack.c.l.b16 %v1415
      %v1931 = vunpack.c.h.b16 %v1415
      %v1932 = vunpack.c.l.b16 %v1416
      %v1933 = vunpack.c.h.b16 %v1416
      %v1934 = vunpack.c.l.b16 %v1417
      %v1935 = vunpack.c.h.b16 %v1417
      %v1936 = vunpack.c.l.b16 %v1418
      %v1937 = vunpack.c.h.b16 %v1418
      %v1938 = vunpack.c.l.b16 %v1419
      %v1939 = vunpack.c.h.b16 %v1419
      %v1940 = vunpack.c.l.b16 %v1420
      %v1941 = vunpack.c.h.b16 %v1420
      %v1942 = vunpack.c.l.b16 %v1421
      %v1943 = vunpack.c.h.b16 %v1421
      %v1944 = vunpack.c.l.b16 %v1422
      %v1945 = vunpack.c.h.b16 %v1422
      %v1946 = vunpack.c.l.b16 %v1423
      %v1947 = vunpack.c.h.b16 %v1423
      %v1948 = vunpack.c.l.b16 %v1424
      %v1949 = vunpack.c.h.b16 %v1424
      %v1950 = vunpack.c.l.b16 %v1425
      %v1951 = vunpack.c.h.b16 %v1425
      %v1952 = vunpack.c.l.b16 %v1426
      %v1953 = vunpack.c.h.b16 %v1426
      %v1954 = vunpack.c.l.b16 %v1427
      %v1955 = vunpack.c.h.b16 %v1427
      %v1956 = vunpack.c.l.b16 %v1428
      %v1957 = vunpack.c.h.b16 %v1428
      %v1958 = vunpack.c.l.b16 %v1429
      %v1959 = vunpack.c.h.b16 %v1429
      %v1960 = vunpack.c.l.b16 %v1430
      %v1961 = vunpack.c.h.b16 %v1430
      %v1962 = vunpack.c.l.b16 %v1431
      %v1963 = vunpack.c.h.b16 %v1431
      %v1964 = vunpack.c.l.b16 %v1432
      %v1965 = vunpack.c.h.b16 %v1432
      %v1966 = vunpack.c.l.b16 %v1433
      %v1967 = vunpack.c.h.b16 %v1433
      %v1968 = vunpack.c.l.b16 %v1434
      %v1969 = vunpack.c.h.b16 %v1434
      %v1970 = vunpack.c.l.b16 %v1435
      %v1971 = vunpack.c.h.b16 %v1435
      %v1972 = vunpack.c.l.b16 %v1436
      %v1973 = vunpack.c.h.b16 %v1436
      %v1974 = vunpack.c.l.b16 %v1437
      %v1975 = vunpack.c.h.b16 %v1437
      %v1976 = vunpack.c.l.b16 %v1438
      %v1977 = vunpack.c.h.b16 %v1438
      %v1978 = vunpack.c.l.b16 %v1439
      %v1979 = vunpack.c.h.b16 %v1439
      %v1980 = vunpack.c.l.b16 %v1440
      %v1981 = vunpack.c.h.b16 %v1440
      %v1982 = vunpack.c.l.b16 %v1441
      %v1983 = vunpack.c.h.b16 %v1441
      %v1984 = vunpack.c.l.b16 %v1442
      %v1985 = vunpack.c.h.b16 %v1442
      %v1986 = vunpack.c.l.b16 %v1443
      %v1987 = vunpack.c.h.b16 %v1443
      %v1988 = vunpack.c.l.b16 %v1444
      %v1989 = vunpack.c.h.b16 %v1444
      %v1990 = vunpack.c.l.b16 %v1445
      %v1991 = vunpack.c.h.b16 %v1445
      %v1992 = vunpack.c.l.b16 %v1446
      %v1993 = vunpack.c.h.b16 %v1446
      %v1994 = vunpack.c.l.b16 %v1447
      %v1995 = vunpack.c.h.b16 %v1447
      %v1996 = vunpack.c.l.b16 %v1448
      %v1997 = vunpack.c.h.b16 %v1448
      %v1998 = vunpack.c.l.b16 %v1449
      %v1999 = vunpack.c.h.b16 %v1449
      %v2000 = vunpack.c.l.b16 %v1450
      %v2001 = vunpack.c.h.b16 %v1450
      %v2002 = vunpack.c.l.b16 %v1451
      %v2003 = vunpack.c.h.b16 %v1451
      %v2004 = vunpack.c.l.b16 %v1452
      %v2005 = vunpack.c.h.b16 %v1452
      %v2006 = vunpack.c.l.b16 %v1453
      %v2007 = vunpack.c.h.b16 %v1453
      %v2008 = vunpack.c.l.b16 %v1454
      %v2009 = vunpack.c.h.b16 %v1454
      %v2010 = vunpack.c.l.b16 %v1455
      %v2011 = vunpack.c.h.b16 %v1455
      %v2012 = vunpack.c.l.b16 %v1456
      %v2013 = vunpack.c.h.b16 %v1456
      %v2014 = vunpack.c.l.b16 %v1457
      %v2015 = vunpack.c.h.b16 %v1457
      %v2016 = vunpack.c.l.b16 %v1458
      %v2017 = vunpack.c.h.b16 %v1458
      %v2018 = vunpack.c.l.b16 %v1459
      %v2019 = vunpack.c.h.b16 %v1459
      %v2020 = vunpack.c.l.b16 %v1460
      %v2021 = vunpack.c.h.b16 %v1460
      %v2022 = vunpack.c.l.b16 %v1461
      %v2023 = vunpack.c.h.b16 %v1461
      %v2024 = vunpack.c.l.b16 %v1462
      %v2025 = vunpack.c.h.b16 %v1462
      %v2026 = vunpack.c.l.b16 %v1463
      %v2027 = vunpack.c.h.b16 %v1463
      %v2028 = vunpack.c.l.b16 %v1464
      %v2029 = vunpack.c.h.b16 %v1464
      %v2030 = vunpack.c.l.b16 %v1465
      %v2031 = vunpack.c.h.b16 %v1465
      %v2032 = vunpack.c.l.b16 %v1466
      %v2033 = vunpack.c.h.b16 %v1466
      %v2034 = vunpack.c.l.b16 %v1467
      %v2035 = vunpack.c.h.b16 %v1467
      %v2036 = vunpack.c.l.b16 %v1468
      %v2037 = vunpack.c.h.b16 %v1468
      %v2038 = vunpack.c.l.b16 %v1469
      %v2039 = vunpack.c.h.b16 %v1469
      %v2040 = vunpack.c.l.b16 %v1470
      %v2041 = vunpack.c.h.b16 %v1470
      %v2042 = vunpack.c.l.b16 %v1471
      %v2043 = vunpack.c.h.b16 %v1471
      %v2044 = vunpack.c.l.b16 %v1472
      %v2045 = vunpack.c.h.b16 %v1472
      %v2046 = vunpack.c.l.b16 %v1473
      %v2047 = vunpack.c.h.b16 %v1473
      %v2048 = vunpack.c.l.b16 %v1474
      %v2049 = vunpack.c.h.b16 %v1474
      %v2050 = vunpack.c.l.b16 %v1475
      %v2051 = vunpack.c.h.b16 %v1475
      %v2052 = vunpack.c.l.b16 %v1476
      %v2053 = vunpack.c.h.b16 %v1476
      %v2054 = vunpack.c.l.b16 %v1477
      %v2055 = vunpack.c.h.b16 %v1477
      %v2056 = vunpack.c.l.b16 %v1478
      %v2057 = vunpack.c.h.b16 %v1478
      %v2058 = vunpack.c.l.b16 %v1479
      %v2059 = vunpack.c.h.b16 %v1479
      %v2060 = vunpack.c.l.b16 %v1480
      %v2061 = vunpack.c.h.b16 %v1480
      %v2062 = vunpack.c.l.b16 %v1481
      %v2063 = vunpack.c.h.b16 %v1481
      %v2064 = vunpack.c.l.b16 %v1482
      %v2065 = vunpack.c.h.b16 %v1482
      %v2066 = vunpack.c.l.b16 %v1483
      %v2067 = vunpack.c.h.b16 %v1483
      %v2068 = vunpack.c.l.b16 %v1484
      %v2069 = vunpack.c.h.b16 %v1484
      %v2070 = vunpack.c.l.b16 %v1485
      %v2071 = vunpack.c.h.b16 %v1485
      %v2072 = vunpack.c.l.b16 %v1486
      %v2073 = vunpack.c.h.b16 %v1486
      %v2074 = vunpack.c.l.b16 %v1487
      %v2075 = vunpack.c.h.b16 %v1487
      %v2076 = vunpack.c.l.b16 %v1488
      %v2077 = vunpack.c.h.b16 %v1488
      %v2078 = vunpack.c.l.b16 %v1489
      %v2079 = vunpack.c.h.b16 %v1489
      %v2080 = vunpack.c.l.b16 %v1490
      %v2081 = vunpack.c.h.b16 %v1490
      %v2082 = vunpack.c.l.b16 %v1491
      %v2083 = vunpack.c.h.b16 %v1491
      %v2084 = vunpack.c.l.b16 %v1492
      %v2085 = vunpack.c.h.b16 %v1492
      %v2086 = vunpack.c.l.b16 %v1493
      %v2087 = vunpack.c.h.b16 %v1493
      %v2088 = vunpack.c.l.b16 %v1494
      %v2089 = vunpack.c.h.b16 %v1494
      %v2090 = vunpack.c.l.b16 %v1495
      %v2091 = vunpack.c.h.b16 %v1495
      %v2092 = vunpack.c.l.b16 %v1496
      %v2093 = vunpack.c.h.b16 %v1496
      %v2094 = vunpack.c.l.b16 %v1497
      %v2095 = vunpack.c.h.b16 %v1497
      %v2096 = vunpack.c.l.b16 %v1498
      %v2097 = vunpack.c.h.b16 %v1498
      %v2098 = vunpack.c.l.b16 %v1499
      %v2099 = vunpack.c.h.b16 %v1499
      %v2100 = vunpack.c.l.b16 %v1500
      %v2101 = vunpack.c.h.b16 %v1500
      %v2102 = vunpack.c.l.b16 %v1501
      %v2103 = vunpack.c.h.b16 %v1501
      %v2104 = vunpack.c.l.b16 %v1502
      %v2105 = vunpack.c.h.b16 %v1502
      %v2106 = vunpack.c.l.b16 %v1503
      %v2107 = vunpack.c.h.b16 %v1503
      %v2108 = vunpack.c.l.b16 %v1504
      %v2109 = vunpack.c.h.b16 %v1504
      %v2110 = vunpack.c.l.b16 %v1505
      %v2111 = vunpack.c.h.b16 %v1505
      %v2112 = vunpack.c.l.b16 %v1506
      %v2113 = vunpack.c.h.b16 %v1506
      %v2114 = vunpack.c.l.b16 %v1507
      %v2115 = vunpack.c.h.b16 %v1507
      %v2116 = vunpack.c.l.b16 %v1508
      %v2117 = vunpack.c.h.b16 %v1508
      %v2118 = vunpack.c.l.b16 %v1509
      %v2119 = vunpack.c.h.b16 %v1509
      %v2120 = vunpack.c.l.b16 %v1510
      %v2121 = vunpack.c.h.b16 %v1510
      %v2122 = vunpack.c.l.b16 %v1511
      %v2123 = vunpack.c.h.b16 %v1511
      %v2124 = vunpack.c.l.b16 %v1512
      %v2125 = vunpack.c.h.b16 %v1512
      %v2126 = vunpack.c.l.b16 %v1513
      %v2127 = vunpack.c.h.b16 %v1513
      %v2128 = vunpack.c.l.b16 %v1514
      %v2129 = vunpack.c.h.b16 %v1514
      %v2130 = vunpack.c.l.b16 %v1515
      %v2131 = vunpack.c.h.b16 %v1515
      %v2132 = vunpack.c.l.b16 %v1516
      %v2133 = vunpack.c.h.b16 %v1516
      %v2134 = vunpack.c.l.b16 %v1517
      %v2135 = vunpack.c.h.b16 %v1517
      %v2136 = vunpack.c.l.b16 %v1518
      %v2137 = vunpack.c.h.b16 %v1518
      %v2138 = vunpack.c.l.b16 %v1519
      %v2139 = vunpack.c.h.b16 %v1519
      %v2140 = vunpack.c.l.b16 %v1520
      %v2141 = vunpack.c.h.b16 %v1520
      %v2142 = vunpack.c.l.b16 %v1521
      %v2143 = vunpack.c.h.b16 %v1521
      %v2144 = vunpack.c.l.b16 %v1522
      %v2145 = vunpack.c.h.b16 %v1522
      %v2146 = vunpack.c.l.b16 %v1523
      %v2147 = vunpack.c.h.b16 %v1523
      %v2148 = vunpack.c.l.b16 %v1524
      %v2149 = vunpack.c.h.b16 %v1524
      %v2150 = vunpack.c.l.b16 %v1525
      %v2151 = vunpack.c.h.b16 %v1525
      %v2152 = vunpack.c.l.b16 %v1526
      %v2153 = vunpack.c.h.b16 %v1526
      %v2154 = vunpack.c.l.b16 %v1527
      %v2155 = vunpack.c.h.b16 %v1527
      %v2156 = vunpack.c.l.b16 %v1528
      %v2157 = vunpack.c.h.b16 %v1528
      %v2158 = vunpack.c.l.b16 %v1529
      %v2159 = vunpack.c.h.b16 %v1529
      %v2160 = vunpack.c.l.b16 %v1530
      %v2161 = vunpack.c.h.b16 %v1530
      %v2162 = vunpack.c.l.b16 %v1531
      %v2163 = vunpack.c.h.b16 %v1531
      %v2164 = vunpack.c.l.b16 %v1532
      %v2165 = vunpack.c.h.b16 %v1532
      %v2166 = vunpack.c.l.b16 %v1533
      %v2167 = vunpack.c.h.b16 %v1533
      %v2168 = vunpack.c.l.b16 %v1534
      %v2169 = vunpack.c.h.b16 %v1534
      %v2170 = vunpack.c.l.b16 %v1535
      %v2171 = vunpack.c.h.b16 %v1535
      %v2172 = vunpack.c.l.b16 %v1536
      %v2173 = vunpack.c.h.b16 %v1536
      %v2174 = vunpack.c.l.b16 %v1537
      %v2175 = vunpack.c.h.b16 %v1537
      %v2176 = vunpack.c.l.b16 %v1538
      %v2177 = vunpack.c.h.b16 %v1538
      %v2178 = vunpack.c.l.b16 %v1539
      %v2179 = vunpack.c.h.b16 %v1539
      %v2180 = vpack.c.b16 %v1940, %v1924
      %v2181 = vpack.c.b16 %v1941, %v1925
      %v2182 = vpack.c.b16 %v1942, %v1926
      %v2183 = vpack.c.b16 %v1943, %v1927
      %v2184 = vpack.c.b16 %v1944, %v1928
      %v2185 = vpack.c.b16 %v1945, %v1929
      %v2186 = vpack.c.b16 %v1946, %v1930
      %v2187 = vpack.c.b16 %v1947, %v1931
      %v2188 = vpack.c.b16 %v1948, %v1932
      %v2189 = vpack.c.b16 %v1949, %v1933
      %v2190 = vpack.c.b16 %v1950, %v1934
      %v2191 = vpack.c.b16 %v1951, %v1935
      %v2192 = vpack.c.b16 %v1952, %v1936
      %v2193 = vpack.c.b16 %v1953, %v1937
      %v2194 = vpack.c.b16 %v1954, %v1938
      %v2195 = vpack.c.b16 %v1955, %v1939
      %v2196 = vpack.c.b16 %v1972, %v1956
      %v2197 = vpack.c.b16 %v1973, %v1957
      %v2198 = vpack.c.b16 %v1974, %v1958
      %v2199 = vpack.c.b16 %v1975, %v1959
      %v2200 = vpack.c.b16 %v1976, %v1960
      %v2201 = vpack.c.b16 %v1977, %v1961
      %v2202 = vpack.c.b16 %v1978, %v1962
      %v2203 = vpack.c.b16 %v1979, %v1963
      %v2204 = vpack.c.b16 %v1980, %v1964
      %v2205 = vpack.c.b16 %v1981, %v1965
      %v2206 = vpack.c.b16 %v1982, %v1966
      %v2207 = vpack.c.b16 %v1983, %v1967
      %v2208 = vpack.c.b16 %v1984, %v1968
      %v2209 = vpack.c.b16 %v1985, %v1969
      %v2210 = vpack.c.b16 %v1986, %v1970
      %v2211 = vpack.c.b16 %v1987, %v1971
      %v2212 = vpack.c.b16 %v2004, %v1988
      %v2213 = vpack.c.b16 %v2005, %v1989
      %v2214 = vpack.c.b16 %v2006, %v1990
      %v2215 = vpack.c.b16 %v2007, %v1991
      %v2216 = vpack.c.b16 %v2008, %v1992
      %v2217 = vpack.c.b16 %v2009, %v1993
      %v2218 = vpack.c.b16 %v2010, %v1994
      %v2219 = vpack.c.b16 %v2011, %v1995
      %v2220 = vpack.c.b16 %v2012, %v1996
      %v2221 = vpack.c.b16 %v2013, %v1997
      %v2222 = vpack.c.b16 %v2014, %v1998
      %v2223 = vpack.c.b16 %v2015, %v1999
      %v2224 = vpack.c.b16 %v2016, %v2000
      %v2225 = vpack.c.b16 %v2017, %v2001
      %v2226 = vpack.c.b16 %v2018, %v2002
      %v2227 = vpack.c.b16 %v2019, %v2003
      %v2228 = vpack.c.b16 %v2036, %v2020
      %v2229 = vpack.c.b16 %v2037, %v2021
      %v2230 = vpack.c.b16 %v2038, %v2022
      %v2231 = vpack.c.b16 %v2039, %v2023
      %v2232 = vpack.c.b16 %v2040, %v2024
      %v2233 = vpack.c.b16 %v2041, %v2025
      %v2234 = vpack.c.b16 %v2042, %v2026
      %v2235 = vpack.c.b16 %v2043, %v2027
      %v2236 = vpack.c.b16 %v2044, %v2028
      %v2237 = vpack.c.b16 %v2045, %v2029
      %v2238 = vpack.c.b16 %v2046, %v2030
      %v2239 = vpack.c.b16 %v2047, %v2031
      %v2240 = vpack.c.b16 %v2048, %v2032
      %v2241 = vpack.c.b16 %v2049, %v2033
      %v2242 = vpack.c.b16 %v2050, %v2034
      %v2243 = vpack.c.b16 %v2051, %v2035
      %v2244 = vpack.c.b16 %v2068, %v2052
      %v2245 = vpack.c.b16 %v2069, %v2053
      %v2246 = vpack.c.b16 %v2070, %v2054
      %v2247 = vpack.c.b16 %v2071, %v2055
      %v2248 = vpack.c.b16 %v2072, %v2056
      %v2249 = vpack.c.b16 %v2073, %v2057
      %v2250 = vpack.c.b16 %v2074, %v2058
      %v2251 = vpack.c.b16 %v2075, %v2059
      %v2252 = vpack.c.b16 %v2076, %v2060
      %v2253 = vpack.c.b16 %v2077, %v2061
      %v2254 = vpack.c.b16 %v2078, %v2062
      %v2255 = vpack.c.b16 %v2079, %v2063
      %v2256 = vpack.c.b16 %v2080, %v2064
      %v2257 = vpack.c.b16 %v2081, %v2065
      %v2258 = vpack.c.b16 %v2082, %v2066
      %v2259 = vpack.c.b16 %v2083, %v2067
      %v2260 = vpack.c.b16 %v2100, %v2084
      %v2261 = vpack.c.b16 %v2101, %v2085
      %v2262 = vpack.c.b16 %v2102, %v2086
      %v2263 = vpack.c.b16 %v2103, %v2087
      %v2264 = vpack.c.b16 %v2104, %v2088
      %v2265 = vpack.c.b16 %v2105, %v2089
      %v2266 = vpack.c.b16 %v2106, %v2090
      %v2267 = vpack.c.b16 %v2107, %v2091
      %v2268 = vpack.c.b16 %v2108, %v2092
      %v2269 = vpack.c.b16 %v2109, %v2093
      %v2270 = vpack.c.b16 %v2110, %v2094
      %v2271 = vpack.c.b16 %v2111, %v2095
      %v2272 = vpack.c.b16 %v2112, %v2096
      %v2273 = vpack.c.b16 %v2113, %v2097
      %v2274 = vpack.c.b16 %v2114, %v2098
      %v2275 = vpack.c.b16 %v2115, %v2099
      %v2276 = vpack.c.b16 %v2132, %v2116
      %v2277 = vpack.c.b16 %v2133, %v2117
      %v2278 = vpack.c.b16 %v2134, %v2118
      %v2279 = vpack.c.b16 %v2135, %v2119
      %v2280 = vpack.c.b16 %v2136, %v2120
      %v2281 = vpack.c.b16 %v2137, %v2121
      %v2282 = vpack.c.b16 %v2138, %v2122
      %v2283 = vpack.c.b16 %v2139, %v2123
      %v2284 = vpack.c.b16 %v2140, %v2124
      %v2285 = vpack.c.b16 %v2141, %v2125
      %v2286 = vpack.c.b16 %v2142, %v2126
      %v2287 = vpack.c.b16 %v2143, %v2127
      %v2288 = vpack.c.b16 %v2144, %v2128
      %v2289 = vpack.c.b16 %v2145, %v2129
      %v2290 = vpack.c.b16 %v2146, %v2130
      %v2291 = vpack.c.b16 %v2147, %v2131
      %v2292 = vpack.c.b16 %v2164, %v2148
      %v2293 = vpack.c.b16 %v2165, %v2149
      %v2294 = vpack.c.b16 %v2166, %v2150
      %v2295 = vpack.c.b16 %v2167, %v2151
      %v2296 = vpack.c.b16 %v2168, %v2152
      %v2297 = vpack.c.b16 %v2169, %v2153
      %v2298 = vpack.c.b16 %v2170, %v2154
      %v2299 = vpack.c.b16 %v2171, %v2155
      %v2300 = vpack.c.b16 %v2172, %v2156
      %v2301 = vpack.c.b16 %v2173, %v2157
      %v2302 = vpack.c.b16 %v2174, %v2158
      %v2303 = vpack.c.b16 %v2175, %v2159
      %v2304 = vpack.c.b16 %v2176, %v2160
      %v2305 = vpack.c.b16 %v2177, %v2161
      %v2306 = vpack.c.b16 %v2178, %v2162
      %v2307 = vpack.c.b16 %v2179, %v2163
      %2436 = vmatprep.subr.bf16.mxu0 %v2181
      %2437 = vmatpush1.bf16.xpose.msra.mxu0 %v2180
      %2438 = vmatprep.subr.bf16.mxu0 %v2197
      %2439 = vmatpush1.bf16.xpose.msra.mxu0 %v2196
      %2440 = vmatprep.subr.bf16.mxu0 %v2213
      %2441 = vmatpush1.bf16.xpose.msra.mxu0 %v2212
      %2442 = vmatprep.subr.bf16.mxu0 %v2229
      %2443 = vmatpush1.bf16.xpose.msra.mxu0 %v2228
      %2444 = vmatprep.subr.bf16.mxu0 %v2245
      %2445 = vmatpush1.bf16.xpose.msra.mxu0 %v2244
      %2446 = vmatprep.subr.bf16.mxu0 %v2261
      %2447 = vmatpush1.bf16.xpose.msra.mxu0 %v2260
      %2448 = vmatprep.subr.bf16.mxu0 %v2277
      %2449 = vmatpush1.bf16.xpose.msra.mxu0 %v2276
      %2450 = vmatprep.subr.bf16.mxu0 %v2293
      %2451 = vmatpush1.bf16.xpose.msra.mxu0 %v2292
      %2452 = vmatprep.subr.bf16.mxu0 0
      %2453 = vmatpush1.bf16.xpose.msra.mxu0 0
      %2454 = vmatprep.subr.bf16.mxu0 0
      %2455 = vmatpush1.bf16.xpose.msra.mxu0 0
      %2456 = vmatprep.subr.bf16.mxu0 0
      %2457 = vmatpush1.bf16.xpose.msra.mxu0 0
      %2458 = vmatprep.subr.bf16.mxu0 0
      %2459 = vmatpush1.bf16.xpose.msra.mxu0 0
      %2460 = vmatprep.subr.bf16.mxu0 0
      %2461 = vmatpush1.bf16.xpose.msra.mxu0 0
      %2462 = vmatprep.subr.bf16.mxu0 0
      %2463 = vmatpush1.bf16.xpose.msra.mxu0 0
      %2464 = vmatprep.subr.bf16.mxu0 0
      %2465 = vmatpush1.bf16.xpose.msra.mxu0 0
      %2466 = vmatprep.subr.bf16.mxu0 0
      %2467 = vmatpush1.bf16.xpose.msra.mxu0 0
      %2468 = vmatprep.mubr.bf16.mxu0 %v1564
      %2469 = vmatmul.mubr.bf16.gmra.mrb[0].mxu0 %v1548
      %v2470 = vpop.f32.mrb[0].mxu0
      %v2471 = vadd.f32 0.0, %v2470
      %v2472 = vpop.f32.mrb[0].mxu0
      %v2473 = vpop.f32.mrb[0].mxu0
      %v2474 = vadd.f32 0.0, %v2473
      %v2475 = vpop.f32.mrb[0].mxu0
      %2476 = vmatprep.mubr.bf16.mxu0 %v1565
      %2477 = vmatmul.mubr.bf16.gmra.mrb[0].mxu0 %v1549
      %v2478 = vpop.f32.mrb[0].mxu0
      %v2479 = vadd.f32 0.0, %v2478
      %v2480 = vpop.f32.mrb[0].mxu0
      %v2481 = vpop.f32.mrb[0].mxu0
      %v2482 = vadd.f32 0.0, %v2481
      %v2483 = vpop.f32.mrb[0].mxu0
      %2484 = vmatprep.mubr.bf16.mxu0 %v1566
      %2485 = vmatmul.mubr.bf16.gmra.mrb[0].mxu0 %v1550
      %v2486 = vpop.f32.mrb[0].mxu0
      %v2487 = vadd.f32 0.0, %v2486
      %v2488 = vpop.f32.mrb[0].mxu0
      %v2489 = vpop.f32.mrb[0].mxu0
      %v2490 = vadd.f32 0.0, %v2489
      %v2491 = vpop.f32.mrb[0].mxu0
      %2492 = vmatprep.mubr.bf16.mxu0 %v1567
      %2493 = vmatmul.mubr.bf16.gmra.mrb[0].mxu0 %v1551
      %v2494 = vpop.f32.mrb[0].mxu0
      %v2495 = vadd.f32 0.0, %v2494
      %v2496 = vpop.f32.mrb[0].mxu0
      %v2497 = vpop.f32.mrb[0].mxu0
      %v2498 = vadd.f32 0.0, %v2497
      %v2499 = vpop.f32.mrb[0].mxu0
      %2500 = vdwg.mxu0
      %2501 = vmatprep.subr.bf16.mxu0 %v2183
      %2502 = vmatpush1.bf16.xpose.msra.mxu0 %v2182
      %2503 = vmatprep.subr.bf16.mxu0 %v2199
      %2504 = vmatpush1.bf16.xpose.msra.mxu0 %v2198
      %2505 = vmatprep.subr.bf16.mxu0 %v2215
      %2506 = vmatpush1.bf16.xpose.msra.mxu0 %v2214
      %2507 = vmatprep.subr.bf16.mxu0 %v2231
      %2508 = vmatpush1.bf16.xpose.msra.mxu0 %v2230
      %2509 = vmatprep.subr.bf16.mxu0 %v2247
      %2510 = vmatpush1.bf16.xpose.msra.mxu0 %v2246
      %2511 = vmatprep.subr.bf16.mxu0 %v2263
      %2512 = vmatpush1.bf16.xpose.msra.mxu0 %v2262
      %2513 = vmatprep.subr.bf16.mxu0 %v2279
      %2514 = vmatpush1.bf16.xpose.msra.mxu0 %v2278
      %2515 = vmatprep.subr.bf16.mxu0 %v2295
      %2516 = vmatpush1.bf16.xpose.msra.mxu0 %v2294
      %2517 = vmatprep.subr.bf16.mxu0 0
      %2518 = vmatpush1.bf16.xpose.msra.mxu0 0
      %2519 = vmatprep.subr.bf16.mxu0 0
      %2520 = vmatpush1.bf16.xpose.msra.mxu0 0
      %2521 = vmatprep.subr.bf16.mxu0 0
      %2522 = vmatpush1.bf16.xpose.msra.mxu0 0
      %2523 = vmatprep.subr.bf16.mxu0 0
      %2524 = vmatpush1.bf16.xpose.msra.mxu0 0
      %2525 = vmatprep.subr.bf16.mxu0 0
      %2526 = vmatpush1.bf16.xpose.msra.mxu0 0
      %2527 = vmatprep.subr.bf16.mxu0 0
      %2528 = vmatpush1.bf16.xpose.msra.mxu0 0
      %2529 = vmatprep.subr.bf16.mxu0 0
      %2530 = vmatpush1.bf16.xpose.msra.mxu0 0
      %2531 = vmatprep.subr.bf16.mxu0 0
      %2532 = vmatpush1.bf16.xpose.msra.mxu0 0
      %2533 = vmatprep.mubr.bf16.mxu0 %v1596
      %2534 = vmatmul.mubr.bf16.gmra.mrb[0].mxu0 %v1580
      %v2535 = vpop.f32.mrb[0].mxu0
      %v2536 = vadd.f32 %v2471, %v2535
      %v2537 = vpop.f32.mrb[0].mxu0
      %v2538 = vpop.f32.mrb[0].mxu0
      %v2539 = vadd.f32 %v2474, %v2538
      %v2540 = vpop.f32.mrb[0].mxu0
      %2541 = vmatprep.mubr.bf16.mxu0 %v1597
      %2542 = vmatmul.mubr.bf16.gmra.mrb[0].mxu0 %v1581
      %v2543 = vpop.f32.mrb[0].mxu0
      %v2544 = vadd.f32 %v2479, %v2543
      %v2545 = vpop.f32.mrb[0].mxu0
      %v2546 = vpop.f32.mrb[0].mxu0
      %v2547 = vadd.f32 %v2482, %v2546
      %v2548 = vpop.f32.mrb[0].mxu0
      %2549 = vmatprep.mubr.bf16.mxu0 %v1598
      %2550 = vmatmul.mubr.bf16.gmra.mrb[0].mxu0 %v1582
      %v2551 = vpop.f32.mrb[0].mxu0
      %v2552 = vadd.f32 %v2487, %v2551
      %v2553 = vpop.f32.mrb[0].mxu0
      %v2554 = vpop.f32.mrb[0].mxu0
      %v2555 = vadd.f32 %v2490, %v2554
      %v2556 = vpop.f32.mrb[0].mxu0
      %2557 = vmatprep.mubr.bf16.mxu0 %v1599
      %2558 = vmatmul.mubr.bf16.gmra.mrb[0].mxu0 %v1583
      %v2559 = vpop.f32.mrb[0].mxu0
      %v2560 = vadd.f32 %v2495, %v2559
      %v2561 = vpop.f32.mrb[0].mxu0
      %v2562 = vpop.f32.mrb[0].mxu0
      %v2563 = vadd.f32 %v2498, %v2562
      %v2564 = vpop.f32.mrb[0].mxu0
      %2565 = vdwg.mxu0
      %2566 = vmatprep.subr.bf16.mxu0 %v2185
      %2567 = vmatpush1.bf16.xpose.msra.mxu0 %v2184
      %2568 = vmatprep.subr.bf16.mxu0 %v2201
      %2569 = vmatpush1.bf16.xpose.msra.mxu0 %v2200
      %2570 = vmatprep.subr.bf16.mxu0 %v2217
      %2571 = vmatpush1.bf16.xpose.msra.mxu0 %v2216
      %2572 = vmatprep.subr.bf16.mxu0 %v2233
      %2573 = vmatpush1.bf16.xpose.msra.mxu0 %v2232
      %2574 = vmatprep.subr.bf16.mxu0 %v2249
      %2575 = vmatpush1.bf16.xpose.msra.mxu0 %v2248
      %2576 = vmatprep.subr.bf16.mxu0 %v2265
      %2577 = vmatpush1.bf16.xpose.msra.mxu0 %v2264
      %2578 = vmatprep.subr.bf16.mxu0 %v2281
      %2579 = vmatpush1.bf16.xpose.msra.mxu0 %v2280
      %2580 = vmatprep.subr.bf16.mxu0 %v2297
      %2581 = vmatpush1.bf16.xpose.msra.mxu0 %v2296
      %2582 = vmatprep.subr.bf16.mxu0 0
      %2583 = vmatpush1.bf16.xpose.msra.mxu0 0
      %2584 = vmatprep.subr.bf16.mxu0 0
      %2585 = vmatpush1.bf16.xpose.msra.mxu0 0
      %2586 = vmatprep.subr.bf16.mxu0 0
      %2587 = vmatpush1.bf16.xpose.msra.mxu0 0
      %2588 = vmatprep.subr.bf16.mxu0 0
      %2589 = vmatpush1.bf16.xpose.msra.mxu0 0
      %2590 = vmatprep.subr.bf16.mxu0 0
      %2591 = vmatpush1.bf16.xpose.msra.mxu0 0
      %2592 = vmatprep.subr.bf16.mxu0 0
      %2593 = vmatpush1.bf16.xpose.msra.mxu0 0
      %2594 = vmatprep.subr.bf16.mxu0 0
      %2595 = vmatpush1.bf16.xpose.msra.mxu0 0
      %2596 = vmatprep.subr.bf16.mxu0 0
      %2597 = vmatpush1.bf16.xpose.msra.mxu0 0
      %2598 = vmatprep.mubr.bf16.mxu0 %v1628
      %2599 = vmatmul.mubr.bf16.gmra.mrb[0].mxu0 %v1612
      %v2600 = vpop.f32.mrb[0].mxu0
      %v2601 = vadd.f32 %v2536, %v2600
      %v2602 = vpop.f32.mrb[0].mxu0
      %v2603 = vpop.f32.mrb[0].mxu0
      %v2604 = vadd.f32 %v2539, %v2603
      %v2605 = vpop.f32.mrb[0].mxu0
      %2606 = vmatprep.mubr.bf16.mxu0 %v1629
      %2607 = vmatmul.mubr.bf16.gmra.mrb[0].mxu0 %v1613
      %v2608 = vpop.f32.mrb[0].mxu0
      %v2609 = vadd.f32 %v2544, %v2608
      %v2610 = vpop.f32.mrb[0].mxu0
      %v2611 = vpop.f32.mrb[0].mxu0
      %v2612 = vadd.f32 %v2547, %v2611
      %v2613 = vpop.f32.mrb[0].mxu0
      %2614 = vmatprep.mubr.bf16.mxu0 %v1630
      %2615 = vmatmul.mubr.bf16.gmra.mrb[0].mxu0 %v1614
      %v2616 = vpop.f32.mrb[0].mxu0
      %v2617 = vadd.f32 %v2552, %v2616
      %v2618 = vpop.f32.mrb[0].mxu0
      %v2619 = vpop.f32.mrb[0].mxu0
      %v2620 = vadd.f32 %v2555, %v2619
      %v2621 = vpop.f32.mrb[0].mxu0
      %2622 = vmatprep.mubr.bf16.mxu0 %v1631
      %2623 = vmatmul.mubr.bf16.gmra.mrb[0].mxu0 %v1615
      %v2624 = vpop.f32.mrb[0].mxu0
      %v2625 = vadd.f32 %v2560, %v2624
      %v2626 = vpop.f32.mrb[0].mxu0
      %v2627 = vpop.f32.mrb[0].mxu0
      %v2628 = vadd.f32 %v2563, %v2627
      %v2629 = vpop.f32.mrb[0].mxu0
      %2630 = vdwg.mxu0
      %2631 = vmatprep.subr.bf16.mxu0 %v2187
      %2632 = vmatpush1.bf16.xpose.msra.mxu0 %v2186
      %2633 = vmatprep.subr.bf16.mxu0 %v2203
      %2634 = vmatpush1.bf16.xpose.msra.mxu0 %v2202
      %2635 = vmatprep.subr.bf16.mxu0 %v2219
      %2636 = vmatpush1.bf16.xpose.msra.mxu0 %v2218
      %2637 = vmatprep.subr.bf16.mxu0 %v2235
      %2638 = vmatpush1.bf16.xpose.msra.mxu0 %v2234
      %2639 = vmatprep.subr.bf16.mxu0 %v2251
      %2640 = vmatpush1.bf16.xpose.msra.mxu0 %v2250
      %2641 = vmatprep.subr.bf16.mxu0 %v2267
      %2642 = vmatpush1.bf16.xpose.msra.mxu0 %v2266
      %2643 = vmatprep.subr.bf16.mxu0 %v2283
      %2644 = vmatpush1.bf16.xpose.msra.mxu0 %v2282
      %2645 = vmatprep.subr.bf16.mxu0 %v2299
      %2646 = vmatpush1.bf16.xpose.msra.mxu0 %v2298
      %2647 = vmatprep.subr.bf16.mxu0 0
      %2648 = vmatpush1.bf16.xpose.msra.mxu0 0
      %2649 = vmatprep.subr.bf16.mxu0 0
      %2650 = vmatpush1.bf16.xpose.msra.mxu0 0
      %2651 = vmatprep.subr.bf16.mxu0 0
      %2652 = vmatpush1.bf16.xpose.msra.mxu0 0
      %2653 = vmatprep.subr.bf16.mxu0 0
      %2654 = vmatpush1.bf16.xpose.msra.mxu0 0
      %2655 = vmatprep.subr.bf16.mxu0 0
      %2656 = vmatpush1.bf16.xpose.msra.mxu0 0
      %2657 = vmatprep.subr.bf16.mxu0 0
      %2658 = vmatpush1.bf16.xpose.msra.mxu0 0
      %2659 = vmatprep.subr.bf16.mxu0 0
      %2660 = vmatpush1.bf16.xpose.msra.mxu0 0
      %2661 = vmatprep.subr.bf16.mxu0 0
      %2662 = vmatpush1.bf16.xpose.msra.mxu0 0
      %2663 = vmatprep.mubr.bf16.mxu0 %v1660
      %2664 = vmatmul.mubr.bf16.gmra.mrb[0].mxu0 %v1644
      %v2665 = vpop.f32.mrb[0].mxu0
      %v2666 = vadd.f32 %v2601, %v2665
      %v2667 = vpop.f32.mrb[0].mxu0
      %v2668 = vpop.f32.mrb[0].mxu0
      %v2669 = vadd.f32 %v2604, %v2668
      %v2670 = vpop.f32.mrb[0].mxu0
      %2671 = vmatprep.mubr.bf16.mxu0 %v1661
      %2672 = vmatmul.mubr.bf16.gmra.mrb[0].mxu0 %v1645
      %v2673 = vpop.f32.mrb[0].mxu0
      %v2674 = vadd.f32 %v2609, %v2673
      %v2675 = vpop.f32.mrb[0].mxu0
      %v2676 = vpop.f32.mrb[0].mxu0
      %v2677 = vadd.f32 %v2612, %v2676
      %v2678 = vpop.f32.mrb[0].mxu0
      %2679 = vmatprep.mubr.bf16.mxu0 %v1662
      %2680 = vmatmul.mubr.bf16.gmra.mrb[0].mxu0 %v1646
      %v2681 = vpop.f32.mrb[0].mxu0
      %v2682 = vadd.f32 %v2617, %v2681
      %v2683 = vpop.f32.mrb[0].mxu0
      %v2684 = vpop.f32.mrb[0].mxu0
      %v2685 = vadd.f32 %v2620, %v2684
      %v2686 = vpop.f32.mrb[0].mxu0
      %2687 = vmatprep.mubr.bf16.mxu0 %v1663
      %2688 = vmatmul.mubr.bf16.gmra.mrb[0].mxu0 %v1647
      %v2689 = vpop.f32.mrb[0].mxu0
      %v2690 = vadd.f32 %v2625, %v2689
      %v2691 = vpop.f32.mrb[0].mxu0
      %v2692 = vpop.f32.mrb[0].mxu0
      %v2693 = vadd.f32 %v2628, %v2692
      %v2694 = vpop.f32.mrb[0].mxu0
      %2695 = vdwg.mxu0
      %2696 = vmatprep.subr.bf16.mxu0 %v2189
      %2697 = vmatpush1.bf16.xpose.msra.mxu0 %v2188
      %2698 = vmatprep.subr.bf16.mxu0 %v2205
      %2699 = vmatpush1.bf16.xpose.msra.mxu0 %v2204
      %2700 = vmatprep.subr.bf16.mxu0 %v2221
      %2701 = vmatpush1.bf16.xpose.msra.mxu0 %v2220
      %2702 = vmatprep.subr.bf16.mxu0 %v2237
      %2703 = vmatpush1.bf16.xpose.msra.mxu0 %v2236
      %2704 = vmatprep.subr.bf16.mxu0 %v2253
      %2705 = vmatpush1.bf16.xpose.msra.mxu0 %v2252
      %2706 = vmatprep.subr.bf16.mxu0 %v2269
      %2707 = vmatpush1.bf16.xpose.msra.mxu0 %v2268
      %2708 = vmatprep.subr.bf16.mxu0 %v2285
      %2709 = vmatpush1.bf16.xpose.msra.mxu0 %v2284
      %2710 = vmatprep.subr.bf16.mxu0 %v2301
      %2711 = vmatpush1.bf16.xpose.msra.mxu0 %v2300
      %2712 = vmatprep.subr.bf16.mxu0 0
      %2713 = vmatpush1.bf16.xpose.msra.mxu0 0
      %2714 = vmatprep.subr.bf16.mxu0 0
      %2715 = vmatpush1.bf16.xpose.msra.mxu0 0
      %2716 = vmatprep.subr.bf16.mxu0 0
      %2717 = vmatpush1.bf16.xpose.msra.mxu0 0
      %2718 = vmatprep.subr.bf16.mxu0 0
      %2719 = vmatpush1.bf16.xpose.msra.mxu0 0
      %2720 = vmatprep.subr.bf16.mxu0 0
      %2721 = vmatpush1.bf16.xpose.msra.mxu0 0
      %2722 = vmatprep.subr.bf16.mxu0 0
      %2723 = vmatpush1.bf16.xpose.msra.mxu0 0
      %2724 = vmatprep.subr.bf16.mxu0 0
      %2725 = vmatpush1.bf16.xpose.msra.mxu0 0
      %2726 = vmatprep.subr.bf16.mxu0 0
      %2727 = vmatpush1.bf16.xpose.msra.mxu0 0
      %2728 = vmatprep.mubr.bf16.mxu0 %v1692
      %2729 = vmatmul.mubr.bf16.gmra.mrb[0].mxu0 %v1676
      %v2730 = vpop.f32.mrb[0].mxu0
      %v2731 = vadd.f32 %v2666, %v2730
      %v2732 = vpop.f32.mrb[0].mxu0
      %v2733 = vpop.f32.mrb[0].mxu0
      %v2734 = vadd.f32 %v2669, %v2733
      %v2735 = vpop.f32.mrb[0].mxu0
      %2736 = vmatprep.mubr.bf16.mxu0 %v1693
      %2737 = vmatmul.mubr.bf16.gmra.mrb[0].mxu0 %v1677
      %v2738 = vpop.f32.mrb[0].mxu0
      %v2739 = vadd.f32 %v2674, %v2738
      %v2740 = vpop.f32.mrb[0].mxu0
      %v2741 = vpop.f32.mrb[0].mxu0
      %v2742 = vadd.f32 %v2677, %v2741
      %v2743 = vpop.f32.mrb[0].mxu0
      %2744 = vmatprep.mubr.bf16.mxu0 %v1694
      %2745 = vmatmul.mubr.bf16.gmra.mrb[0].mxu0 %v1678
      %v2746 = vpop.f32.mrb[0].mxu0
      %v2747 = vadd.f32 %v2682, %v2746
      %v2748 = vpop.f32.mrb[0].mxu0
      %v2749 = vpop.f32.mrb[0].mxu0
      %v2750 = vadd.f32 %v2685, %v2749
      %v2751 = vpop.f32.mrb[0].mxu0
      %2752 = vmatprep.mubr.bf16.mxu0 %v1695
      %2753 = vmatmul.mubr.bf16.gmra.mrb[0].mxu0 %v1679
      %v2754 = vpop.f32.mrb[0].mxu0
      %v2755 = vadd.f32 %v2690, %v2754
      %v2756 = vpop.f32.mrb[0].mxu0
      %v2757 = vpop.f32.mrb[0].mxu0
      %v2758 = vadd.f32 %v2693, %v2757
      %v2759 = vpop.f32.mrb[0].mxu0
      %2760 = vdwg.mxu0
      %2761 = vmatprep.subr.bf16.mxu0 %v2191
      %2762 = vmatpush1.bf16.xpose.msra.mxu0 %v2190
      %2763 = vmatprep.subr.bf16.mxu0 %v2207
      %2764 = vmatpush1.bf16.xpose.msra.mxu0 %v2206
      %2765 = vmatprep.subr.bf16.mxu0 %v2223
      %2766 = vmatpush1.bf16.xpose.msra.mxu0 %v2222
      %2767 = vmatprep.subr.bf16.mxu0 %v2239
      %2768 = vmatpush1.bf16.xpose.msra.mxu0 %v2238
      %2769 = vmatprep.subr.bf16.mxu0 %v2255
      %2770 = vmatpush1.bf16.xpose.msra.mxu0 %v2254
      %2771 = vmatprep.subr.bf16.mxu0 %v2271
      %2772 = vmatpush1.bf16.xpose.msra.mxu0 %v2270
      %2773 = vmatprep.subr.bf16.mxu0 %v2287
      %2774 = vmatpush1.bf16.xpose.msra.mxu0 %v2286
      %2775 = vmatprep.subr.bf16.mxu0 %v2303
      %2776 = vmatpush1.bf16.xpose.msra.mxu0 %v2302
      %2777 = vmatprep.subr.bf16.mxu0 0
      %2778 = vmatpush1.bf16.xpose.msra.mxu0 0
      %2779 = vmatprep.subr.bf16.mxu0 0
      %2780 = vmatpush1.bf16.xpose.msra.mxu0 0
      %2781 = vmatprep.subr.bf16.mxu0 0
      %2782 = vmatpush1.bf16.xpose.msra.mxu0 0
      %2783 = vmatprep.subr.bf16.mxu0 0
      %2784 = vmatpush1.bf16.xpose.msra.mxu0 0
      %2785 = vmatprep.subr.bf16.mxu0 0
      %2786 = vmatpush1.bf16.xpose.msra.mxu0 0
      %2787 = vmatprep.subr.bf16.mxu0 0
      %2788 = vmatpush1.bf16.xpose.msra.mxu0 0
      %2789 = vmatprep.subr.bf16.mxu0 0
      %2790 = vmatpush1.bf16.xpose.msra.mxu0 0
      %2791 = vmatprep.subr.bf16.mxu0 0
      %2792 = vmatpush1.bf16.xpose.msra.mxu0 0
      %2793 = vmatprep.mubr.bf16.mxu0 %v1724
      %2794 = vmatmul.mubr.bf16.gmra.mrb[0].mxu0 %v1708
      %v2795 = vpop.f32.mrb[0].mxu0
      %v2796 = vadd.f32 %v2731, %v2795
      %v2797 = vpop.f32.mrb[0].mxu0
      %v2798 = vpop.f32.mrb[0].mxu0
      %v2799 = vadd.f32 %v2734, %v2798
      %v2800 = vpop.f32.mrb[0].mxu0
      %2801 = vmatprep.mubr.bf16.mxu0 %v1725
      %2802 = vmatmul.mubr.bf16.gmra.mrb[0].mxu0 %v1709
      %v2803 = vpop.f32.mrb[0].mxu0
      %v2804 = vadd.f32 %v2739, %v2803
      %v2805 = vpop.f32.mrb[0].mxu0
      %v2806 = vpop.f32.mrb[0].mxu0
      %v2807 = vadd.f32 %v2742, %v2806
      %v2808 = vpop.f32.mrb[0].mxu0
      %2809 = vmatprep.mubr.bf16.mxu0 %v1726
      %2810 = vmatmul.mubr.bf16.gmra.mrb[0].mxu0 %v1710
      %v2811 = vpop.f32.mrb[0].mxu0
      %v2812 = vadd.f32 %v2747, %v2811
      %v2813 = vpop.f32.mrb[0].mxu0
      %v2814 = vpop.f32.mrb[0].mxu0
      %v2815 = vadd.f32 %v2750, %v2814
      %v2816 = vpop.f32.mrb[0].mxu0
      %2817 = vmatprep.mubr.bf16.mxu0 %v1727
      %2818 = vmatmul.mubr.bf16.gmra.mrb[0].mxu0 %v1711
      %v2819 = vpop.f32.mrb[0].mxu0
      %v2820 = vadd.f32 %v2755, %v2819
      %v2821 = vpop.f32.mrb[0].mxu0
      %v2822 = vpop.f32.mrb[0].mxu0
      %v2823 = vadd.f32 %v2758, %v2822
      %v2824 = vpop.f32.mrb[0].mxu0
      %2825 = vdwg.mxu0
      %2826 = vmatprep.subr.bf16.mxu0 %v2193
      %2827 = vmatpush1.bf16.xpose.msra.mxu0 %v2192
      %2828 = vmatprep.subr.bf16.mxu0 %v2209
      %2829 = vmatpush1.bf16.xpose.msra.mxu0 %v2208
      %2830 = vmatprep.subr.bf16.mxu0 %v2225
      %2831 = vmatpush1.bf16.xpose.msra.mxu0 %v2224
      %2832 = vmatprep.subr.bf16.mxu0 %v2241
      %2833 = vmatpush1.bf16.xpose.msra.mxu0 %v2240
      %2834 = vmatprep.subr.bf16.mxu0 %v2257
      %2835 = vmatpush1.bf16.xpose.msra.mxu0 %v2256
      %2836 = vmatprep.subr.bf16.mxu0 %v2273
      %2837 = vmatpush1.bf16.xpose.msra.mxu0 %v2272
      %2838 = vmatprep.subr.bf16.mxu0 %v2289
      %2839 = vmatpush1.bf16.xpose.msra.mxu0 %v2288
      %2840 = vmatprep.subr.bf16.mxu0 %v2305
      %2841 = vmatpush1.bf16.xpose.msra.mxu0 %v2304
      %2842 = vmatprep.subr.bf16.mxu0 0
      %2843 = vmatpush1.bf16.xpose.msra.mxu0 0
      %2844 = vmatprep.subr.bf16.mxu0 0
      %2845 = vmatpush1.bf16.xpose.msra.mxu0 0
      %2846 = vmatprep.subr.bf16.mxu0 0
      %2847 = vmatpush1.bf16.xpose.msra.mxu0 0
      %2848 = vmatprep.subr.bf16.mxu0 0
      %2849 = vmatpush1.bf16.xpose.msra.mxu0 0
      %2850 = vmatprep.subr.bf16.mxu0 0
      %2851 = vmatpush1.bf16.xpose.msra.mxu0 0
      %2852 = vmatprep.subr.bf16.mxu0 0
      %2853 = vmatpush1.bf16.xpose.msra.mxu0 0
      %2854 = vmatprep.subr.bf16.mxu0 0
      %2855 = vmatpush1.bf16.xpose.msra.mxu0 0
      %2856 = vmatprep.subr.bf16.mxu0 0
      %2857 = vmatpush1.bf16.xpose.msra.mxu0 0
      %2858 = vmatprep.mubr.bf16.mxu0 %v1756
      %2859 = vmatmul.mubr.bf16.gmra.mrb[0].mxu0 %v1740
      %v2860 = vpop.f32.mrb[0].mxu0
      %v2861 = vadd.f32 %v2796, %v2860
      %v2862 = vpop.f32.mrb[0].mxu0
      %v2863 = vpop.f32.mrb[0].mxu0
      %v2864 = vadd.f32 %v2799, %v2863
      %v2865 = vpop.f32.mrb[0].mxu0
      %2866 = vmatprep.mubr.bf16.mxu0 %v1757
      %2867 = vmatmul.mubr.bf16.gmra.mrb[0].mxu0 %v1741
      %v2868 = vpop.f32.mrb[0].mxu0
      %v2869 = vadd.f32 %v2804, %v2868
      %v2870 = vpop.f32.mrb[0].mxu0
      %v2871 = vpop.f32.mrb[0].mxu0
      %v2872 = vadd.f32 %v2807, %v2871
      %v2873 = vpop.f32.mrb[0].mxu0
      %2874 = vmatprep.mubr.bf16.mxu0 %v1758
      %2875 = vmatmul.mubr.bf16.gmra.mrb[0].mxu0 %v1742
      %v2876 = vpop.f32.mrb[0].mxu0
      %v2877 = vadd.f32 %v2812, %v2876
      %v2878 = vpop.f32.mrb[0].mxu0
      %v2879 = vpop.f32.mrb[0].mxu0
      %v2880 = vadd.f32 %v2815, %v2879
      %v2881 = vpop.f32.mrb[0].mxu0
      %2882 = vmatprep.mubr.bf16.mxu0 %v1759
      %2883 = vmatmul.mubr.bf16.gmra.mrb[0].mxu0 %v1743
      %v2884 = vpop.f32.mrb[0].mxu0
      %v2885 = vadd.f32 %v2820, %v2884
      %v2886 = vpop.f32.mrb[0].mxu0
      %v2887 = vpop.f32.mrb[0].mxu0
      %v2888 = vadd.f32 %v2823, %v2887
      %v2889 = vpop.f32.mrb[0].mxu0
      %2890 = vdwg.mxu0
      %2891 = vmatprep.subr.bf16.mxu0 %v2195
      %2892 = vmatpush1.bf16.xpose.msra.mxu0 %v2194
      %2893 = vmatprep.subr.bf16.mxu0 %v2211
      %2894 = vmatpush1.bf16.xpose.msra.mxu0 %v2210
      %2895 = vmatprep.subr.bf16.mxu0 %v2227
      %2896 = vmatpush1.bf16.xpose.msra.mxu0 %v2226
      %2897 = vmatprep.subr.bf16.mxu0 %v2243
      %2898 = vmatpush1.bf16.xpose.msra.mxu0 %v2242
      %2899 = vmatprep.subr.bf16.mxu0 %v2259
      %2900 = vmatpush1.bf16.xpose.msra.mxu0 %v2258
      %2901 = vmatprep.subr.bf16.mxu0 %v2275
      %2902 = vmatpush1.bf16.xpose.msra.mxu0 %v2274
      %2903 = vmatprep.subr.bf16.mxu0 %v2291
      %2904 = vmatpush1.bf16.xpose.msra.mxu0 %v2290
      %2905 = vmatprep.subr.bf16.mxu0 %v2307
      %2906 = vmatpush1.bf16.xpose.msra.mxu0 %v2306
      %2907 = vmatprep.subr.bf16.mxu0 0
      %2908 = vmatpush1.bf16.xpose.msra.mxu0 0
      %2909 = vmatprep.subr.bf16.mxu0 0
      %2910 = vmatpush1.bf16.xpose.msra.mxu0 0
      %2911 = vmatprep.subr.bf16.mxu0 0
      %2912 = vmatpush1.bf16.xpose.msra.mxu0 0
      %2913 = vmatprep.subr.bf16.mxu0 0
      %2914 = vmatpush1.bf16.xpose.msra.mxu0 0
      %2915 = vmatprep.subr.bf16.mxu0 0
      %2916 = vmatpush1.bf16.xpose.msra.mxu0 0
      %2917 = vmatprep.subr.bf16.mxu0 0
      %2918 = vmatpush1.bf16.xpose.msra.mxu0 0
      %2919 = vmatprep.subr.bf16.mxu0 0
      %2920 = vmatpush1.bf16.xpose.msra.mxu0 0
      %2921 = vmatprep.subr.bf16.mxu0 0
      %2922 = vmatpush1.bf16.xpose.msra.mxu0 0
      %2923 = vmatprep.mubr.bf16.mxu0 %v1788
      %2924 = vmatmul.mubr.bf16.gmra.mrb[0].mxu0 %v1772
      %v2925 = vpop.f32.mrb[0].mxu0
      %v2926 = vadd.f32 %v2861, %v2925
      %v2927 = vpop.f32.mrb[0].mxu0
      %v2928 = vpop.f32.mrb[0].mxu0
      %v2929 = vadd.f32 %v2864, %v2928
      %v2930 = vpop.f32.mrb[0].mxu0
      %2931 = vmatprep.mubr.bf16.mxu0 %v1789
      %2932 = vmatmul.mubr.bf16.gmra.mrb[0].mxu0 %v1773
      %v2933 = vpop.f32.mrb[0].mxu0
      %v2934 = vadd.f32 %v2869, %v2933
      %v2935 = vpop.f32.mrb[0].mxu0
      %v2936 = vpop.f32.mrb[0].mxu0
      %v2937 = vadd.f32 %v2872, %v2936
      %v2938 = vpop.f32.mrb[0].mxu0
      %2939 = vmatprep.mubr.bf16.mxu0 %v1790
      %2940 = vmatmul.mubr.bf16.gmra.mrb[0].mxu0 %v1774
      %v2941 = vpop.f32.mrb[0].mxu0
      %v2942 = vadd.f32 %v2877, %v2941
      %v2943 = vpop.f32.mrb[0].mxu0
      %v2944 = vpop.f32.mrb[0].mxu0
      %v2945 = vadd.f32 %v2880, %v2944
      %v2946 = vpop.f32.mrb[0].mxu0
      %2947 = vmatprep.mubr.bf16.mxu0 %v1791
      %2948 = vmatmul.mubr.bf16.gmra.mrb[0].mxu0 %v1775
      %v2949 = vpop.f32.mrb[0].mxu0
      %v2950 = vadd.f32 %v2885, %v2949
      %v2951 = vpop.f32.mrb[0].mxu0
      %v2952 = vpop.f32.mrb[0].mxu0
      %v2953 = vadd.f32 %v2888, %v2952
      %v2954 = vpop.f32.mrb[0].mxu0
      %2955 = vdwg.mxu0
      %v2956 = vadd.f32 %v2926, %v2929
      %v2957 = vadd.f32 %v2956, %v2934
      %v2958 = vadd.f32 %v2957, %v2937
      %v2959 = vadd.f32 %v2958, %v2942
      %v2960 = vadd.f32 %v2959, %v2945
      %v2961 = vadd.f32 %v2960, %v2950
      %v2962 = vadd.f32 %v2961, %v2953
      %v2963 = vrot.slane %v2962, 4
      %v2964 = vadd.f32 %v2962, %v2963
      %v2965 = vrot.slane %v2964, 2
      %v2966 = vadd.f32 %v2964, %v2965
      %v2967 = vrot.slane %v2966, 1
      %v2968 = vadd.f32 %v2966, %v2967
      %v2969 = vrcp.pop 64.0
      %v2970 = vmul.f32 %v2968, %v2969
      %v2971 = vsub.f32 %v2926, %v2970
      %v2972 = vsub.f32 %v2929, %v2970
      %v2973 = vsub.f32 %v2934, %v2970
      %v2974 = vsub.f32 %v2937, %v2970
      %v2975 = vsub.f32 %v2942, %v2970
      %v2976 = vsub.f32 %v2945, %v2970
      %v2977 = vsub.f32 %v2950, %v2970
      %v2978 = vsub.f32 %v2953, %v2970
      %v2979 = vmul.f32 %v2971, %v2971
      %v2980 = vmul.f32 %v2972, %v2972
      %v2981 = vmul.f32 %v2973, %v2973
      %v2982 = vmul.f32 %v2974, %v2974
      %v2983 = vmul.f32 %v2975, %v2975
      %v2984 = vmul.f32 %v2976, %v2976
      %v2985 = vmul.f32 %v2977, %v2977
      %v2986 = vmul.f32 %v2978, %v2978
      %v2987 = vadd.f32 %v2979, %v2980
      %v2988 = vadd.f32 %v2987, %v2981
      %v2989 = vadd.f32 %v2988, %v2982
      %v2990 = vadd.f32 %v2989, %v2983
      %v2991 = vadd.f32 %v2990, %v2984
      %v2992 = vadd.f32 %v2991, %v2985
      %v2993 = vadd.f32 %v2992, %v2986
      %v2994 = vrot.slane %v2993, 4
      %v2995 = vadd.f32 %v2993, %v2994
      %v2996 = vrot.slane %v2995, 2
      %v2997 = vadd.f32 %v2995, %v2996
      %v2998 = vrot.slane %v2997, 1
      %v2999 = vadd.f32 %v2997, %v2998
      %v3000 = vmul.f32 %v2999, %v2969
      %v3001 = vadd.f32 %v3000, 1e-05
      %v3002 = vrsqrt.pop %v3001
      %v3003 = vmul.f32 %v2971, %v3002
      %v3004 = vmul.f32 %v2972, %v3002
      %v3005 = vmul.f32 %v2973, %v3002
      %v3006 = vmul.f32 %v2974, %v3002
      %v3007 = vmul.f32 %v2975, %v3002
      %v3008 = vmul.f32 %v2976, %v3002
      %v3009 = vmul.f32 %v2977, %v3002
      %v3010 = vmul.f32 %v2978, %v3002
      %v3011 = vld [vmem:[%s249] sm:$0x1]
      %v3013 = vlaneseq
      %v3014 = vshrl.u32 %v3013, 7
      %v3015 = vsub.s32 0, %v3014
      %v3016 = vrot.slane %v3011, %v3015
      %v3018 = vmul.f32 %v3003, %v3016
      %v3019 = vmul.f32 %v3004, %v3016
      %v3020 = vmul.f32 %v3005, %v3016
      %v3021 = vmul.f32 %v3006, %v3016
      %v3022 = vmul.f32 %v3007, %v3016
      %v3023 = vmul.f32 %v3008, %v3016
      %v3024 = vmul.f32 %v3009, %v3016
      %v3025 = vmul.f32 %v3010, %v3016
      %v3026 = vld [vmem:[%s252] sm:$0x1]
      %v3028 = vlaneseq
      %v3029 = vshrl.u32 %v3028, 7
      %v3030 = vsub.s32 0, %v3029
      %v3031 = vrot.slane %v3026, %v3030
      %v3033 = vadd.f32 %v3018, %v3031
      %v3034 = vadd.f32 %v3019, %v3031
      %v3035 = vadd.f32 %v3020, %v3031
      %v3036 = vadd.f32 %v3021, %v3031
      %v3037 = vadd.f32 %v3022, %v3031
      %v3038 = vadd.f32 %v3023, %v3031
      %v3039 = vadd.f32 %v3024, %v3031
      %v3040 = vadd.f32 %v3025, %v3031
      %3041 = vxpose.xlu0.b32.start [1/16] %v3033, 128
      %3042 = vxpose.xlu0.b32.cont [2/16] %v3034, 128
      %3043 = vxpose.xlu0.b32.cont [3/16] %v3035, 128
      %3044 = vxpose.xlu0.b32.cont [4/16] %v3036, 128
      %3045 = vxpose.xlu0.b32.cont [5/16] %v3037, 128
      %3046 = vxpose.xlu0.b32.cont [6/16] %v3038, 128
      %3047 = vxpose.xlu0.b32.cont [7/16] %v3039, 128
      %3048 = vxpose.xlu0.b32.cont [8/16] %v3040, 128
      %3049 = vxpose.xlu0.b32.cont [9/16] 0.0, 128
      %3050 = vxpose.xlu0.b32.cont [10/16] 0.0, 128
      %3051 = vxpose.xlu0.b32.cont [11/16] 0.0, 128
      %3052 = vxpose.xlu0.b32.cont [12/16] 0.0, 128
      %3053 = vxpose.xlu0.b32.cont [13/16] 0.0, 128
      %3054 = vxpose.xlu0.b32.cont [14/16] 0.0, 128
      %3055 = vxpose.xlu0.b32.cont [15/16] 0.0, 128
      %3056 = vxpose.xlu0.b32.end [16/16] 0.0, 128
      %v3057 = vpop.trf.xlu0
      %v3058 = vpop.trf.xlu0
      %v3059 = vpop.trf.xlu0
      %v3060 = vpop.trf.xlu0
      %v3061 = vpop.trf.xlu0
      %v3062 = vpop.trf.xlu0
      %v3063 = vpop.trf.xlu0
      %v3064 = vpop.trf.xlu0
      %v3065 = vpop.trf.xlu0
      %v3066 = vpop.trf.xlu0
      %v3067 = vpop.trf.xlu0
      %v3068 = vpop.trf.xlu0
      %v3069 = vpop.trf.xlu0
      %v3070 = vpop.trf.xlu0
      %v3071 = vpop.trf.xlu0
      %v3072 = vpop.trf.xlu0
      %vm3073 = vcmask 523264
      %3074 = vst.msk [vmem:[%s257] sm:$0xff] %vm3073, %v3057
      %3075 = vst.msk [vmem:[%s257 + $0x8] sm:$0xff] %vm3073, %v3058
      %3076 = vst.msk [vmem:[%s257 + $0x10] sm:$0xff] %vm3073, %v3059
      %3077 = vst.msk [vmem:[%s257 + $0x18] sm:$0xff] %vm3073, %v3060
      %3078 = vst.msk [vmem:[%s257 + $0x20] sm:$0xff] %vm3073, %v3061
      %3079 = vst.msk [vmem:[%s257 + $0x28] sm:$0xff] %vm3073, %v3062
      %3080 = vst.msk [vmem:[%s257 + $0x30] sm:$0xff] %vm3073, %v3063
      %3081 = vst.msk [vmem:[%s257 + $0x38] sm:$0xff] %vm3073, %v3064
      %3082 = vst.msk [vmem:[%s257 + $0x40] sm:$0xff] %vm3073, %v3065
      %3083 = vst.msk [vmem:[%s257 + $0x48] sm:$0xff] %vm3073, %v3066
      %3084 = vst.msk [vmem:[%s257 + $0x50] sm:$0xff] %vm3073, %v3067
      %3085 = vst.msk [vmem:[%s257 + $0x58] sm:$0xff] %vm3073, %v3068
      %3086 = vst.msk [vmem:[%s257 + $0x60] sm:$0xff] %vm3073, %v3069
      %3087 = vst.msk [vmem:[%s257 + $0x68] sm:$0xff] %vm3073, %v3070
      %3088 = vst.msk [vmem:[%s257 + $0x70] sm:$0xff] %vm3073, %v3071
      %3089 = vst.msk [vmem:[%s257 + $0x78] sm:$0xff] %vm3073, %v3072
      %s3090 = smul.u32 16, %s16
      %p3091 = scmp.lt.s32.totalorder %s3090, 63
      %s3092 = scalar_select %p3091, %s3090, 63
      %s3093 = smul.addr %s3092, 8
      %s3094 = scalar_lea.vmem %s5, %s3093
      // Predicated region
      $region41: #{tpu_custom_call.1} parent=39 // pred_check
        %p3095 = pneg %p154
      $region42: #{tpu_custom_call.1} parent=39 // pred_check_branch
        %3097 = sbr.rel (%p3095) target = $region44
      $region43: #{tpu_custom_call.1} parent=39 // pred_region
        %s3098 = smul.u32 16, %s16
      $region44: #{tpu_custom_call.1} parent=39 // pred_fallthru
        _
    $region40: #{tpu_custom_call.1} parent=5 // pred_fallthru
      _
    %p3099 = scmp.le.s32.totalorder 2, %s11
    // Predicated region
    $region45: #{tpu_custom_call.1} parent=5 // pred_check
      %p3100 = pneg %p3099
    $region46: #{tpu_custom_call.1} parent=5 // pred_check_branch
      %3102 = sbr.rel (%p3100) target = $region48
    $region47: #{tpu_custom_call.1} parent=5 // pred_region
      %s3103 = ssub.s32 %s11, 2
      // Predicated region
      $region49: #{tpu_custom_call.1} parent=47 // pred_check
        %p3104 = pneg %p160
      $region50: #{tpu_custom_call.1} parent=47 // pred_check_branch
        %3106 = sbr.rel (%p3104) target = $region52
      $region51: #{tpu_custom_call.1} parent=47 // pred_region
        %s3107 = smul.u32 16, %s17
        %p3108 = scmp.lt.s32.totalorder %s3107, 63
        %s3109 = scalar_select %p3108, %s3107, 63
        %s3110 = smul.addr %s3109, 8
        %s3111 = scalar_lea.vmem %s5, %s3110
      $region52: #{tpu_custom_call.1} parent=47 // pred_fallthru
        _
    $region48: #{tpu_custom_call.1} parent=5 // pred_fallthru
      _
  $region6: #{tpu_custom_call.1} parent=0 // loop_footer
    %s15 = sadd.s32 1, %s11
  $region7: #{tpu_custom_call.1} parent=0 // loop_footer_branch
    %10 = sbr.rel target = $region3
  $region8: #{tpu_custom_call.1} parent=0 // loop_exit
    _

</llo_original>
